<compile_context>
chip_gen: v7x
topology: tpu7x:2x2x1
jax: 0.10.0
libtpu: 0.0.40
codegen_flags: <defaults>
</compile_context>

<pallas_src>
import functools

import jax
import jax.numpy as jnp
from jax.experimental import pallas as pl
from jax.experimental.pallas import tpu as pltpu


def _round_up(x, m):
    return ((x + m - 1) // m) * m


def _make_conv_bn_relu_kernel(tm, cout_pad, shifts):
    """Kernel: KH*KW shifted (tm, Cin)@(Cin, Cout) bf16 matmuls + f32 epilogue."""

    def kernel(x_ref, w_ref, s_ref, b_ref, o_ref):
        # x_ref: (L, Cin_pad) whole padded image rows (resident across M tiles)
        # w_ref: (KH*KW, Cin_pad, Cout_pad) bf16; s_ref/b_ref: (1, Cout_pad) f32
        # o_ref: (tm, Cout_pad)
        m_idx = pl.program_id(1)
        base = pl.multiple_of(m_idx * tm, 8)
        acc = jnp.zeros((tm, cout_pad), jnp.float32)
        for t, shift in enumerate(shifts):            # static unroll over taps
            lhs = x_ref[pl.ds(base + shift, tm), :].astype(jnp.bfloat16)
            acc = acc + jnp.dot(lhs, w_ref[t],
                                preferred_element_type=jnp.float32)
        y = acc * s_ref[...] + b_ref[...]              # fused BatchNorm
        o_ref[...] = jnp.maximum(y, 0.0).astype(o_ref.dtype)   # fused ReLU

    return kernel


def conv_bn_relu(x_nchw, weight_oikk, bn_gamma, bn_beta, bn_mean, bn_var,
                 *, ksize, stride, pad, dilation=1, bn_eps=1e-5,
                 tm=512, out_dtype=None):
    """ConvBnRelu forward (groups=1, bias=False, BN inference, ReLU)."""
    n, cin, h, w = x_nchw.shape
    cout = weight_oikk.shape[0]
    if out_dtype is None:
        out_dtype = x_nchw.dtype

    eff_k = (ksize - 1) * dilation + 1
    oh = (h + 2 * pad - eff_k) // stride + 1
    ow = (w + 2 * pad - eff_k) // stride + 1
    hp, wp = h + 2 * pad, w + 2 * pad
    ohd = hp - eff_k + 1                  # dense (stride-1) output rows

    cin_pad = _round_up(cin, 16)          # MXU / bf16-packing friendly K
    cout_pad = _round_up(cout, 128)       # lane-dense output stores

    # Glue: NCHW -> NHWC, spatial zero pad, flatten rows (~1x input traffic).
    x_nhwc = jnp.transpose(x_nchw, (0, 2, 3, 1)).astype(jnp.float32)
    xp = jnp.pad(x_nhwc, ((0, 0), (pad, pad), (pad, pad), (0, 0)))
    x_flat = xp.reshape(n, hp * wp, cin)

    m = ohd * wp                          # dense rows computed per image
    tm = min(tm, _round_up(m, 128))
    m_pad = _round_up(m, tm)

    shifts = [(i * dilation) * wp + j * dilation
              for i in range(ksize) for j in range(ksize)]
    max_shift = shifts[-1]
    l_rows = _round_up(m_pad + max_shift, 8)
    # Small slack pad (a few rows + Cin pad), NOT a 9x im2col matrix.
    x_flat = jnp.pad(
        x_flat, ((0, 0), (0, l_rows - hp * wp), (0, cin_pad - cin)))
    # TODO(synk): store the slab in bf16 once unaligned dynamic sublane slices
    # of packed dtypes are verified; here f32 slab + in-kernel bf16 cast.

    # Weights (Cout, Cin, KH, KW) -> (KH*KW, Cin_pad, Cout_pad), bf16.
    w_taps = jnp.transpose(weight_oikk, (2, 3, 1, 0)).reshape(
        ksize * ksize, cin, cout)
    w_taps = jnp.pad(
        w_taps, ((0, 0), (0, cin_pad - cin), (0, cout_pad - cout)))
    w_taps = w_taps.astype(jnp.bfloat16)

    # Fold BatchNorm (inference) into per-channel scale / bias (f32).
    scale = (bn_gamma.astype(jnp.float32)
             / jnp.sqrt(bn_var.astype(jnp.float32) + bn_eps))
    bias = bn_beta.astype(jnp.float32) - bn_mean.astype(jnp.float32) * scale
    scale = jnp.pad(scale, (0, cout_pad - cout)).reshape(1, cout_pad)
    bias = jnp.pad(bias, (0, cout_pad - cout)).reshape(1, cout_pad)

    # VMEM budget (double-buffered in/out + resident weights + accumulator).
    out_bytes = jnp.dtype(out_dtype).itemsize
    vmem_need = (2 * l_rows * cin_pad * 4
                 + ksize * ksize * cin_pad * cout_pad * 2
                 + 2 * tm * cout_pad * out_bytes
                 + tm * cout_pad * 4
                 + 4 * cout_pad * 4)
    vmem_limit = int(min(max(2 * vmem_need, 32 * 1024 * 1024),
                         64 * 1024 * 1024))   # stay inside v7x's 64 MiB VMEM

    kernel = _make_conv_bn_relu_kernel(tm, cout_pad, shifts)
    grid = (n, m_pad // tm)

    out = pl.pallas_call(
        kernel,
        out_shape=jax.ShapeDtypeStruct((n, m_pad, cout_pad), out_dtype),
        grid_spec=pltpu.PrefetchScalarGridSpec(
            num_scalar_prefetch=0,
            grid=grid,
            in_specs=[
                # Whole per-image row slab: same block index for every M tile,
                # so it is DMA'd once per image and stays resident in VMEM.
                pl.BlockSpec((None, l_rows, cin_pad), lambda b, i: (b, 0, 0)),
                pl.BlockSpec((ksize * ksize, cin_pad, cout_pad),
                             lambda b, i: (0, 0, 0)),
                pl.BlockSpec((1, cout_pad), lambda b, i: (0, 0)),
                pl.BlockSpec((1, cout_pad), lambda b, i: (0, 0)),
            ],
            out_specs=pl.BlockSpec((None, tm, cout_pad),
                                   lambda b, i: (b, i, 0)),
        ),
        compiler_params=pltpu.CompilerParams(
            dimension_semantics=("parallel", "parallel"),
            vmem_limit_bytes=vmem_limit),
    )(x_flat, w_taps, scale, bias)

    # Valid dense rows -> (N, OHd, Wp, Cout); subsample for stride; -> NCHW.
    # TODO(synk): stride > 1 computes the dense grid then subsamples
    # (~stride^2 extra MXU work); PSPNet's ConvBnRelu heads use stride=1.
    out = out[:, :m, :cout].reshape(n, ohd, wp, cout)
    out = out[:, ::stride, :(ow - 1) * stride + 1:stride, :]
    return jnp.transpose(out, (0, 3, 1, 2))


def _reference(x_nchw, weight, gamma, beta, mean, var, *, ksize, stride, pad,
               dilation, bn_eps):
    y = jax.lax.conv_general_dilated(
        x_nchw.astype(jnp.float32), weight.astype(jnp.float32),
        window_strides=(stride, stride),
        padding=((pad, pad), (pad, pad)),
        rhs_dilation=(dilation, dilation),
        dimension_numbers=("NCHW", "OIHW", "NCHW"))
    s = (gamma / jnp.sqrt(var + bn_eps)).reshape(1, -1, 1, 1)
    b = (beta - mean * gamma / jnp.sqrt(var + bn_eps)).reshape(1, -1, 1, 1)
    return jnp.maximum(y * s + b, 0.0)


if __name__ == "__main__":
    # ConvBnRelu(in_planes=4, out_planes=8, ksize=3, stride=1, pad=1)
    N, Cin, H, W = 2, 4, 16, 16
    Cout, K, STRIDE, PAD, DIL = 8, 3, 1, 1, 1
    BN_EPS = 1e-5

    key = jax.random.PRNGKey(0)
    kx, kw, kg, kb, km, kv = jax.random.split(key, 6)

    x = jax.random.normal(kx, (N, Cin, H, W), dtype=jnp.float32)
    weight = jax.random.normal(kw, (Cout, Cin, K, K), dtype=jnp.float32) * 0.1
    gamma = 1.0 + 0.1 * jax.random.normal(kg, (Cout,), dtype=jnp.float32)
    beta = 0.1 * jax.random.normal(kb, (Cout,), dtype=jnp.float32)
    mean = 0.1 * jax.random.normal(km, (Cout,), dtype=jnp.float32)
    var = jnp.abs(jax.random.normal(kv, (Cout,), dtype=jnp.float32)) + 0.5

    fwd = functools.partial(conv_bn_relu, ksize=K, stride=STRIDE, pad=PAD,
                            dilation=DIL, bn_eps=BN_EPS)
    out = jax.block_until_ready(fwd(x, weight, gamma, beta, mean, var))

    ref = _reference(x, weight, gamma, beta, mean, var, ksize=K, stride=STRIDE,
                     pad=PAD, dilation=DIL, bn_eps=BN_EPS)
    assert out.shape == (N, Cout, H, W), out.shape
    # bf16 MXU operands -> ~1e-3 level error vs the f32 reference.
    assert jnp.allclose(out, ref, atol=2e-2, rtol=2e-2), "mismatch vs reference"
    print("KERNEL_OK")
</pallas_src>

<mosaic_0001>
module attributes {stable_mosaic.version = 11 : i64} {
  func.func @kernel(%arg0: i32, %arg1: i32, %arg2: memref<1x424x16xf32, #tpu.memory_space<vmem>>, %arg3: memref<9x16x128xbf16, #tpu.memory_space<vmem>>, %arg4: memref<1x128xf32, #tpu.memory_space<vmem>>, %arg5: memref<1x128xf32, #tpu.memory_space<vmem>>, %arg6: memref<1x384x128xf32, #tpu.memory_space<vmem>>) attributes {dimension_semantics = [#tpu.dimension_semantics<parallel>, #tpu.dimension_semantics<parallel>], iteration_bounds = array<i64: 2, 1>, scalar_prefetch = 0 : i64, scratch_operands = 0 : i64, tpu.core_type = #tpu.core_type<tc>, window_params = [{transform_indices = @transform_0, window_bounds = array<i64: 1, 424, 16>}, {pipeline_mode = #tpu.pipeline_mode<synchronous>, transform_indices = @transform_1, window_bounds = array<i64: 9, 16, 128>}, {pipeline_mode = #tpu.pipeline_mode<synchronous>, transform_indices = @transform_2, window_bounds = array<i64: 1, 128>}, {pipeline_mode = #tpu.pipeline_mode<synchronous>, transform_indices = @transform_3, window_bounds = array<i64: 1, 128>}, {transform_indices = @transform_4, window_bounds = array<i64: 1, 384, 128>}]} {
    %c384_i32 = arith.constant 384 : i32
    %0 = arith.muli %arg1, %c384_i32 : i32
    %1 = tpu.assume_multiple %0, 8 : i32
    %cst = arith.constant 0.000000e+00 : f32
    %2 = vector.broadcast %cst : f32 to vector<384x128xf32>
    %c0_i32 = arith.constant 0 : i32
    %3 = arith.addi %1, %c0_i32 : i32
    %c0 = arith.constant 0 : index
    %4 = arith.index_cast %3 : i32 to index
    %c0_0 = arith.constant 0 : index
    %5 = vector.load %arg2[%c0, %4, %c0_0] : memref<1x424x16xf32, #tpu.memory_space<vmem>>, vector<1x384x16xf32>
    %6 = vector.shape_cast %5 : vector<1x384x16xf32> to vector<384x16xf32>
    %7 = arith.truncf %6 : vector<384x16xf32> to vector<384x16xbf16>
    %c0_1 = arith.constant 0 : index
    %c0_2 = arith.constant 0 : index
    %c0_3 = arith.constant 0 : index
    %8 = vector.load %arg3[%c0_1, %c0_2, %c0_3] : memref<9x16x128xbf16, #tpu.memory_space<vmem>>, vector<1x16x128xbf16>
    %9 = vector.shape_cast %8 : vector<1x16x128xbf16> to vector<16x128xbf16>
    %cst_4 = arith.constant dense<0.000000e+00> : vector<384x128xf32>
    %10 = tpu.matmul %7, %9, %cst_4 {dimension_numbers = #tpu.dot_dimension_numbers<[1], [0], [0], [1], [0, 0, 1, 1], [], []>} : vector<384x16xbf16>, vector<16x128xbf16>, vector<384x128xf32> -> vector<384x128xf32>
    %11 = arith.addf %2, %10 : vector<384x128xf32>
    %c1_i32 = arith.constant 1 : i32
    %12 = arith.addi %1, %c1_i32 : i32
    %c0_5 = arith.constant 0 : index
    %13 = arith.index_cast %12 : i32 to index
    %c0_6 = arith.constant 0 : index
    %14 = vector.load %arg2[%c0_5, %13, %c0_6] : memref<1x424x16xf32, #tpu.memory_space<vmem>>, vector<1x384x16xf32>
    %15 = vector.shape_cast %14 : vector<1x384x16xf32> to vector<384x16xf32>
    %16 = arith.truncf %15 : vector<384x16xf32> to vector<384x16xbf16>
    %c1 = arith.constant 1 : index
    %c0_7 = arith.constant 0 : index
    %c0_8 = arith.constant 0 : index
    %17 = vector.load %arg3[%c1, %c0_7, %c0_8] : memref<9x16x128xbf16, #tpu.memory_space<vmem>>, vector<1x16x128xbf16>
    %18 = vector.shape_cast %17 : vector<1x16x128xbf16> to vector<16x128xbf16>
    %cst_9 = arith.constant dense<0.000000e+00> : vector<384x128xf32>
    %19 = tpu.matmul %16, %18, %cst_9 {dimension_numbers = #tpu.dot_dimension_numbers<[1], [0], [0], [1], [0, 0, 1, 1], [], []>} : vector<384x16xbf16>, vector<16x128xbf16>, vector<384x128xf32> -> vector<384x128xf32>
    %20 = arith.addf %11, %19 : vector<384x128xf32>
    %c2_i32 = arith.constant 2 : i32
    %21 = arith.addi %1, %c2_i32 : i32
    %c0_10 = arith.constant 0 : index
    %22 = arith.index_cast %21 : i32 to index
    %c0_11 = arith.constant 0 : index
    %23 = vector.load %arg2[%c0_10, %22, %c0_11] : memref<1x424x16xf32, #tpu.memory_space<vmem>>, vector<1x384x16xf32>
    %24 = vector.shape_cast %23 : vector<1x384x16xf32> to vector<384x16xf32>
    %25 = arith.truncf %24 : vector<384x16xf32> to vector<384x16xbf16>
    %c2 = arith.constant 2 : index
    %c0_12 = arith.constant 0 : index
    %c0_13 = arith.constant 0 : index
    %26 = vector.load %arg3[%c2, %c0_12, %c0_13] : memref<9x16x128xbf16, #tpu.memory_space<vmem>>, vector<1x16x128xbf16>
    %27 = vector.shape_cast %26 : vector<1x16x128xbf16> to vector<16x128xbf16>
    %cst_14 = arith.constant dense<0.000000e+00> : vector<384x128xf32>
    %28 = tpu.matmul %25, %27, %cst_14 {dimension_numbers = #tpu.dot_dimension_numbers<[1], [0], [0], [1], [0, 0, 1, 1], [], []>} : vector<384x16xbf16>, vector<16x128xbf16>, vector<384x128xf32> -> vector<384x128xf32>
    %29 = arith.addf %20, %28 : vector<384x128xf32>
    %c18_i32 = arith.constant 18 : i32
    %30 = arith.addi %1, %c18_i32 : i32
    %c0_15 = arith.constant 0 : index
    %31 = arith.index_cast %30 : i32 to index
    %c0_16 = arith.constant 0 : index
    %32 = vector.load %arg2[%c0_15, %31, %c0_16] : memref<1x424x16xf32, #tpu.memory_space<vmem>>, vector<1x384x16xf32>
    %33 = vector.shape_cast %32 : vector<1x384x16xf32> to vector<384x16xf32>
    %34 = arith.truncf %33 : vector<384x16xf32> to vector<384x16xbf16>
    %c3 = arith.constant 3 : index
    %c0_17 = arith.constant 0 : index
    %c0_18 = arith.constant 0 : index
    %35 = vector.load %arg3[%c3, %c0_17, %c0_18] : memref<9x16x128xbf16, #tpu.memory_space<vmem>>, vector<1x16x128xbf16>
    %36 = vector.shape_cast %35 : vector<1x16x128xbf16> to vector<16x128xbf16>
    %cst_19 = arith.constant dense<0.000000e+00> : vector<384x128xf32>
    %37 = tpu.matmul %34, %36, %cst_19 {dimension_numbers = #tpu.dot_dimension_numbers<[1], [0], [0], [1], [0, 0, 1, 1], [], []>} : vector<384x16xbf16>, vector<16x128xbf16>, vector<384x128xf32> -> vector<384x128xf32>
    %38 = arith.addf %29, %37 : vector<384x128xf32>
    %c19_i32 = arith.constant 19 : i32
    %39 = arith.addi %1, %c19_i32 : i32
    %c0_20 = arith.constant 0 : index
    %40 = arith.index_cast %39 : i32 to index
    %c0_21 = arith.constant 0 : index
    %41 = vector.load %arg2[%c0_20, %40, %c0_21] : memref<1x424x16xf32, #tpu.memory_space<vmem>>, vector<1x384x16xf32>
    %42 = vector.shape_cast %41 : vector<1x384x16xf32> to vector<384x16xf32>
    %43 = arith.truncf %42 : vector<384x16xf32> to vector<384x16xbf16>
    %c4 = arith.constant 4 : index
    %c0_22 = arith.constant 0 : index
    %c0_23 = arith.constant 0 : index
    %44 = vector.load %arg3[%c4, %c0_22, %c0_23] : memref<9x16x128xbf16, #tpu.memory_space<vmem>>, vector<1x16x128xbf16>
    %45 = vector.shape_cast %44 : vector<1x16x128xbf16> to vector<16x128xbf16>
    %cst_24 = arith.constant dense<0.000000e+00> : vector<384x128xf32>
    %46 = tpu.matmul %43, %45, %cst_24 {dimension_numbers = #tpu.dot_dimension_numbers<[1], [0], [0], [1], [0, 0, 1, 1], [], []>} : vector<384x16xbf16>, vector<16x128xbf16>, vector<384x128xf32> -> vector<384x128xf32>
    %47 = arith.addf %38, %46 : vector<384x128xf32>
    %c20_i32 = arith.constant 20 : i32
    %48 = arith.addi %1, %c20_i32 : i32
    %c0_25 = arith.constant 0 : index
    %49 = arith.index_cast %48 : i32 to index
    %c0_26 = arith.constant 0 : index
    %50 = vector.load %arg2[%c0_25, %49, %c0_26] : memref<1x424x16xf32, #tpu.memory_space<vmem>>, vector<1x384x16xf32>
    %51 = vector.shape_cast %50 : vector<1x384x16xf32> to vector<384x16xf32>
    %52 = arith.truncf %51 : vector<384x16xf32> to vector<384x16xbf16>
    %c5 = arith.constant 5 : index
    %c0_27 = arith.constant 0 : index
    %c0_28 = arith.constant 0 : index
    %53 = vector.load %arg3[%c5, %c0_27, %c0_28] : memref<9x16x128xbf16, #tpu.memory_space<vmem>>, vector<1x16x128xbf16>
    %54 = vector.shape_cast %53 : vector<1x16x128xbf16> to vector<16x128xbf16>
    %cst_29 = arith.constant dense<0.000000e+00> : vector<384x128xf32>
    %55 = tpu.matmul %52, %54, %cst_29 {dimension_numbers = #tpu.dot_dimension_numbers<[1], [0], [0], [1], [0, 0, 1, 1], [], []>} : vector<384x16xbf16>, vector<16x128xbf16>, vector<384x128xf32> -> vector<384x128xf32>
    %56 = arith.addf %47, %55 : vector<384x128xf32>
    %c36_i32 = arith.constant 36 : i32
    %57 = arith.addi %1, %c36_i32 : i32
    %c0_30 = arith.constant 0 : index
    %58 = arith.index_cast %57 : i32 to index
    %c0_31 = arith.constant 0 : index
    %59 = vector.load %arg2[%c0_30, %58, %c0_31] : memref<1x424x16xf32, #tpu.memory_space<vmem>>, vector<1x384x16xf32>
    %60 = vector.shape_cast %59 : vector<1x384x16xf32> to vector<384x16xf32>
    %61 = arith.truncf %60 : vector<384x16xf32> to vector<384x16xbf16>
    %c6 = arith.constant 6 : index
    %c0_32 = arith.constant 0 : index
    %c0_33 = arith.constant 0 : index
    %62 = vector.load %arg3[%c6, %c0_32, %c0_33] : memref<9x16x128xbf16, #tpu.memory_space<vmem>>, vector<1x16x128xbf16>
    %63 = vector.shape_cast %62 : vector<1x16x128xbf16> to vector<16x128xbf16>
    %cst_34 = arith.constant dense<0.000000e+00> : vector<384x128xf32>
    %64 = tpu.matmul %61, %63, %cst_34 {dimension_numbers = #tpu.dot_dimension_numbers<[1], [0], [0], [1], [0, 0, 1, 1], [], []>} : vector<384x16xbf16>, vector<16x128xbf16>, vector<384x128xf32> -> vector<384x128xf32>
    %65 = arith.addf %56, %64 : vector<384x128xf32>
    %c37_i32 = arith.constant 37 : i32
    %66 = arith.addi %1, %c37_i32 : i32
    %c0_35 = arith.constant 0 : index
    %67 = arith.index_cast %66 : i32 to index
    %c0_36 = arith.constant 0 : index
    %68 = vector.load %arg2[%c0_35, %67, %c0_36] : memref<1x424x16xf32, #tpu.memory_space<vmem>>, vector<1x384x16xf32>
    %69 = vector.shape_cast %68 : vector<1x384x16xf32> to vector<384x16xf32>
    %70 = arith.truncf %69 : vector<384x16xf32> to vector<384x16xbf16>
    %c7 = arith.constant 7 : index
    %c0_37 = arith.constant 0 : index
    %c0_38 = arith.constant 0 : index
    %71 = vector.load %arg3[%c7, %c0_37, %c0_38] : memref<9x16x128xbf16, #tpu.memory_space<vmem>>, vector<1x16x128xbf16>
    %72 = vector.shape_cast %71 : vector<1x16x128xbf16> to vector<16x128xbf16>
    %cst_39 = arith.constant dense<0.000000e+00> : vector<384x128xf32>
    %73 = tpu.matmul %70, %72, %cst_39 {dimension_numbers = #tpu.dot_dimension_numbers<[1], [0], [0], [1], [0, 0, 1, 1], [], []>} : vector<384x16xbf16>, vector<16x128xbf16>, vector<384x128xf32> -> vector<384x128xf32>
    %74 = arith.addf %65, %73 : vector<384x128xf32>
    %c38_i32 = arith.constant 38 : i32
    %75 = arith.addi %1, %c38_i32 : i32
    %c0_40 = arith.constant 0 : index
    %76 = arith.index_cast %75 : i32 to index
    %c0_41 = arith.constant 0 : index
    %77 = vector.load %arg2[%c0_40, %76, %c0_41] : memref<1x424x16xf32, #tpu.memory_space<vmem>>, vector<1x384x16xf32>
    %78 = vector.shape_cast %77 : vector<1x384x16xf32> to vector<384x16xf32>
    %79 = arith.truncf %78 : vector<384x16xf32> to vector<384x16xbf16>
    %c8 = arith.constant 8 : index
    %c0_42 = arith.constant 0 : index
    %c0_43 = arith.constant 0 : index
    %80 = vector.load %arg3[%c8, %c0_42, %c0_43] : memref<9x16x128xbf16, #tpu.memory_space<vmem>>, vector<1x16x128xbf16>
    %81 = vector.shape_cast %80 : vector<1x16x128xbf16> to vector<16x128xbf16>
    %cst_44 = arith.constant dense<0.000000e+00> : vector<384x128xf32>
    %82 = tpu.matmul %79, %81, %cst_44 {dimension_numbers = #tpu.dot_dimension_numbers<[1], [0], [0], [1], [0, 0, 1, 1], [], []>} : vector<384x16xbf16>, vector<16x128xbf16>, vector<384x128xf32> -> vector<384x128xf32>
    %83 = arith.addf %74, %82 : vector<384x128xf32>
    %c0_45 = arith.constant 0 : index
    %c0_46 = arith.constant 0 : index
    %84 = vector.load %arg4[%c0_45, %c0_46] : memref<1x128xf32, #tpu.memory_space<vmem>>, vector<1x128xf32>
    %85 = vector.broadcast %84 : vector<1x128xf32> to vector<384x128xf32>
    %86 = arith.mulf %83, %85 : vector<384x128xf32>
    %c0_47 = arith.constant 0 : index
    %c0_48 = arith.constant 0 : index
    %87 = vector.load %arg5[%c0_47, %c0_48] : memref<1x128xf32, #tpu.memory_space<vmem>>, vector<1x128xf32>
    %88 = vector.broadcast %87 : vector<1x128xf32> to vector<384x128xf32>
    %89 = arith.addf %86, %88 : vector<384x128xf32>
    %cst_49 = arith.constant 0.000000e+00 : f32
    %90 = vector.broadcast %cst_49 : f32 to vector<384x128xf32>
    %91 = arith.maximumf %89, %90 : vector<384x128xf32>
    %c0_50 = arith.constant 0 : index
    %c0_51 = arith.constant 0 : index
    %c0_52 = arith.constant 0 : index
    %92 = vector.load %arg6[%c0_50, %c0_51, %c0_52] : memref<1x384x128xf32, #tpu.memory_space<vmem>>, vector<1x384x128xf32>
    %93 = vector.shape_cast %92 : vector<1x384x128xf32> to vector<384x128xf32>
    %94 = vector.shape_cast %91 : vector<384x128xf32> to vector<1x384x128xf32>
    tpu.vector_store %arg6[%c0_50, %c0_51, %c0_52], %94 {strides = array<i32>} : memref<1x384x128xf32, #tpu.memory_space<vmem>>, vector<1x384x128xf32>,
    return
  }
  func.func @transform_0(%arg0: i32, %arg1: i32) -> (i32, i32, i32) {
    %c0_i32 = arith.constant 0 : i32
    %c0_i32_0 = arith.constant 0 : i32
    %c0_i32_1 = arith.constant 0 : i32
    return %arg0, %c0_i32, %c0_i32_0 : i32, i32, i32
  }
  func.func @transform_1(%arg0: i32, %arg1: i32) -> (i32, i32, i32) {
    %c0_i32 = arith.constant 0 : i32
    %c0_i32_0 = arith.constant 0 : i32
    %c0_i32_1 = arith.constant 0 : i32
    %c0_i32_2 = arith.constant 0 : i32
    return %c0_i32, %c0_i32_0, %c0_i32_1 : i32, i32, i32
  }
  func.func @transform_2(%arg0: i32, %arg1: i32) -> (i32, i32) {
    %c0_i32 = arith.constant 0 : i32
    %c0_i32_0 = arith.constant 0 : i32
    %c0_i32_1 = arith.constant 0 : i32
    return %c0_i32, %c0_i32_0 : i32, i32
  }
  func.func @transform_3(%arg0: i32, %arg1: i32) -> (i32, i32) {
    %c0_i32 = arith.constant 0 : i32
    %c0_i32_0 = arith.constant 0 : i32
    %c0_i32_1 = arith.constant 0 : i32
    return %c0_i32, %c0_i32_0 : i32, i32
  }
  func.func @transform_4(%arg0: i32, %arg1: i32) -> (i32, i32, i32) {
    %c0_i32 = arith.constant 0 : i32
    %c0_i32_0 = arith.constant 0 : i32
    return %arg0, %arg1, %c0_i32 : i32, i32, i32
  }
}

</mosaic_0001>

<llo_original>
// kernel: tpu_custom_call.1
$region0: #{tpu_custom_call.1}
  #allocation0 [shape = 'u32[]', space=smem, size = 0x4, offset = 0x4, fixed_abs, tag = 'smem constant byte address 0x4 - core index']
  #allocation1 [shape = 'u32[144,128]{1,0:T(1,128)}', space=vmem, size = 0x12000, scoped, tag = 'internal scratch']
  %s0 = inlined_call_operand.vmem [shape: f32[2,424,16], index: 0, kind: input, shape index: {}]
  %s1 = inlined_call_operand.vmem [shape: bf16[9,16,128], index: 1, kind: input, shape index: {}]
  %s2 = inlined_call_operand.vmem [shape: f32[1,128], index: 2, kind: input, shape index: {}]
  %s3 = inlined_call_operand.vmem [shape: f32[1,128], index: 3, kind: input, shape index: {}]
  %s4 = inlined_call_operand.hbm [shape: f32[2,384,128], index: 4, kind: output, shape index: {}]
  %s5 = sld [smem:[#allocation0]]
  $region49: #{tpu_custom_call.1} parent=0
    _
  %s7 = ssub.s32 1, %s5
  %s8 = scalar_select 0, %s7, %s5
  $region1: #{tpu_custom_call.1} parent=0
    #allocation2 [shape = 'u8[393216]{0}', space=vmem, size = 0x60000, scoped, tag = 'output window, operand 0']
    #allocation3 [shape = 's32[2]{0}', space=sflag, size = 0x8, scoped, tag = 'scoped memory for tpu_custom_call.1']
    %9 = vsyncpa [#allocation3], 0
    %s10 = scalar_lea.sflag [#allocation3], 1
    %11 = vsyncpa %s10, 0
    loop: start=0, step=1, limit=4
    $region2: #{tpu_custom_call.1} parent=1 // loop_pre_header
      _
    $region3: #{tpu_custom_call.1} parent=1 // loop_header
      %s13 = sphi 0, %s17
      %p14 = scmp.ge.s32.totalorder %s13, 4
      %s20 = sphi 0, %s32
      %s21 = sphi 0, %s28
      %s22 = sphi 0, %s20
      %s23 = sphi 0, %s21
      %s24 = sphi 0, %s22
      %s25 = sphi 0, %s23
      %s35 = sphi 0, %s37
      %s38 = sphi 0, %s35
      %s39 = sphi 0, %s38
      %s55 = sphi 0, %s39
      %s59 = sphi 0, %s59
      %s61 = sphi 0, %s59
      %s62 = sphi 0, %s61
      %s76 = sphi 0, %s62
      %s80 = sphi 0, %s80
      %s82 = sphi 0, %s80
      %s83 = sphi 0, %s82
      %s97 = sphi 0, %s83
      %s101 = sphi 0, %s101
      %s103 = sphi 0, %s101
      %s104 = sphi 0, %s103
      %s118 = sphi 0, %s104
      %s126 = sphi 0, %s128
      %s129 = sphi 0, %s126
      %s130 = sphi 0, %s129
      %s146 = sphi 0, %s130
    $region4: #{tpu_custom_call.1} parent=1 // loop_header_branch
      %16 = sbr.rel (%p14) target = $region8
    $region5: #{tpu_custom_call.1} parent=1 // loop_body
      %s18 = ssub.s32 %s13, 1
      %s19 = ssub.s32 %s13, 2
      %s26 = sadd.s32 1, %s21
      %p27 = scmp.ge.s32.totalorder %s26, 1
      %s28 = scalar_select %p27, 0, %s26
      %s29 = sadd.s32 1, %s20
      %s30 = scalar_select %p27, %s29, %s20
      %p31 = scmp.ge.s32.totalorder %s30, 2
      %s32 = scalar_select %p31, 0, %s30
      %s33 = ssub.s32 %s20, %s32
      %p34 = scmp.eq.s32.totalorder %s33, 0
      %s36 = sadd.s32 %s35, 1
      %s37 = scalar_select %p34, %s35, %s36
      %p40 = pneg %p34
      %p41 = scmp.eq.s32.totalorder %s13, 1
      %p42 = por %p40, %p41
      %p43 = scmp.ne.s32.totalorder %s35, %s38
      %p44 = scmp.eq.s32.totalorder %s13, 0
      %p45 = por %p43, %p44
      %p46 = scmp.ne.s32.totalorder %s35, %s38
      %p47 = scmp.eq.s32.totalorder %s18, 1
      %p48 = por %p46, %p47
      %p49 = scmp.ne.s32.totalorder %s38, %s39
      %p50 = scmp.eq.s32.totalorder %s18, 0
      %p51 = por %p49, %p50
      %p52 = scmp.ne.s32.totalorder %s38, %s39
      %p53 = scmp.eq.s32.totalorder %s19, 1
      %p54 = por %p52, %p53
      %p56 = scmp.ne.s32.totalorder %s39, %s55
      %p57 = scmp.eq.s32.totalorder %s19, 0
      %p58 = por %p56, %p57
      %s60 = sadd.s32 %s59, 1
      %p63 = scmp.eq.s32.totalorder %s13, 1
      %p64 = scmp.ne.s32.totalorder %s59, %s61
      %p65 = scmp.eq.s32.totalorder %s13, 0
      %p66 = por %p64, %p65
      %p67 = scmp.ne.s32.totalorder %s59, %s61
      %p68 = scmp.eq.s32.totalorder %s18, 1
      %p69 = por %p67, %p68
      %p70 = scmp.ne.s32.totalorder %s61, %s62
      %p71 = scmp.eq.s32.totalorder %s18, 0
      %p72 = por %p70, %p71
      %p73 = scmp.ne.s32.totalorder %s61, %s62
      %p74 = scmp.eq.s32.totalorder %s19, 1
      %p75 = por %p73, %p74
      %p77 = scmp.ne.s32.totalorder %s62, %s76
      %p78 = scmp.eq.s32.totalorder %s19, 0
      %p79 = por %p77, %p78
      %s81 = sadd.s32 %s80, 1
      %p84 = scmp.eq.s32.totalorder %s13, 1
      %p85 = scmp.ne.s32.totalorder %s80, %s82
      %p86 = scmp.eq.s32.totalorder %s13, 0
      %p87 = por %p85, %p86
      %p88 = scmp.ne.s32.totalorder %s80, %s82
      %p89 = scmp.eq.s32.totalorder %s18, 1
      %p90 = por %p88, %p89
      %p91 = scmp.ne.s32.totalorder %s82, %s83
      %p92 = scmp.eq.s32.totalorder %s18, 0
      %p93 = por %p91, %p92
      %p94 = scmp.ne.s32.totalorder %s82, %s83
      %p95 = scmp.eq.s32.totalorder %s19, 1
      %p96 = por %p94, %p95
      %p98 = scmp.ne.s32.totalorder %s83, %s97
      %p99 = scmp.eq.s32.totalorder %s19, 0
      %p100 = por %p98, %p99
      %s102 = sadd.s32 %s101, 1
      %p105 = scmp.eq.s32.totalorder %s13, 1
      %p106 = scmp.ne.s32.totalorder %s101, %s103
      %p107 = scmp.eq.s32.totalorder %s13, 0
      %p108 = por %p106, %p107
      %p109 = scmp.ne.s32.totalorder %s101, %s103
      %p110 = scmp.eq.s32.totalorder %s18, 1
      %p111 = por %p109, %p110
      %p112 = scmp.ne.s32.totalorder %s103, %s104
      %p113 = scmp.eq.s32.totalorder %s18, 0
      %p114 = por %p112, %p113
      %p115 = scmp.ne.s32.totalorder %s103, %s104
      %p116 = scmp.eq.s32.totalorder %s19, 1
      %p117 = por %p115, %p116
      %p119 = scmp.ne.s32.totalorder %s104, %s118
      %p120 = scmp.eq.s32.totalorder %s19, 0
      %p121 = por %p119, %p120
      %s122 = ssub.s32 %s20, %s32
      %s123 = ssub.s32 %s21, %s28
      %s124 = sor.u32 %s122, %s123
      %p125 = scmp.eq.s32.totalorder %s124, 0
      %s127 = sadd.s32 %s126, 1
      %s128 = scalar_select %p125, %s126, %s127
      %p131 = pneg %p125
      %p132 = scmp.eq.s32.totalorder %s13, 1
      %p133 = por %p131, %p132
      %p134 = scmp.ne.s32.totalorder %s126, %s129
      %p135 = scmp.eq.s32.totalorder %s13, 0
      %p136 = por %p134, %p135
      %p137 = scmp.ne.s32.totalorder %s126, %s129
      %p138 = scmp.eq.s32.totalorder %s18, 1
      %p139 = por %p137, %p138
      %p140 = scmp.ne.s32.totalorder %s129, %s130
      %p141 = scmp.eq.s32.totalorder %s18, 0
      %p142 = por %p140, %p141
      %p143 = scmp.ne.s32.totalorder %s129, %s130
      %p144 = scmp.eq.s32.totalorder %s19, 1
      %p145 = por %p143, %p144
      %p147 = scmp.ne.s32.totalorder %s130, %s146
      %p148 = scmp.eq.s32.totalorder %s19, 0
      %p149 = por %p147, %p148
      %p150 = scmp.le.s32.totalorder 1, %s13
      %p151 = scmp.lt.s32.totalorder %s13, 3
      %p152 = pnand %p150, %p151
      %p153 = pneg %p152
      // Predicated region
      $region9: #{tpu_custom_call.1} parent=5 // pred_check
        _
      $region10: #{tpu_custom_call.1} parent=5 // pred_check_branch
        %155 = sbr.rel (%p152) target = $region12
      $region11: #{tpu_custom_call.1} parent=5 // pred_region
        %s156 = ssub.s32 %s13, 1
        // Predicated region
        $region13: #{tpu_custom_call.1} parent=11 // pred_check
          %p157 = pneg %p72
        $region14: #{tpu_custom_call.1} parent=11 // pred_check_branch
          %159 = sbr.rel (%p157) target = $region16
        $region15: #{tpu_custom_call.1} parent=11 // pred_region
          _
        $region16: #{tpu_custom_call.1} parent=11 // pred_fallthru
          _
        // Predicated region
        $region17: #{tpu_custom_call.1} parent=11 // pred_check
          %p160 = pneg %p93
        $region18: #{tpu_custom_call.1} parent=11 // pred_check_branch
          %162 = sbr.rel (%p160) target = $region20
        $region19: #{tpu_custom_call.1} parent=11 // pred_region
          _
        $region20: #{tpu_custom_call.1} parent=11 // pred_fallthru
          _
        // Predicated region
        $region21: #{tpu_custom_call.1} parent=11 // pred_check
          %p163 = pneg %p114
        $region22: #{tpu_custom_call.1} parent=11 // pred_check_branch
          %165 = sbr.rel (%p163) target = $region24
        $region23: #{tpu_custom_call.1} parent=11 // pred_region
          _
        $region24: #{tpu_custom_call.1} parent=11 // pred_fallthru
          _
      $region12: #{tpu_custom_call.1} parent=5 // pred_fallthru
        _
      %p166 = scmp.lt.s32.totalorder %s13, 2
      // Predicated region
      $region25: #{tpu_custom_call.1} parent=5 // pred_check
        %p167 = pneg %p166
      $region26: #{tpu_custom_call.1} parent=5 // pred_check_branch
        %169 = sbr.rel (%p167) target = $region28
      $region27: #{tpu_custom_call.1} parent=5 // pred_region
        // Predicated region
        $region29: #{tpu_custom_call.1} parent=27 // pred_check
          %p170 = pneg %p45
        $region30: #{tpu_custom_call.1} parent=27 // pred_check_branch
          %172 = sbr.rel (%p170) target = $region32
        $region31: #{tpu_custom_call.1} parent=27 // pred_region
          %p173 = scmp.lt.s32.totalorder %s20, 1
          %s174 = scalar_select %p173, %s20, 1
          %s175 = smul.addr %s174, 53
          %s176 = smul.addr %s175, 8
          %s177 = scalar_lea.vmem %s0, %s176
        $region32: #{tpu_custom_call.1} parent=27 // pred_fallthru
          _
      $region28: #{tpu_custom_call.1} parent=5 // pred_fallthru
        _
      %p178 = scmp.le.s32.totalorder 1, %s13
      %p179 = scmp.lt.s32.totalorder %s13, 3
      %p180 = pnand %p178, %p179
      %p181 = pneg %p180
      // Predicated region
      $region33: #{tpu_custom_call.1} parent=5 // pred_check
        _
      $region34: #{tpu_custom_call.1} parent=5 // pred_check_branch
        %183 = sbr.rel (%p180) target = $region36
      $region35: #{tpu_custom_call.1} parent=5 // pred_region
        %s184 = ssub.s32 %s13, 1
        %p185 = scmp.lt.s32.totalorder %s22, 1
        %s186 = scalar_select %p185, %s22, 1
        %s187 = smul.addr %s186, 53
        %s188 = smul.addr %s187, 8
        %s189 = scalar_lea.vmem %s0, %s188
        %p190 = pneg %p51
        %p191 = pneg %p48
        %p192 = pneg %p72
        %p193 = pneg %p69
        %p194 = pneg %p93
        %p195 = pneg %p90
        %p196 = pneg %p114
        %p197 = pneg %p111
        %p198 = pneg %p142
        %p199 = pneg %p139
        %s200 = sand.u32 %s129, 1
        %s201 = scalar_lea.sflag [#allocation3], %s200
        %s202 = sand.u32 %s129, 1
        %s203 = smul.addr %s202, 384
        %s204 = scalar_lea.vmem [#allocation2], %s203
        %p205 = scmp.lt.s32.totalorder %s22, 1
        %s206 = scalar_select %p205, %s22, 1
        %s207 = smul.addr %s206, 53
        %s208 = smul.addr %s207, 8
        %s209 = scalar_lea.vmem %s0, %s208
        %s210 = smul.u32 48, %s23
        %s212 = smul.u32 %s23, 384
        %s213 = scalar_lea.vmem %s209, %s212
        %v214 = vld [vmem:[%s213] sm:$0xff]
        %v215 = vld [vmem:[%s213 + $0x8] sm:$0xff]
        %v216 = vld [vmem:[%s213 + $0x10] sm:$0xff]
        %v217 = vld [vmem:[%s213 + $0x18] sm:$0xff]
        %v218 = vld [vmem:[%s213 + $0x20] sm:$0xff]
        %v219 = vld [vmem:[%s213 + $0x28] sm:$0xff]
        %v220 = vld [vmem:[%s213 + $0x30] sm:$0xff]
        %v221 = vld [vmem:[%s213 + $0x38] sm:$0xff]
        %v222 = vld [vmem:[%s213 + $0x40] sm:$0xff]
        %v223 = vld [vmem:[%s213 + $0x48] sm:$0xff]
        %v224 = vld [vmem:[%s213 + $0x50] sm:$0xff]
        %v225 = vld [vmem:[%s213 + $0x58] sm:$0xff]
        %v226 = vld [vmem:[%s213 + $0x60] sm:$0xff]
        %v227 = vld [vmem:[%s213 + $0x68] sm:$0xff]
        %v228 = vld [vmem:[%s213 + $0x70] sm:$0xff]
        %v229 = vld [vmem:[%s213 + $0x78] sm:$0xff]
        %v230 = vld [vmem:[%s213 + $0x80] sm:$0xff]
        %v231 = vld [vmem:[%s213 + $0x88] sm:$0xff]
        %v232 = vld [vmem:[%s213 + $0x90] sm:$0xff]
        %v233 = vld [vmem:[%s213 + $0x98] sm:$0xff]
        %v234 = vld [vmem:[%s213 + $0xa0] sm:$0xff]
        %v235 = vld [vmem:[%s213 + $0xa8] sm:$0xff]
        %v236 = vld [vmem:[%s213 + $0xb0] sm:$0xff]
        %v237 = vld [vmem:[%s213 + $0xb8] sm:$0xff]
        %v238 = vld [vmem:[%s213 + $0xc0] sm:$0xff]
        %v239 = vld [vmem:[%s213 + $0xc8] sm:$0xff]
        %v240 = vld [vmem:[%s213 + $0xd0] sm:$0xff]
        %v241 = vld [vmem:[%s213 + $0xd8] sm:$0xff]
        %v242 = vld [vmem:[%s213 + $0xe0] sm:$0xff]
        %v243 = vld [vmem:[%s213 + $0xe8] sm:$0xff]
        %v244 = vld [vmem:[%s213 + $0xf0] sm:$0xff]
        %v245 = vld [vmem:[%s213 + $0xf8] sm:$0xff]
        %v246 = vld [vmem:[%s213 + $0x100] sm:$0xff]
        %v247 = vld [vmem:[%s213 + $0x108] sm:$0xff]
        %v248 = vld [vmem:[%s213 + $0x110] sm:$0xff]
        %v249 = vld [vmem:[%s213 + $0x118] sm:$0xff]
        %v250 = vld [vmem:[%s213 + $0x120] sm:$0xff]
        %v251 = vld [vmem:[%s213 + $0x128] sm:$0xff]
        %v252 = vld [vmem:[%s213 + $0x130] sm:$0xff]
        %v253 = vld [vmem:[%s213 + $0x138] sm:$0xff]
        %v254 = vld [vmem:[%s213 + $0x140] sm:$0xff]
        %v255 = vld [vmem:[%s213 + $0x148] sm:$0xff]
        %v256 = vld [vmem:[%s213 + $0x150] sm:$0xff]
        %v257 = vld [vmem:[%s213 + $0x158] sm:$0xff]
        %v258 = vld [vmem:[%s213 + $0x160] sm:$0xff]
        %v259 = vld [vmem:[%s213 + $0x168] sm:$0xff]
        %v260 = vld [vmem:[%s213 + $0x170] sm:$0xff]
        %v261 = vld [vmem:[%s213 + $0x178] sm:$0xff]
        %v262 = vpack.c.bf16 %v215, %v214
        %v263 = vpack.c.bf16 %v217, %v216
        %v264 = vpack.c.bf16 %v219, %v218
        %v265 = vpack.c.bf16 %v221, %v220
        %v266 = vpack.c.bf16 %v223, %v222
        %v267 = vpack.c.bf16 %v225, %v224
        %v268 = vpack.c.bf16 %v227, %v226
        %v269 = vpack.c.bf16 %v229, %v228
        %v270 = vpack.c.bf16 %v231, %v230
        %v271 = vpack.c.bf16 %v233, %v232
        %v272 = vpack.c.bf16 %v235, %v234
        %v273 = vpack.c.bf16 %v237, %v236
        %v274 = vpack.c.bf16 %v239, %v238
        %v275 = vpack.c.bf16 %v241, %v240
        %v276 = vpack.c.bf16 %v243, %v242
        %v277 = vpack.c.bf16 %v245, %v244
        %v278 = vpack.c.bf16 %v247, %v246
        %v279 = vpack.c.bf16 %v249, %v248
        %v280 = vpack.c.bf16 %v251, %v250
        %v281 = vpack.c.bf16 %v253, %v252
        %v282 = vpack.c.bf16 %v255, %v254
        %v283 = vpack.c.bf16 %v257, %v256
        %v284 = vpack.c.bf16 %v259, %v258
        %v285 = vpack.c.bf16 %v261, %v260
        %v286 = vld [vmem:[%s1] sm:$0xf]
        %v287 = vld [vmem:[%s1 + $0x4] sm:$0xf]
        %s288 = sadd.s32 %s212, 1
        %s289 = scalar_lea.vmem %s209, %s288
        %v290 = vld [vmem:[%s289] sm:$0xff]
        %v291 = vld [vmem:[%s289 + $0x8] sm:$0xff]
        %v292 = vld [vmem:[%s289 + $0x10] sm:$0xff]
        %v293 = vld [vmem:[%s289 + $0x18] sm:$0xff]
        %v294 = vld [vmem:[%s289 + $0x20] sm:$0xff]
        %v295 = vld [vmem:[%s289 + $0x28] sm:$0xff]
        %v296 = vld [vmem:[%s289 + $0x30] sm:$0xff]
        %v297 = vld [vmem:[%s289 + $0x38] sm:$0xff]
        %v298 = vld [vmem:[%s289 + $0x40] sm:$0xff]
        %v299 = vld [vmem:[%s289 + $0x48] sm:$0xff]
        %v300 = vld [vmem:[%s289 + $0x50] sm:$0xff]
        %v301 = vld [vmem:[%s289 + $0x58] sm:$0xff]
        %v302 = vld [vmem:[%s289 + $0x60] sm:$0xff]
        %v303 = vld [vmem:[%s289 + $0x68] sm:$0xff]
        %v304 = vld [vmem:[%s289 + $0x70] sm:$0xff]
        %v305 = vld [vmem:[%s289 + $0x78] sm:$0xff]
        %v306 = vld [vmem:[%s289 + $0x80] sm:$0xff]
        %v307 = vld [vmem:[%s289 + $0x88] sm:$0xff]
        %v308 = vld [vmem:[%s289 + $0x90] sm:$0xff]
        %v309 = vld [vmem:[%s289 + $0x98] sm:$0xff]
        %v310 = vld [vmem:[%s289 + $0xa0] sm:$0xff]
        %v311 = vld [vmem:[%s289 + $0xa8] sm:$0xff]
        %v312 = vld [vmem:[%s289 + $0xb0] sm:$0xff]
        %v313 = vld [vmem:[%s289 + $0xb8] sm:$0xff]
        %v314 = vld [vmem:[%s289 + $0xc0] sm:$0xff]
        %v315 = vld [vmem:[%s289 + $0xc8] sm:$0xff]
        %v316 = vld [vmem:[%s289 + $0xd0] sm:$0xff]
        %v317 = vld [vmem:[%s289 + $0xd8] sm:$0xff]
        %v318 = vld [vmem:[%s289 + $0xe0] sm:$0xff]
        %v319 = vld [vmem:[%s289 + $0xe8] sm:$0xff]
        %v320 = vld [vmem:[%s289 + $0xf0] sm:$0xff]
        %v321 = vld [vmem:[%s289 + $0xf8] sm:$0xff]
        %v322 = vld [vmem:[%s289 + $0x100] sm:$0xff]
        %v323 = vld [vmem:[%s289 + $0x108] sm:$0xff]
        %v324 = vld [vmem:[%s289 + $0x110] sm:$0xff]
        %v325 = vld [vmem:[%s289 + $0x118] sm:$0xff]
        %v326 = vld [vmem:[%s289 + $0x120] sm:$0xff]
        %v327 = vld [vmem:[%s289 + $0x128] sm:$0xff]
        %v328 = vld [vmem:[%s289 + $0x130] sm:$0xff]
        %v329 = vld [vmem:[%s289 + $0x138] sm:$0xff]
        %v330 = vld [vmem:[%s289 + $0x140] sm:$0xff]
        %v331 = vld [vmem:[%s289 + $0x148] sm:$0xff]
        %v332 = vld [vmem:[%s289 + $0x150] sm:$0xff]
        %v333 = vld [vmem:[%s289 + $0x158] sm:$0xff]
        %v334 = vld [vmem:[%s289 + $0x160] sm:$0xff]
        %v335 = vld [vmem:[%s289 + $0x168] sm:$0xff]
        %v336 = vld [vmem:[%s289 + $0x170] sm:$0xff]
        %v337 = vld [vmem:[%s289 + $0x178] sm:$0xff]
        %v338 = vpack.c.bf16 %v291, %v290
        %v339 = vpack.c.bf16 %v293, %v292
        %v340 = vpack.c.bf16 %v295, %v294
        %v341 = vpack.c.bf16 %v297, %v296
        %v342 = vpack.c.bf16 %v299, %v298
        %v343 = vpack.c.bf16 %v301, %v300
        %v344 = vpack.c.bf16 %v303, %v302
        %v345 = vpack.c.bf16 %v305, %v304
        %v346 = vpack.c.bf16 %v307, %v306
        %v347 = vpack.c.bf16 %v309, %v308
        %v348 = vpack.c.bf16 %v311, %v310
        %v349 = vpack.c.bf16 %v313, %v312
        %v350 = vpack.c.bf16 %v315, %v314
        %v351 = vpack.c.bf16 %v317, %v316
        %v352 = vpack.c.bf16 %v319, %v318
        %v353 = vpack.c.bf16 %v321, %v320
        %v354 = vpack.c.bf16 %v323, %v322
        %v355 = vpack.c.bf16 %v325, %v324
        %v356 = vpack.c.bf16 %v327, %v326
        %v357 = vpack.c.bf16 %v329, %v328
        %v358 = vpack.c.bf16 %v331, %v330
        %v359 = vpack.c.bf16 %v333, %v332
        %v360 = vpack.c.bf16 %v335, %v334
        %v361 = vpack.c.bf16 %v337, %v336
        %s362 = scalar_lea.vmem %s1, 8
        %v363 = vld [vmem:[%s362] sm:$0xf]
        %v364 = vld [vmem:[%s362 + $0x4] sm:$0xf]
        %v367 = vunpack.c.l.b16 %v363
        %v368 = vunpack.c.l.b16 %v364
        %v369 = vpack.c.b16 %v368, %v367
        %vm371 = vcmask 130048
        %v373 = vsel %vm371, %v338, 0
        %v376 = vsel %vm371, %v339, 0
        %v379 = vsel %vm371, %v340, 0
        %v382 = vsel %vm371, %v341, 0
        %v385 = vsel %vm371, %v342, 0
        %v388 = vsel %vm371, %v343, 0
        %v391 = vsel %vm371, %v344, 0
        %v394 = vsel %vm371, %v345, 0
        %v397 = vsel %vm371, %v346, 0
        %v400 = vsel %vm371, %v347, 0
        %v403 = vsel %vm371, %v348, 0
        %v406 = vsel %vm371, %v349, 0
        %v409 = vsel %vm371, %v350, 0
        %v412 = vsel %vm371, %v351, 0
        %v415 = vsel %vm371, %v352, 0
        %v418 = vsel %vm371, %v353, 0
        %v421 = vsel %vm371, %v354, 0
        %v424 = vsel %vm371, %v355, 0
        %v427 = vsel %vm371, %v356, 0
        %v430 = vsel %vm371, %v357, 0
        %v433 = vsel %vm371, %v358, 0
        %v436 = vsel %vm371, %v359, 0
        %v439 = vsel %vm371, %v360, 0
        %v442 = vsel %vm371, %v361, 0
        %444 = vmatprep.subr.bf16.mxu0 0
        %445 = vmatpush1.bf16.msra.mxu0 %v369
        %446 = vmatprep.subr.bf16.mxu0 0
        %447 = vmatpush1.bf16.msra.mxu0 0
        %448 = vmatprep.subr.bf16.mxu0 0
        %449 = vmatpush1.bf16.msra.mxu0 0
        %450 = vmatprep.subr.bf16.mxu0 0
        %451 = vmatpush1.bf16.msra.mxu0 0
        %452 = vmatprep.subr.bf16.mxu0 0
        %453 = vmatpush1.bf16.msra.mxu0 0
        %454 = vmatprep.subr.bf16.mxu0 0
        %455 = vmatpush1.bf16.msra.mxu0 0
        %456 = vmatprep.subr.bf16.mxu0 0
        %457 = vmatpush1.bf16.msra.mxu0 0
        %458 = vmatprep.subr.bf16.mxu0 0
        %459 = vmatpush1.bf16.msra.mxu0 0
        %460 = vmatprep.subr.bf16.mxu0 0
        %461 = vmatpush1.bf16.msra.mxu0 0
        %462 = vmatprep.subr.bf16.mxu0 0
        %463 = vmatpush1.bf16.msra.mxu0 0
        %464 = vmatprep.subr.bf16.mxu0 0
        %465 = vmatpush1.bf16.msra.mxu0 0
        %466 = vmatprep.subr.bf16.mxu0 0
        %467 = vmatpush1.bf16.msra.mxu0 0
        %468 = vmatprep.subr.bf16.mxu0 0
        %469 = vmatpush1.bf16.msra.mxu0 0
        %470 = vmatprep.subr.bf16.mxu0 0
        %471 = vmatpush1.bf16.msra.mxu0 0
        %472 = vmatprep.subr.bf16.mxu0 0
        %473 = vmatpush1.bf16.msra.mxu0 0
        %474 = vmatprep.subr.bf16.mxu0 0
        %475 = vmatpush1.bf16.msra.mxu0 0
        %476 = vmatprep.mubr.bf16.mxu0 0
        %477 = vmatmul.mubr.bf16.gmra.mrb[0].mxu0 %v373
        %v478 = vpop.f32.mrb[0].mxu0
        %v479 = vadd.f32 0.0, %v478
        %v480 = vpop.f32.mrb[0].mxu0
        %v481 = vpop.f32.mrb[0].mxu0
        %v482 = vadd.f32 0.0, %v481
        %v483 = vpop.f32.mrb[0].mxu0
        %484 = vmatprep.mubr.bf16.mxu0 0
        %485 = vmatmul.mubr.bf16.gmra.mrb[0].mxu0 %v376
        %v486 = vpop.f32.mrb[0].mxu0
        %v487 = vadd.f32 0.0, %v486
        %v488 = vpop.f32.mrb[0].mxu0
        %v489 = vpop.f32.mrb[0].mxu0
        %v490 = vadd.f32 0.0, %v489
        %v491 = vpop.f32.mrb[0].mxu0
        %492 = vmatprep.mubr.bf16.mxu0 0
        %493 = vmatmul.mubr.bf16.gmra.mrb[0].mxu0 %v379
        %v494 = vpop.f32.mrb[0].mxu0
        %v495 = vadd.f32 0.0, %v494
        %v496 = vpop.f32.mrb[0].mxu0
        %v497 = vpop.f32.mrb[0].mxu0
        %v498 = vadd.f32 0.0, %v497
        %v499 = vpop.f32.mrb[0].mxu0
        %500 = vmatprep.mubr.bf16.mxu0 0
        %501 = vmatmul.mubr.bf16.gmra.mrb[0].mxu0 %v382
        %v502 = vpop.f32.mrb[0].mxu0
        %v503 = vadd.f32 0.0, %v502
        %v504 = vpop.f32.mrb[0].mxu0
        %v505 = vpop.f32.mrb[0].mxu0
        %v506 = vadd.f32 0.0, %v505
        %v507 = vpop.f32.mrb[0].mxu0
        %508 = vmatprep.mubr.bf16.mxu0 0
        %509 = vmatmul.mubr.bf16.gmra.mrb[0].mxu0 %v385
        %v510 = vpop.f32.mrb[0].mxu0
        %v511 = vadd.f32 0.0, %v510
        %v512 = vpop.f32.mrb[0].mxu0
        %v513 = vpop.f32.mrb[0].mxu0
        %v514 = vadd.f32 0.0, %v513
        %v515 = vpop.f32.mrb[0].mxu0
        %516 = vmatprep.mubr.bf16.mxu0 0
        %517 = vmatmul.mubr.bf16.gmra.mrb[0].mxu0 %v388
        %v518 = vpop.f32.mrb[0].mxu0
        %v519 = vadd.f32 0.0, %v518
        %v520 = vpop.f32.mrb[0].mxu0
        %v521 = vpop.f32.mrb[0].mxu0
        %v522 = vadd.f32 0.0, %v521
        %v523 = vpop.f32.mrb[0].mxu0
        %524 = vmatprep.mubr.bf16.mxu0 0
        %525 = vmatmul.mubr.bf16.gmra.mrb[0].mxu0 %v391
        %v526 = vpop.f32.mrb[0].mxu0
        %v527 = vadd.f32 0.0, %v526
        %v528 = vpop.f32.mrb[0].mxu0
        %v529 = vpop.f32.mrb[0].mxu0
        %v530 = vadd.f32 0.0, %v529
        %v531 = vpop.f32.mrb[0].mxu0
        %532 = vmatprep.mubr.bf16.mxu0 0
        %533 = vmatmul.mubr.bf16.gmra.mrb[0].mxu0 %v394
        %v534 = vpop.f32.mrb[0].mxu0
        %v535 = vadd.f32 0.0, %v534
        %v536 = vpop.f32.mrb[0].mxu0
        %v537 = vpop.f32.mrb[0].mxu0
        %v538 = vadd.f32 0.0, %v537
        %v539 = vpop.f32.mrb[0].mxu0
        %540 = vmatprep.mubr.bf16.mxu0 0
        %541 = vmatmul.mubr.bf16.gmra.mrb[0].mxu0 %v397
        %v542 = vpop.f32.mrb[0].mxu0
        %v543 = vadd.f32 0.0, %v542
        %v544 = vpop.f32.mrb[0].mxu0
        %v545 = vpop.f32.mrb[0].mxu0
        %v546 = vadd.f32 0.0, %v545
        %v547 = vpop.f32.mrb[0].mxu0
        %548 = vmatprep.mubr.bf16.mxu0 0
        %549 = vmatmul.mubr.bf16.gmra.mrb[0].mxu0 %v400
        %v550 = vpop.f32.mrb[0].mxu0
        %v551 = vadd.f32 0.0, %v550
        %v552 = vpop.f32.mrb[0].mxu0
        %v553 = vpop.f32.mrb[0].mxu0
        %v554 = vadd.f32 0.0, %v553
        %v555 = vpop.f32.mrb[0].mxu0
        %556 = vmatprep.mubr.bf16.mxu0 0
        %557 = vmatmul.mubr.bf16.gmra.mrb[0].mxu0 %v403
        %v558 = vpop.f32.mrb[0].mxu0
        %v559 = vadd.f32 0.0, %v558
        %v560 = vpop.f32.mrb[0].mxu0
        %v561 = vpop.f32.mrb[0].mxu0
        %v562 = vadd.f32 0.0, %v561
        %v563 = vpop.f32.mrb[0].mxu0
        %564 = vmatprep.mubr.bf16.mxu0 0
        %565 = vmatmul.mubr.bf16.gmra.mrb[0].mxu0 %v406
        %v566 = vpop.f32.mrb[0].mxu0
        %v567 = vadd.f32 0.0, %v566
        %v568 = vpop.f32.mrb[0].mxu0
        %v569 = vpop.f32.mrb[0].mxu0
        %v570 = vadd.f32 0.0, %v569
        %v571 = vpop.f32.mrb[0].mxu0
        %572 = vmatprep.mubr.bf16.mxu0 0
        %573 = vmatmul.mubr.bf16.gmra.mrb[0].mxu0 %v409
        %v574 = vpop.f32.mrb[0].mxu0
        %v575 = vadd.f32 0.0, %v574
        %v576 = vpop.f32.mrb[0].mxu0
        %v577 = vpop.f32.mrb[0].mxu0
        %v578 = vadd.f32 0.0, %v577
        %v579 = vpop.f32.mrb[0].mxu0
        %580 = vmatprep.mubr.bf16.mxu0 0
        %581 = vmatmul.mubr.bf16.gmra.mrb[0].mxu0 %v412
        %v582 = vpop.f32.mrb[0].mxu0
        %v583 = vadd.f32 0.0, %v582
        %v584 = vpop.f32.mrb[0].mxu0
        %v585 = vpop.f32.mrb[0].mxu0
        %v586 = vadd.f32 0.0, %v585
        %v587 = vpop.f32.mrb[0].mxu0
        %588 = vmatprep.mubr.bf16.mxu0 0
        %589 = vmatmul.mubr.bf16.gmra.mrb[0].mxu0 %v415
        %v590 = vpop.f32.mrb[0].mxu0
        %v591 = vadd.f32 0.0, %v590
        %v592 = vpop.f32.mrb[0].mxu0
        %v593 = vpop.f32.mrb[0].mxu0
        %v594 = vadd.f32 0.0, %v593
        %v595 = vpop.f32.mrb[0].mxu0
        %596 = vmatprep.mubr.bf16.mxu0 0
        %597 = vmatmul.mubr.bf16.gmra.mrb[0].mxu0 %v418
        %v598 = vpop.f32.mrb[0].mxu0
        %v599 = vadd.f32 0.0, %v598
        %v600 = vpop.f32.mrb[0].mxu0
        %v601 = vpop.f32.mrb[0].mxu0
        %v602 = vadd.f32 0.0, %v601
        %v603 = vpop.f32.mrb[0].mxu0
        %604 = vmatprep.mubr.bf16.mxu0 0
        %605 = vmatmul.mubr.bf16.gmra.mrb[0].mxu0 %v421
        %v606 = vpop.f32.mrb[0].mxu0
        %v607 = vadd.f32 0.0, %v606
        %v608 = vpop.f32.mrb[0].mxu0
        %v609 = vpop.f32.mrb[0].mxu0
        %v610 = vadd.f32 0.0, %v609
        %v611 = vpop.f32.mrb[0].mxu0
        %612 = vmatprep.mubr.bf16.mxu0 0
        %613 = vmatmul.mubr.bf16.gmra.mrb[0].mxu0 %v424
        %v614 = vpop.f32.mrb[0].mxu0
        %v615 = vadd.f32 0.0, %v614
        %v616 = vpop.f32.mrb[0].mxu0
        %v617 = vpop.f32.mrb[0].mxu0
        %v618 = vadd.f32 0.0, %v617
        %v619 = vpop.f32.mrb[0].mxu0
        %620 = vmatprep.mubr.bf16.mxu0 0
        %621 = vmatmul.mubr.bf16.gmra.mrb[0].mxu0 %v427
        %v622 = vpop.f32.mrb[0].mxu0
        %v623 = vadd.f32 0.0, %v622
        %v624 = vpop.f32.mrb[0].mxu0
        %v625 = vpop.f32.mrb[0].mxu0
        %v626 = vadd.f32 0.0, %v625
        %v627 = vpop.f32.mrb[0].mxu0
        %628 = vmatprep.mubr.bf16.mxu0 0
        %629 = vmatmul.mubr.bf16.gmra.mrb[0].mxu0 %v430
        %v630 = vpop.f32.mrb[0].mxu0
        %v631 = vadd.f32 0.0, %v630
        %v632 = vpop.f32.mrb[0].mxu0
        %v633 = vpop.f32.mrb[0].mxu0
        %v634 = vadd.f32 0.0, %v633
        %v635 = vpop.f32.mrb[0].mxu0
        %636 = vmatprep.mubr.bf16.mxu0 0
        %637 = vmatmul.mubr.bf16.gmra.mrb[0].mxu0 %v433
        %v638 = vpop.f32.mrb[0].mxu0
        %v639 = vadd.f32 0.0, %v638
        %v640 = vpop.f32.mrb[0].mxu0
        %v641 = vpop.f32.mrb[0].mxu0
        %v642 = vadd.f32 0.0, %v641
        %v643 = vpop.f32.mrb[0].mxu0
        %644 = vmatprep.mubr.bf16.mxu0 0
        %645 = vmatmul.mubr.bf16.gmra.mrb[0].mxu0 %v436
        %v646 = vpop.f32.mrb[0].mxu0
        %v647 = vadd.f32 0.0, %v646
        %v648 = vpop.f32.mrb[0].mxu0
        %v649 = vpop.f32.mrb[0].mxu0
        %v650 = vadd.f32 0.0, %v649
        %v651 = vpop.f32.mrb[0].mxu0
        %652 = vmatprep.mubr.bf16.mxu0 0
        %653 = vmatmul.mubr.bf16.gmra.mrb[0].mxu0 %v439
        %v654 = vpop.f32.mrb[0].mxu0
        %v655 = vadd.f32 0.0, %v654
        %v656 = vpop.f32.mrb[0].mxu0
        %v657 = vpop.f32.mrb[0].mxu0
        %v658 = vadd.f32 0.0, %v657
        %v659 = vpop.f32.mrb[0].mxu0
        %660 = vmatprep.mubr.bf16.mxu0 0
        %661 = vmatmul.mubr.bf16.gmra.mrb[0].mxu0 %v442
        %v662 = vpop.f32.mrb[0].mxu0
        %v663 = vadd.f32 0.0, %v662
        %v664 = vpop.f32.mrb[0].mxu0
        %v665 = vpop.f32.mrb[0].mxu0
        %v666 = vadd.f32 0.0, %v665
        %v667 = vpop.f32.mrb[0].mxu0
        %668 = vdwg.mxu0
        %v671 = vunpack.c.l.b16 %v286
        %v672 = vunpack.c.l.b16 %v287
        %v673 = vpack.c.b16 %v672, %v671
        %v676 = vsel %vm371, %v262, 0
        %v679 = vsel %vm371, %v263, 0
        %v682 = vsel %vm371, %v264, 0
        %v685 = vsel %vm371, %v265, 0
        %v688 = vsel %vm371, %v266, 0
        %v691 = vsel %vm371, %v267, 0
        %v694 = vsel %vm371, %v268, 0
        %v697 = vsel %vm371, %v269, 0
        %v700 = vsel %vm371, %v270, 0
        %v703 = vsel %vm371, %v271, 0
        %v706 = vsel %vm371, %v272, 0
        %v709 = vsel %vm371, %v273, 0
        %v712 = vsel %vm371, %v274, 0
        %v715 = vsel %vm371, %v275, 0
        %v718 = vsel %vm371, %v276, 0
        %v721 = vsel %vm371, %v277, 0
        %v724 = vsel %vm371, %v278, 0
        %v727 = vsel %vm371, %v279, 0
        %v730 = vsel %vm371, %v280, 0
        %v733 = vsel %vm371, %v281, 0
        %v736 = vsel %vm371, %v282, 0
        %v739 = vsel %vm371, %v283, 0
        %v742 = vsel %vm371, %v284, 0
        %v745 = vsel %vm371, %v285, 0
        %747 = vmatprep.subr.bf16.mxu0 0
        %748 = vmatpush1.bf16.msra.mxu0 %v673
        %749 = vmatprep.subr.bf16.mxu0 0
        %750 = vmatpush1.bf16.msra.mxu0 0
        %751 = vmatprep.subr.bf16.mxu0 0
        %752 = vmatpush1.bf16.msra.mxu0 0
        %753 = vmatprep.subr.bf16.mxu0 0
        %754 = vmatpush1.bf16.msra.mxu0 0
        %755 = vmatprep.subr.bf16.mxu0 0
        %756 = vmatpush1.bf16.msra.mxu0 0
        %757 = vmatprep.subr.bf16.mxu0 0
        %758 = vmatpush1.bf16.msra.mxu0 0
        %759 = vmatprep.subr.bf16.mxu0 0
        %760 = vmatpush1.bf16.msra.mxu0 0
        %761 = vmatprep.subr.bf16.mxu0 0
        %762 = vmatpush1.bf16.msra.mxu0 0
        %763 = vmatprep.subr.bf16.mxu0 0
        %764 = vmatpush1.bf16.msra.mxu0 0
        %765 = vmatprep.subr.bf16.mxu0 0
        %766 = vmatpush1.bf16.msra.mxu0 0
        %767 = vmatprep.subr.bf16.mxu0 0
        %768 = vmatpush1.bf16.msra.mxu0 0
        %769 = vmatprep.subr.bf16.mxu0 0
        %770 = vmatpush1.bf16.msra.mxu0 0
        %771 = vmatprep.subr.bf16.mxu0 0
        %772 = vmatpush1.bf16.msra.mxu0 0
        %773 = vmatprep.subr.bf16.mxu0 0
        %774 = vmatpush1.bf16.msra.mxu0 0
        %775 = vmatprep.subr.bf16.mxu0 0
        %776 = vmatpush1.bf16.msra.mxu0 0
        %777 = vmatprep.subr.bf16.mxu0 0
        %778 = vmatpush1.bf16.msra.mxu0 0
        %779 = vmatprep.mubr.bf16.mxu0 0
        %780 = vmatmul.mubr.bf16.gmra.mrb[0].mxu0 %v676
        %v781 = vpop.f32.mrb[0].mxu0
        %v782 = vadd.f32 %v479, %v781
        %v783 = vpop.f32.mrb[0].mxu0
        %v784 = vpop.f32.mrb[0].mxu0
        %v785 = vadd.f32 %v482, %v784
        %v786 = vpop.f32.mrb[0].mxu0
        %787 = vmatprep.mubr.bf16.mxu0 0
        %788 = vmatmul.mubr.bf16.gmra.mrb[0].mxu0 %v679
        %v789 = vpop.f32.mrb[0].mxu0
        %v790 = vadd.f32 %v487, %v789
        %v791 = vpop.f32.mrb[0].mxu0
        %v792 = vpop.f32.mrb[0].mxu0
        %v793 = vadd.f32 %v490, %v792
        %v794 = vpop.f32.mrb[0].mxu0
        %795 = vmatprep.mubr.bf16.mxu0 0
        %796 = vmatmul.mubr.bf16.gmra.mrb[0].mxu0 %v682
        %v797 = vpop.f32.mrb[0].mxu0
        %v798 = vadd.f32 %v495, %v797
        %v799 = vpop.f32.mrb[0].mxu0
        %v800 = vpop.f32.mrb[0].mxu0
        %v801 = vadd.f32 %v498, %v800
        %v802 = vpop.f32.mrb[0].mxu0
        %803 = vmatprep.mubr.bf16.mxu0 0
        %804 = vmatmul.mubr.bf16.gmra.mrb[0].mxu0 %v685
        %v805 = vpop.f32.mrb[0].mxu0
        %v806 = vadd.f32 %v503, %v805
        %v807 = vpop.f32.mrb[0].mxu0
        %v808 = vpop.f32.mrb[0].mxu0
        %v809 = vadd.f32 %v506, %v808
        %v810 = vpop.f32.mrb[0].mxu0
        %811 = vmatprep.mubr.bf16.mxu0 0
        %812 = vmatmul.mubr.bf16.gmra.mrb[0].mxu0 %v688
        %v813 = vpop.f32.mrb[0].mxu0
        %v814 = vadd.f32 %v511, %v813
        %v815 = vpop.f32.mrb[0].mxu0
        %v816 = vpop.f32.mrb[0].mxu0
        %v817 = vadd.f32 %v514, %v816
        %v818 = vpop.f32.mrb[0].mxu0
        %819 = vmatprep.mubr.bf16.mxu0 0
        %820 = vmatmul.mubr.bf16.gmra.mrb[0].mxu0 %v691
        %v821 = vpop.f32.mrb[0].mxu0
        %v822 = vadd.f32 %v519, %v821
        %v823 = vpop.f32.mrb[0].mxu0
        %v824 = vpop.f32.mrb[0].mxu0
        %v825 = vadd.f32 %v522, %v824
        %v826 = vpop.f32.mrb[0].mxu0
        %827 = vmatprep.mubr.bf16.mxu0 0
        %828 = vmatmul.mubr.bf16.gmra.mrb[0].mxu0 %v694
        %v829 = vpop.f32.mrb[0].mxu0
        %v830 = vadd.f32 %v527, %v829
        %v831 = vpop.f32.mrb[0].mxu0
        %v832 = vpop.f32.mrb[0].mxu0
        %v833 = vadd.f32 %v530, %v832
        %v834 = vpop.f32.mrb[0].mxu0
        %835 = vmatprep.mubr.bf16.mxu0 0
        %836 = vmatmul.mubr.bf16.gmra.mrb[0].mxu0 %v697
        %v837 = vpop.f32.mrb[0].mxu0
        %v838 = vadd.f32 %v535, %v837
        %v839 = vpop.f32.mrb[0].mxu0
        %v840 = vpop.f32.mrb[0].mxu0
        %v841 = vadd.f32 %v538, %v840
        %v842 = vpop.f32.mrb[0].mxu0
        %843 = vmatprep.mubr.bf16.mxu0 0
        %844 = vmatmul.mubr.bf16.gmra.mrb[0].mxu0 %v700
        %v845 = vpop.f32.mrb[0].mxu0
        %v846 = vadd.f32 %v543, %v845
        %v847 = vpop.f32.mrb[0].mxu0
        %v848 = vpop.f32.mrb[0].mxu0
        %v849 = vadd.f32 %v546, %v848
        %v850 = vpop.f32.mrb[0].mxu0
        %851 = vmatprep.mubr.bf16.mxu0 0
        %852 = vmatmul.mubr.bf16.gmra.mrb[0].mxu0 %v703
        %v853 = vpop.f32.mrb[0].mxu0
        %v854 = vadd.f32 %v551, %v853
        %v855 = vpop.f32.mrb[0].mxu0
        %v856 = vpop.f32.mrb[0].mxu0
        %v857 = vadd.f32 %v554, %v856
        %v858 = vpop.f32.mrb[0].mxu0
        %859 = vmatprep.mubr.bf16.mxu0 0
        %860 = vmatmul.mubr.bf16.gmra.mrb[0].mxu0 %v706
        %v861 = vpop.f32.mrb[0].mxu0
        %v862 = vadd.f32 %v559, %v861
        %v863 = vpop.f32.mrb[0].mxu0
        %v864 = vpop.f32.mrb[0].mxu0
        %v865 = vadd.f32 %v562, %v864
        %v866 = vpop.f32.mrb[0].mxu0
        %867 = vmatprep.mubr.bf16.mxu0 0
        %868 = vmatmul.mubr.bf16.gmra.mrb[0].mxu0 %v709
        %v869 = vpop.f32.mrb[0].mxu0
        %v870 = vadd.f32 %v567, %v869
        %v871 = vpop.f32.mrb[0].mxu0
        %v872 = vpop.f32.mrb[0].mxu0
        %v873 = vadd.f32 %v570, %v872
        %v874 = vpop.f32.mrb[0].mxu0
        %875 = vmatprep.mubr.bf16.mxu0 0
        %876 = vmatmul.mubr.bf16.gmra.mrb[0].mxu0 %v712
        %v877 = vpop.f32.mrb[0].mxu0
        %v878 = vadd.f32 %v575, %v877
        %v879 = vpop.f32.mrb[0].mxu0
        %v880 = vpop.f32.mrb[0].mxu0
        %v881 = vadd.f32 %v578, %v880
        %v882 = vpop.f32.mrb[0].mxu0
        %883 = vmatprep.mubr.bf16.mxu0 0
        %884 = vmatmul.mubr.bf16.gmra.mrb[0].mxu0 %v715
        %v885 = vpop.f32.mrb[0].mxu0
        %v886 = vadd.f32 %v583, %v885
        %v887 = vpop.f32.mrb[0].mxu0
        %v888 = vpop.f32.mrb[0].mxu0
        %v889 = vadd.f32 %v586, %v888
        %v890 = vpop.f32.mrb[0].mxu0
        %891 = vmatprep.mubr.bf16.mxu0 0
        %892 = vmatmul.mubr.bf16.gmra.mrb[0].mxu0 %v718
        %v893 = vpop.f32.mrb[0].mxu0
        %v894 = vadd.f32 %v591, %v893
        %v895 = vpop.f32.mrb[0].mxu0
        %v896 = vpop.f32.mrb[0].mxu0
        %v897 = vadd.f32 %v594, %v896
        %v898 = vpop.f32.mrb[0].mxu0
        %899 = vmatprep.mubr.bf16.mxu0 0
        %900 = vmatmul.mubr.bf16.gmra.mrb[0].mxu0 %v721
        %v901 = vpop.f32.mrb[0].mxu0
        %v902 = vadd.f32 %v599, %v901
        %v903 = vpop.f32.mrb[0].mxu0
        %v904 = vpop.f32.mrb[0].mxu0
        %v905 = vadd.f32 %v602, %v904
        %v906 = vpop.f32.mrb[0].mxu0
        %907 = vmatprep.mubr.bf16.mxu0 0
        %908 = vmatmul.mubr.bf16.gmra.mrb[0].mxu0 %v724
        %v909 = vpop.f32.mrb[0].mxu0
        %v910 = vadd.f32 %v607, %v909
        %v911 = vpop.f32.mrb[0].mxu0
        %v912 = vpop.f32.mrb[0].mxu0
        %v913 = vadd.f32 %v610, %v912
        %v914 = vpop.f32.mrb[0].mxu0
        %915 = vmatprep.mubr.bf16.mxu0 0
        %916 = vmatmul.mubr.bf16.gmra.mrb[0].mxu0 %v727
        %v917 = vpop.f32.mrb[0].mxu0
        %v918 = vadd.f32 %v615, %v917
        %v919 = vpop.f32.mrb[0].mxu0
        %v920 = vpop.f32.mrb[0].mxu0
        %v921 = vadd.f32 %v618, %v920
        %v922 = vpop.f32.mrb[0].mxu0
        %923 = vmatprep.mubr.bf16.mxu0 0
        %924 = vmatmul.mubr.bf16.gmra.mrb[0].mxu0 %v730
        %v925 = vpop.f32.mrb[0].mxu0
        %v926 = vadd.f32 %v623, %v925
        %v927 = vpop.f32.mrb[0].mxu0
        %v928 = vpop.f32.mrb[0].mxu0
        %v929 = vadd.f32 %v626, %v928
        %v930 = vpop.f32.mrb[0].mxu0
        %931 = vmatprep.mubr.bf16.mxu0 0
        %932 = vmatmul.mubr.bf16.gmra.mrb[0].mxu0 %v733
        %v933 = vpop.f32.mrb[0].mxu0
        %v934 = vadd.f32 %v631, %v933
        %v935 = vpop.f32.mrb[0].mxu0
        %v936 = vpop.f32.mrb[0].mxu0
        %v937 = vadd.f32 %v634, %v936
        %v938 = vpop.f32.mrb[0].mxu0
        %939 = vmatprep.mubr.bf16.mxu0 0
        %940 = vmatmul.mubr.bf16.gmra.mrb[0].mxu0 %v736
        %v941 = vpop.f32.mrb[0].mxu0
        %v942 = vadd.f32 %v639, %v941
        %v943 = vpop.f32.mrb[0].mxu0
        %v944 = vpop.f32.mrb[0].mxu0
        %v945 = vadd.f32 %v642, %v944
        %v946 = vpop.f32.mrb[0].mxu0
        %947 = vmatprep.mubr.bf16.mxu0 0
        %948 = vmatmul.mubr.bf16.gmra.mrb[0].mxu0 %v739
        %v949 = vpop.f32.mrb[0].mxu0
        %v950 = vadd.f32 %v647, %v949
        %v951 = vpop.f32.mrb[0].mxu0
        %v952 = vpop.f32.mrb[0].mxu0
        %v953 = vadd.f32 %v650, %v952
        %v954 = vpop.f32.mrb[0].mxu0
        %955 = vmatprep.mubr.bf16.mxu0 0
        %956 = vmatmul.mubr.bf16.gmra.mrb[0].mxu0 %v742
        %v957 = vpop.f32.mrb[0].mxu0
        %v958 = vadd.f32 %v655, %v957
        %v959 = vpop.f32.mrb[0].mxu0
        %v960 = vpop.f32.mrb[0].mxu0
        %v961 = vadd.f32 %v658, %v960
        %v962 = vpop.f32.mrb[0].mxu0
        %963 = vmatprep.mubr.bf16.mxu0 0
        %964 = vmatmul.mubr.bf16.gmra.mrb[0].mxu0 %v745
        %v965 = vpop.f32.mrb[0].mxu0
        %v966 = vadd.f32 %v663, %v965
        %v967 = vpop.f32.mrb[0].mxu0
        %v968 = vpop.f32.mrb[0].mxu0
        %v969 = vadd.f32 %v666, %v968
        %v970 = vpop.f32.mrb[0].mxu0
        %971 = vdwg.mxu0
        %s972 = sadd.s32 %s212, 2
        %s973 = scalar_lea.vmem %s209, %s972
        %v974 = vld [vmem:[%s973] sm:$0xff]
        %v975 = vld [vmem:[%s973 + $0x8] sm:$0xff]
        %v976 = vld [vmem:[%s973 + $0x10] sm:$0xff]
        %v977 = vld [vmem:[%s973 + $0x18] sm:$0xff]
        %v978 = vld [vmem:[%s973 + $0x20] sm:$0xff]
        %v979 = vld [vmem:[%s973 + $0x28] sm:$0xff]
        %v980 = vld [vmem:[%s973 + $0x30] sm:$0xff]
        %v981 = vld [vmem:[%s973 + $0x38] sm:$0xff]
        %v982 = vld [vmem:[%s973 + $0x40] sm:$0xff]
        %v983 = vld [vmem:[%s973 + $0x48] sm:$0xff]
        %v984 = vld [vmem:[%s973 + $0x50] sm:$0xff]
        %v985 = vld [vmem:[%s973 + $0x58] sm:$0xff]
        %v986 = vld [vmem:[%s973 + $0x60] sm:$0xff]
        %v987 = vld [vmem:[%s973 + $0x68] sm:$0xff]
        %v988 = vld [vmem:[%s973 + $0x70] sm:$0xff]
        %v989 = vld [vmem:[%s973 + $0x78] sm:$0xff]
        %v990 = vld [vmem:[%s973 + $0x80] sm:$0xff]
        %v991 = vld [vmem:[%s973 + $0x88] sm:$0xff]
        %v992 = vld [vmem:[%s973 + $0x90] sm:$0xff]
        %v993 = vld [vmem:[%s973 + $0x98] sm:$0xff]
        %v994 = vld [vmem:[%s973 + $0xa0] sm:$0xff]
        %v995 = vld [vmem:[%s973 + $0xa8] sm:$0xff]
        %v996 = vld [vmem:[%s973 + $0xb0] sm:$0xff]
        %v997 = vld [vmem:[%s973 + $0xb8] sm:$0xff]
        %v998 = vld [vmem:[%s973 + $0xc0] sm:$0xff]
        %v999 = vld [vmem:[%s973 + $0xc8] sm:$0xff]
        %v1000 = vld [vmem:[%s973 + $0xd0] sm:$0xff]
        %v1001 = vld [vmem:[%s973 + $0xd8] sm:$0xff]
        %v1002 = vld [vmem:[%s973 + $0xe0] sm:$0xff]
        %v1003 = vld [vmem:[%s973 + $0xe8] sm:$0xff]
        %v1004 = vld [vmem:[%s973 + $0xf0] sm:$0xff]
        %v1005 = vld [vmem:[%s973 + $0xf8] sm:$0xff]
        %v1006 = vld [vmem:[%s973 + $0x100] sm:$0xff]
        %v1007 = vld [vmem:[%s973 + $0x108] sm:$0xff]
        %v1008 = vld [vmem:[%s973 + $0x110] sm:$0xff]
        %v1009 = vld [vmem:[%s973 + $0x118] sm:$0xff]
        %v1010 = vld [vmem:[%s973 + $0x120] sm:$0xff]
        %v1011 = vld [vmem:[%s973 + $0x128] sm:$0xff]
        %v1012 = vld [vmem:[%s973 + $0x130] sm:$0xff]
        %v1013 = vld [vmem:[%s973 + $0x138] sm:$0xff]
        %v1014 = vld [vmem:[%s973 + $0x140] sm:$0xff]
        %v1015 = vld [vmem:[%s973 + $0x148] sm:$0xff]
        %v1016 = vld [vmem:[%s973 + $0x150] sm:$0xff]
        %v1017 = vld [vmem:[%s973 + $0x158] sm:$0xff]
        %v1018 = vld [vmem:[%s973 + $0x160] sm:$0xff]
        %v1019 = vld [vmem:[%s973 + $0x168] sm:$0xff]
        %v1020 = vld [vmem:[%s973 + $0x170] sm:$0xff]
        %v1021 = vld [vmem:[%s973 + $0x178] sm:$0xff]
        %v1022 = vpack.c.bf16 %v975, %v974
        %v1023 = vpack.c.bf16 %v977, %v976
        %v1024 = vpack.c.bf16 %v979, %v978
        %v1025 = vpack.c.bf16 %v981, %v980
        %v1026 = vpack.c.bf16 %v983, %v982
        %v1027 = vpack.c.bf16 %v985, %v984
        %v1028 = vpack.c.bf16 %v987, %v986
        %v1029 = vpack.c.bf16 %v989, %v988
        %v1030 = vpack.c.bf16 %v991, %v990
        %v1031 = vpack.c.bf16 %v993, %v992
        %v1032 = vpack.c.bf16 %v995, %v994
        %v1033 = vpack.c.bf16 %v997, %v996
        %v1034 = vpack.c.bf16 %v999, %v998
        %v1035 = vpack.c.bf16 %v1001, %v1000
        %v1036 = vpack.c.bf16 %v1003, %v1002
        %v1037 = vpack.c.bf16 %v1005, %v1004
        %v1038 = vpack.c.bf16 %v1007, %v1006
        %v1039 = vpack.c.bf16 %v1009, %v1008
        %v1040 = vpack.c.bf16 %v1011, %v1010
        %v1041 = vpack.c.bf16 %v1013, %v1012
        %v1042 = vpack.c.bf16 %v1015, %v1014
        %v1043 = vpack.c.bf16 %v1017, %v1016
        %v1044 = vpack.c.bf16 %v1019, %v1018
        %v1045 = vpack.c.bf16 %v1021, %v1020
        %s1046 = scalar_lea.vmem %s1, 16
        %v1047 = vld [vmem:[%s1046] sm:$0xf]
        %v1048 = vld [vmem:[%s1046 + $0x4] sm:$0xf]
        %v1051 = vunpack.c.l.b16 %v1047
        %v1052 = vunpack.c.l.b16 %v1048
        %v1053 = vpack.c.b16 %v1052, %v1051
        %v1056 = vsel %vm371, %v1022, 0
        %v1059 = vsel %vm371, %v1023, 0
        %v1062 = vsel %vm371, %v1024, 0
        %v1065 = vsel %vm371, %v1025, 0
        %v1068 = vsel %vm371, %v1026, 0
        %v1071 = vsel %vm371, %v1027, 0
        %v1074 = vsel %vm371, %v1028, 0
        %v1077 = vsel %vm371, %v1029, 0
        %v1080 = vsel %vm371, %v1030, 0
        %v1083 = vsel %vm371, %v1031, 0
        %v1086 = vsel %vm371, %v1032, 0
        %v1089 = vsel %vm371, %v1033, 0
        %v1092 = vsel %vm371, %v1034, 0
        %v1095 = vsel %vm371, %v1035, 0
        %v1098 = vsel %vm371, %v1036, 0
        %v1101 = vsel %vm371, %v1037, 0
        %v1104 = vsel %vm371, %v1038, 0
        %v1107 = vsel %vm371, %v1039, 0
        %v1110 = vsel %vm371, %v1040, 0
        %v1113 = vsel %vm371, %v1041, 0
        %v1116 = vsel %vm371, %v1042, 0
        %v1119 = vsel %vm371, %v1043, 0
        %v1122 = vsel %vm371, %v1044, 0
        %v1125 = vsel %vm371, %v1045, 0
        %1127 = vmatprep.subr.bf16.mxu0 0
        %1128 = vmatpush1.bf16.msra.mxu0 %v1053
        %1129 = vmatprep.subr.bf16.mxu0 0
        %1130 = vmatpush1.bf16.msra.mxu0 0
        %1131 = vmatprep.subr.bf16.mxu0 0
        %1132 = vmatpush1.bf16.msra.mxu0 0
        %1133 = vmatprep.subr.bf16.mxu0 0
        %1134 = vmatpush1.bf16.msra.mxu0 0
        %1135 = vmatprep.subr.bf16.mxu0 0
        %1136 = vmatpush1.bf16.msra.mxu0 0
        %1137 = vmatprep.subr.bf16.mxu0 0
        %1138 = vmatpush1.bf16.msra.mxu0 0
        %1139 = vmatprep.subr.bf16.mxu0 0
        %1140 = vmatpush1.bf16.msra.mxu0 0
        %1141 = vmatprep.subr.bf16.mxu0 0
        %1142 = vmatpush1.bf16.msra.mxu0 0
        %1143 = vmatprep.subr.bf16.mxu0 0
        %1144 = vmatpush1.bf16.msra.mxu0 0
        %1145 = vmatprep.subr.bf16.mxu0 0
        %1146 = vmatpush1.bf16.msra.mxu0 0
        %1147 = vmatprep.subr.bf16.mxu0 0
        %1148 = vmatpush1.bf16.msra.mxu0 0
        %1149 = vmatprep.subr.bf16.mxu0 0
        %1150 = vmatpush1.bf16.msra.mxu0 0
        %1151 = vmatprep.subr.bf16.mxu0 0
        %1152 = vmatpush1.bf16.msra.mxu0 0
        %1153 = vmatprep.subr.bf16.mxu0 0
        %1154 = vmatpush1.bf16.msra.mxu0 0
        %1155 = vmatprep.subr.bf16.mxu0 0
        %1156 = vmatpush1.bf16.msra.mxu0 0
        %1157 = vmatprep.subr.bf16.mxu0 0
        %1158 = vmatpush1.bf16.msra.mxu0 0
        %1159 = vmatprep.mubr.bf16.mxu0 0
        %1160 = vmatmul.mubr.bf16.gmra.mrb[0].mxu0 %v1056
        %v1161 = vpop.f32.mrb[0].mxu0
        %v1162 = vadd.f32 0.0, %v1161
        %v1163 = vpop.f32.mrb[0].mxu0
        %v1164 = vpop.f32.mrb[0].mxu0
        %v1165 = vadd.f32 0.0, %v1164
        %v1166 = vpop.f32.mrb[0].mxu0
        %1167 = vmatprep.mubr.bf16.mxu0 0
        %1168 = vmatmul.mubr.bf16.gmra.mrb[0].mxu0 %v1059
        %v1169 = vpop.f32.mrb[0].mxu0
        %v1170 = vadd.f32 0.0, %v1169
        %v1171 = vpop.f32.mrb[0].mxu0
        %v1172 = vpop.f32.mrb[0].mxu0
        %v1173 = vadd.f32 0.0, %v1172
        %v1174 = vpop.f32.mrb[0].mxu0
        %1175 = vmatprep.mubr.bf16.mxu0 0
        %1176 = vmatmul.mubr.bf16.gmra.mrb[0].mxu0 %v1062
        %v1177 = vpop.f32.mrb[0].mxu0
        %v1178 = vadd.f32 0.0, %v1177
        %v1179 = vpop.f32.mrb[0].mxu0
        %v1180 = vpop.f32.mrb[0].mxu0
        %v1181 = vadd.f32 0.0, %v1180
        %v1182 = vpop.f32.mrb[0].mxu0
        %1183 = vmatprep.mubr.bf16.mxu0 0
        %1184 = vmatmul.mubr.bf16.gmra.mrb[0].mxu0 %v1065
        %v1185 = vpop.f32.mrb[0].mxu0
        %v1186 = vadd.f32 0.0, %v1185
        %v1187 = vpop.f32.mrb[0].mxu0
        %v1188 = vpop.f32.mrb[0].mxu0
        %v1189 = vadd.f32 0.0, %v1188
        %v1190 = vpop.f32.mrb[0].mxu0
        %1191 = vmatprep.mubr.bf16.mxu0 0
        %1192 = vmatmul.mubr.bf16.gmra.mrb[0].mxu0 %v1068
        %v1193 = vpop.f32.mrb[0].mxu0
        %v1194 = vadd.f32 0.0, %v1193
        %v1195 = vpop.f32.mrb[0].mxu0
        %v1196 = vpop.f32.mrb[0].mxu0
        %v1197 = vadd.f32 0.0, %v1196
        %v1198 = vpop.f32.mrb[0].mxu0
        %1199 = vmatprep.mubr.bf16.mxu0 0
        %1200 = vmatmul.mubr.bf16.gmra.mrb[0].mxu0 %v1071
        %v1201 = vpop.f32.mrb[0].mxu0
        %v1202 = vadd.f32 0.0, %v1201
        %v1203 = vpop.f32.mrb[0].mxu0
        %v1204 = vpop.f32.mrb[0].mxu0
        %v1205 = vadd.f32 0.0, %v1204
        %v1206 = vpop.f32.mrb[0].mxu0
        %1207 = vmatprep.mubr.bf16.mxu0 0
        %1208 = vmatmul.mubr.bf16.gmra.mrb[0].mxu0 %v1074
        %v1209 = vpop.f32.mrb[0].mxu0
        %v1210 = vadd.f32 0.0, %v1209
        %v1211 = vpop.f32.mrb[0].mxu0
        %v1212 = vpop.f32.mrb[0].mxu0
        %v1213 = vadd.f32 0.0, %v1212
        %v1214 = vpop.f32.mrb[0].mxu0
        %1215 = vmatprep.mubr.bf16.mxu0 0
        %1216 = vmatmul.mubr.bf16.gmra.mrb[0].mxu0 %v1077
        %v1217 = vpop.f32.mrb[0].mxu0
        %v1218 = vadd.f32 0.0, %v1217
        %v1219 = vpop.f32.mrb[0].mxu0
        %v1220 = vpop.f32.mrb[0].mxu0
        %v1221 = vadd.f32 0.0, %v1220
        %v1222 = vpop.f32.mrb[0].mxu0
        %1223 = vmatprep.mubr.bf16.mxu0 0
        %1224 = vmatmul.mubr.bf16.gmra.mrb[0].mxu0 %v1080
        %v1225 = vpop.f32.mrb[0].mxu0
        %v1226 = vadd.f32 0.0, %v1225
        %v1227 = vpop.f32.mrb[0].mxu0
        %v1228 = vpop.f32.mrb[0].mxu0
        %v1229 = vadd.f32 0.0, %v1228
        %v1230 = vpop.f32.mrb[0].mxu0
        %1231 = vmatprep.mubr.bf16.mxu0 0
        %1232 = vmatmul.mubr.bf16.gmra.mrb[0].mxu0 %v1083
        %v1233 = vpop.f32.mrb[0].mxu0
        %v1234 = vadd.f32 0.0, %v1233
        %v1235 = vpop.f32.mrb[0].mxu0
        %v1236 = vpop.f32.mrb[0].mxu0
        %v1237 = vadd.f32 0.0, %v1236
        %v1238 = vpop.f32.mrb[0].mxu0
        %1239 = vmatprep.mubr.bf16.mxu0 0
        %1240 = vmatmul.mubr.bf16.gmra.mrb[0].mxu0 %v1086
        %v1241 = vpop.f32.mrb[0].mxu0
        %v1242 = vadd.f32 0.0, %v1241
        %v1243 = vpop.f32.mrb[0].mxu0
        %v1244 = vpop.f32.mrb[0].mxu0
        %v1245 = vadd.f32 0.0, %v1244
        %v1246 = vpop.f32.mrb[0].mxu0
        %1247 = vmatprep.mubr.bf16.mxu0 0
        %1248 = vmatmul.mubr.bf16.gmra.mrb[0].mxu0 %v1089
        %v1249 = vpop.f32.mrb[0].mxu0
        %v1250 = vadd.f32 0.0, %v1249
        %v1251 = vpop.f32.mrb[0].mxu0
        %v1252 = vpop.f32.mrb[0].mxu0
        %v1253 = vadd.f32 0.0, %v1252
        %v1254 = vpop.f32.mrb[0].mxu0
        %1255 = vmatprep.mubr.bf16.mxu0 0
        %1256 = vmatmul.mubr.bf16.gmra.mrb[0].mxu0 %v1092
        %v1257 = vpop.f32.mrb[0].mxu0
        %v1258 = vadd.f32 0.0, %v1257
        %v1259 = vpop.f32.mrb[0].mxu0
        %v1260 = vpop.f32.mrb[0].mxu0
        %v1261 = vadd.f32 0.0, %v1260
        %v1262 = vpop.f32.mrb[0].mxu0
        %1263 = vmatprep.mubr.bf16.mxu0 0
        %1264 = vmatmul.mubr.bf16.gmra.mrb[0].mxu0 %v1095
        %v1265 = vpop.f32.mrb[0].mxu0
        %v1266 = vadd.f32 0.0, %v1265
        %v1267 = vpop.f32.mrb[0].mxu0
        %v1268 = vpop.f32.mrb[0].mxu0
        %v1269 = vadd.f32 0.0, %v1268
        %v1270 = vpop.f32.mrb[0].mxu0
        %1271 = vmatprep.mubr.bf16.mxu0 0
        %1272 = vmatmul.mubr.bf16.gmra.mrb[0].mxu0 %v1098
        %v1273 = vpop.f32.mrb[0].mxu0
        %v1274 = vadd.f32 0.0, %v1273
        %v1275 = vpop.f32.mrb[0].mxu0
        %v1276 = vpop.f32.mrb[0].mxu0
        %v1277 = vadd.f32 0.0, %v1276
        %v1278 = vpop.f32.mrb[0].mxu0
        %1279 = vmatprep.mubr.bf16.mxu0 0
        %1280 = vmatmul.mubr.bf16.gmra.mrb[0].mxu0 %v1101
        %v1281 = vpop.f32.mrb[0].mxu0
        %v1282 = vadd.f32 0.0, %v1281
        %v1283 = vpop.f32.mrb[0].mxu0
        %v1284 = vpop.f32.mrb[0].mxu0
        %v1285 = vadd.f32 0.0, %v1284
        %v1286 = vpop.f32.mrb[0].mxu0
        %1287 = vmatprep.mubr.bf16.mxu0 0
        %1288 = vmatmul.mubr.bf16.gmra.mrb[0].mxu0 %v1104
        %v1289 = vpop.f32.mrb[0].mxu0
        %v1290 = vadd.f32 0.0, %v1289
        %v1291 = vpop.f32.mrb[0].mxu0
        %v1292 = vpop.f32.mrb[0].mxu0
        %v1293 = vadd.f32 0.0, %v1292
        %v1294 = vpop.f32.mrb[0].mxu0
        %1295 = vmatprep.mubr.bf16.mxu0 0
        %1296 = vmatmul.mubr.bf16.gmra.mrb[0].mxu0 %v1107
        %v1297 = vpop.f32.mrb[0].mxu0
        %v1298 = vadd.f32 0.0, %v1297
        %v1299 = vpop.f32.mrb[0].mxu0
        %v1300 = vpop.f32.mrb[0].mxu0
        %v1301 = vadd.f32 0.0, %v1300
        %v1302 = vpop.f32.mrb[0].mxu0
        %1303 = vmatprep.mubr.bf16.mxu0 0
        %1304 = vmatmul.mubr.bf16.gmra.mrb[0].mxu0 %v1110
        %v1305 = vpop.f32.mrb[0].mxu0
        %v1306 = vadd.f32 0.0, %v1305
        %v1307 = vpop.f32.mrb[0].mxu0
        %v1308 = vpop.f32.mrb[0].mxu0
        %v1309 = vadd.f32 0.0, %v1308
        %v1310 = vpop.f32.mrb[0].mxu0
        %1311 = vmatprep.mubr.bf16.mxu0 0
        %1312 = vmatmul.mubr.bf16.gmra.mrb[0].mxu0 %v1113
        %v1313 = vpop.f32.mrb[0].mxu0
        %v1314 = vadd.f32 0.0, %v1313
        %v1315 = vpop.f32.mrb[0].mxu0
        %v1316 = vpop.f32.mrb[0].mxu0
        %v1317 = vadd.f32 0.0, %v1316
        %v1318 = vpop.f32.mrb[0].mxu0
        %1319 = vmatprep.mubr.bf16.mxu0 0
        %1320 = vmatmul.mubr.bf16.gmra.mrb[0].mxu0 %v1116
        %v1321 = vpop.f32.mrb[0].mxu0
        %v1322 = vadd.f32 0.0, %v1321
        %v1323 = vpop.f32.mrb[0].mxu0
        %v1324 = vpop.f32.mrb[0].mxu0
        %v1325 = vadd.f32 0.0, %v1324
        %v1326 = vpop.f32.mrb[0].mxu0
        %1327 = vmatprep.mubr.bf16.mxu0 0
        %1328 = vmatmul.mubr.bf16.gmra.mrb[0].mxu0 %v1119
        %v1329 = vpop.f32.mrb[0].mxu0
        %v1330 = vadd.f32 0.0, %v1329
        %v1331 = vpop.f32.mrb[0].mxu0
        %v1332 = vpop.f32.mrb[0].mxu0
        %v1333 = vadd.f32 0.0, %v1332
        %v1334 = vpop.f32.mrb[0].mxu0
        %1335 = vmatprep.mubr.bf16.mxu0 0
        %1336 = vmatmul.mubr.bf16.gmra.mrb[0].mxu0 %v1122
        %v1337 = vpop.f32.mrb[0].mxu0
        %v1338 = vadd.f32 0.0, %v1337
        %v1339 = vpop.f32.mrb[0].mxu0
        %v1340 = vpop.f32.mrb[0].mxu0
        %v1341 = vadd.f32 0.0, %v1340
        %v1342 = vpop.f32.mrb[0].mxu0
        %1343 = vmatprep.mubr.bf16.mxu0 0
        %1344 = vmatmul.mubr.bf16.gmra.mrb[0].mxu0 %v1125
        %v1345 = vpop.f32.mrb[0].mxu0
        %v1346 = vadd.f32 0.0, %v1345
        %v1347 = vpop.f32.mrb[0].mxu0
        %v1348 = vpop.f32.mrb[0].mxu0
        %v1349 = vadd.f32 0.0, %v1348
        %v1350 = vpop.f32.mrb[0].mxu0
        %1351 = vdwg.mxu0
        %v1352 = vadd.f32 %v782, %v1162
        %v1353 = vadd.f32 %v785, %v1165
        %v1354 = vadd.f32 %v790, %v1170
        %v1355 = vadd.f32 %v793, %v1173
        %v1356 = vadd.f32 %v798, %v1178
        %v1357 = vadd.f32 %v801, %v1181
        %v1358 = vadd.f32 %v806, %v1186
        %v1359 = vadd.f32 %v809, %v1189
        %v1360 = vadd.f32 %v814, %v1194
        %v1361 = vadd.f32 %v817, %v1197
        %v1362 = vadd.f32 %v822, %v1202
        %v1363 = vadd.f32 %v825, %v1205
        %v1364 = vadd.f32 %v830, %v1210
        %v1365 = vadd.f32 %v833, %v1213
        %v1366 = vadd.f32 %v838, %v1218
        %v1367 = vadd.f32 %v841, %v1221
        %v1368 = vadd.f32 %v846, %v1226
        %v1369 = vadd.f32 %v849, %v1229
        %v1370 = vadd.f32 %v854, %v1234
        %v1371 = vadd.f32 %v857, %v1237
        %v1372 = vadd.f32 %v862, %v1242
        %v1373 = vadd.f32 %v865, %v1245
        %v1374 = vadd.f32 %v870, %v1250
        %v1375 = vadd.f32 %v873, %v1253
        %v1376 = vadd.f32 %v878, %v1258
        %v1377 = vadd.f32 %v881, %v1261
        %v1378 = vadd.f32 %v886, %v1266
        %v1379 = vadd.f32 %v889, %v1269
        %v1380 = vadd.f32 %v894, %v1274
        %v1381 = vadd.f32 %v897, %v1277
        %v1382 = vadd.f32 %v902, %v1282
        %v1383 = vadd.f32 %v905, %v1285
        %v1384 = vadd.f32 %v910, %v1290
        %v1385 = vadd.f32 %v913, %v1293
        %v1386 = vadd.f32 %v918, %v1298
        %v1387 = vadd.f32 %v921, %v1301
        %v1388 = vadd.f32 %v926, %v1306
        %v1389 = vadd.f32 %v929, %v1309
        %v1390 = vadd.f32 %v934, %v1314
        %v1391 = vadd.f32 %v937, %v1317
        %v1392 = vadd.f32 %v942, %v1322
        %v1393 = vadd.f32 %v945, %v1325
        %v1394 = vadd.f32 %v950, %v1330
        %v1395 = vadd.f32 %v953, %v1333
        %v1396 = vadd.f32 %v958, %v1338
        %v1397 = vadd.f32 %v961, %v1341
        %v1398 = vadd.f32 %v966, %v1346
        %v1399 = vadd.f32 %v969, %v1349
        %s1400 = sadd.s32 %s212, 18
        %s1401 = scalar_lea.vmem %s209, %s1400
        %v1402 = vld [vmem:[%s1401] sm:$0xff]
        %v1403 = vld [vmem:[%s1401 + $0x8] sm:$0xff]
        %v1404 = vld [vmem:[%s1401 + $0x10] sm:$0xff]
        %v1405 = vld [vmem:[%s1401 + $0x18] sm:$0xff]
        %v1406 = vld [vmem:[%s1401 + $0x20] sm:$0xff]
        %v1407 = vld [vmem:[%s1401 + $0x28] sm:$0xff]
        %v1408 = vld [vmem:[%s1401 + $0x30] sm:$0xff]
        %v1409 = vld [vmem:[%s1401 + $0x38] sm:$0xff]
        %v1410 = vld [vmem:[%s1401 + $0x40] sm:$0xff]
        %v1411 = vld [vmem:[%s1401 + $0x48] sm:$0xff]
        %v1412 = vld [vmem:[%s1401 + $0x50] sm:$0xff]
        %v1413 = vld [vmem:[%s1401 + $0x58] sm:$0xff]
        %v1414 = vld [vmem:[%s1401 + $0x60] sm:$0xff]
        %v1415 = vld [vmem:[%s1401 + $0x68] sm:$0xff]
        %v1416 = vld [vmem:[%s1401 + $0x70] sm:$0xff]
        %v1417 = vld [vmem:[%s1401 + $0x78] sm:$0xff]
        %v1418 = vld [vmem:[%s1401 + $0x80] sm:$0xff]
        %v1419 = vld [vmem:[%s1401 + $0x88] sm:$0xff]
        %v1420 = vld [vmem:[%s1401 + $0x90] sm:$0xff]
        %v1421 = vld [vmem:[%s1401 + $0x98] sm:$0xff]
        %v1422 = vld [vmem:[%s1401 + $0xa0] sm:$0xff]
        %v1423 = vld [vmem:[%s1401 + $0xa8] sm:$0xff]
        %v1424 = vld [vmem:[%s1401 + $0xb0] sm:$0xff]
        %v1425 = vld [vmem:[%s1401 + $0xb8] sm:$0xff]
        %v1426 = vld [vmem:[%s1401 + $0xc0] sm:$0xff]
        %v1427 = vld [vmem:[%s1401 + $0xc8] sm:$0xff]
        %v1428 = vld [vmem:[%s1401 + $0xd0] sm:$0xff]
        %v1429 = vld [vmem:[%s1401 + $0xd8] sm:$0xff]
        %v1430 = vld [vmem:[%s1401 + $0xe0] sm:$0xff]
        %v1431 = vld [vmem:[%s1401 + $0xe8] sm:$0xff]
        %v1432 = vld [vmem:[%s1401 + $0xf0] sm:$0xff]
        %v1433 = vld [vmem:[%s1401 + $0xf8] sm:$0xff]
        %v1434 = vld [vmem:[%s1401 + $0x100] sm:$0xff]
        %v1435 = vld [vmem:[%s1401 + $0x108] sm:$0xff]
        %v1436 = vld [vmem:[%s1401 + $0x110] sm:$0xff]
        %v1437 = vld [vmem:[%s1401 + $0x118] sm:$0xff]
        %v1438 = vld [vmem:[%s1401 + $0x120] sm:$0xff]
        %v1439 = vld [vmem:[%s1401 + $0x128] sm:$0xff]
        %v1440 = vld [vmem:[%s1401 + $0x130] sm:$0xff]
        %v1441 = vld [vmem:[%s1401 + $0x138] sm:$0xff]
        %v1442 = vld [vmem:[%s1401 + $0x140] sm:$0xff]
        %v1443 = vld [vmem:[%s1401 + $0x148] sm:$0xff]
        %v1444 = vld [vmem:[%s1401 + $0x150] sm:$0xff]
        %v1445 = vld [vmem:[%s1401 + $0x158] sm:$0xff]
        %v1446 = vld [vmem:[%s1401 + $0x160] sm:$0xff]
        %v1447 = vld [vmem:[%s1401 + $0x168] sm:$0xff]
        %v1448 = vld [vmem:[%s1401 + $0x170] sm:$0xff]
        %v1449 = vld [vmem:[%s1401 + $0x178] sm:$0xff]
        %v1450 = vpack.c.bf16 %v1403, %v1402
        %v1451 = vpack.c.bf16 %v1405, %v1404
        %v1452 = vpack.c.bf16 %v1407, %v1406
        %v1453 = vpack.c.bf16 %v1409, %v1408
        %v1454 = vpack.c.bf16 %v1411, %v1410
        %v1455 = vpack.c.bf16 %v1413, %v1412
        %v1456 = vpack.c.bf16 %v1415, %v1414
        %v1457 = vpack.c.bf16 %v1417, %v1416
        %v1458 = vpack.c.bf16 %v1419, %v1418
        %v1459 = vpack.c.bf16 %v1421, %v1420
        %v1460 = vpack.c.bf16 %v1423, %v1422
        %v1461 = vpack.c.bf16 %v1425, %v1424
        %v1462 = vpack.c.bf16 %v1427, %v1426
        %v1463 = vpack.c.bf16 %v1429, %v1428
        %v1464 = vpack.c.bf16 %v1431, %v1430
        %v1465 = vpack.c.bf16 %v1433, %v1432
        %v1466 = vpack.c.bf16 %v1435, %v1434
        %v1467 = vpack.c.bf16 %v1437, %v1436
        %v1468 = vpack.c.bf16 %v1439, %v1438
        %v1469 = vpack.c.bf16 %v1441, %v1440
        %v1470 = vpack.c.bf16 %v1443, %v1442
        %v1471 = vpack.c.bf16 %v1445, %v1444
        %v1472 = vpack.c.bf16 %v1447, %v1446
        %v1473 = vpack.c.bf16 %v1449, %v1448
        %s1474 = scalar_lea.vmem %s1, 24
        %v1475 = vld [vmem:[%s1474] sm:$0xf]
        %v1476 = vld [vmem:[%s1474 + $0x4] sm:$0xf]
        %v1479 = vunpack.c.l.b16 %v1475
        %v1480 = vunpack.c.l.b16 %v1476
        %v1481 = vpack.c.b16 %v1480, %v1479
        %v1484 = vsel %vm371, %v1450, 0
        %v1487 = vsel %vm371, %v1451, 0
        %v1490 = vsel %vm371, %v1452, 0
        %v1493 = vsel %vm371, %v1453, 0
        %v1496 = vsel %vm371, %v1454, 0
        %v1499 = vsel %vm371, %v1455, 0
        %v1502 = vsel %vm371, %v1456, 0
        %v1505 = vsel %vm371, %v1457, 0
        %v1508 = vsel %vm371, %v1458, 0
        %v1511 = vsel %vm371, %v1459, 0
        %v1514 = vsel %vm371, %v1460, 0
        %v1517 = vsel %vm371, %v1461, 0
        %v1520 = vsel %vm371, %v1462, 0
        %v1523 = vsel %vm371, %v1463, 0
        %v1526 = vsel %vm371, %v1464, 0
        %v1529 = vsel %vm371, %v1465, 0
        %v1532 = vsel %vm371, %v1466, 0
        %v1535 = vsel %vm371, %v1467, 0
        %v1538 = vsel %vm371, %v1468, 0
        %v1541 = vsel %vm371, %v1469, 0
        %v1544 = vsel %vm371, %v1470, 0
        %v1547 = vsel %vm371, %v1471, 0
        %v1550 = vsel %vm371, %v1472, 0
        %v1553 = vsel %vm371, %v1473, 0
        %1555 = vmatprep.subr.bf16.mxu0 0
        %1556 = vmatpush1.bf16.msra.mxu0 %v1481
        %1557 = vmatprep.subr.bf16.mxu0 0
        %1558 = vmatpush1.bf16.msra.mxu0 0
        %1559 = vmatprep.subr.bf16.mxu0 0
        %1560 = vmatpush1.bf16.msra.mxu0 0
        %1561 = vmatprep.subr.bf16.mxu0 0
        %1562 = vmatpush1.bf16.msra.mxu0 0
        %1563 = vmatprep.subr.bf16.mxu0 0
        %1564 = vmatpush1.bf16.msra.mxu0 0
        %1565 = vmatprep.subr.bf16.mxu0 0
        %1566 = vmatpush1.bf16.msra.mxu0 0
        %1567 = vmatprep.subr.bf16.mxu0 0
        %1568 = vmatpush1.bf16.msra.mxu0 0
        %1569 = vmatprep.subr.bf16.mxu0 0
        %1570 = vmatpush1.bf16.msra.mxu0 0
        %1571 = vmatprep.subr.bf16.mxu0 0
        %1572 = vmatpush1.bf16.msra.mxu0 0
        %1573 = vmatprep.subr.bf16.mxu0 0
        %1574 = vmatpush1.bf16.msra.mxu0 0
        %1575 = vmatprep.subr.bf16.mxu0 0
        %1576 = vmatpush1.bf16.msra.mxu0 0
        %1577 = vmatprep.subr.bf16.mxu0 0
        %1578 = vmatpush1.bf16.msra.mxu0 0
        %1579 = vmatprep.subr.bf16.mxu0 0
        %1580 = vmatpush1.bf16.msra.mxu0 0
        %1581 = vmatprep.subr.bf16.mxu0 0
        %1582 = vmatpush1.bf16.msra.mxu0 0
        %1583 = vmatprep.subr.bf16.mxu0 0
        %1584 = vmatpush1.bf16.msra.mxu0 0
        %1585 = vmatprep.subr.bf16.mxu0 0
        %1586 = vmatpush1.bf16.msra.mxu0 0
        %1587 = vmatprep.mubr.bf16.mxu0 0
        %1588 = vmatmul.mubr.bf16.gmra.mrb[0].mxu0 %v1484
        %v1589 = vpop.f32.mrb[0].mxu0
        %v1590 = vadd.f32 0.0, %v1589
        %v1591 = vpop.f32.mrb[0].mxu0
        %v1592 = vpop.f32.mrb[0].mxu0
        %v1593 = vadd.f32 0.0, %v1592
        %v1594 = vpop.f32.mrb[0].mxu0
        %1595 = vmatprep.mubr.bf16.mxu0 0
        %1596 = vmatmul.mubr.bf16.gmra.mrb[0].mxu0 %v1487
        %v1597 = vpop.f32.mrb[0].mxu0
        %v1598 = vadd.f32 0.0, %v1597
        %v1599 = vpop.f32.mrb[0].mxu0
        %v1600 = vpop.f32.mrb[0].mxu0
        %v1601 = vadd.f32 0.0, %v1600
        %v1602 = vpop.f32.mrb[0].mxu0
        %1603 = vmatprep.mubr.bf16.mxu0 0
        %1604 = vmatmul.mubr.bf16.gmra.mrb[0].mxu0 %v1490
        %v1605 = vpop.f32.mrb[0].mxu0
        %v1606 = vadd.f32 0.0, %v1605
        %v1607 = vpop.f32.mrb[0].mxu0
        %v1608 = vpop.f32.mrb[0].mxu0
        %v1609 = vadd.f32 0.0, %v1608
        %v1610 = vpop.f32.mrb[0].mxu0
        %1611 = vmatprep.mubr.bf16.mxu0 0
        %1612 = vmatmul.mubr.bf16.gmra.mrb[0].mxu0 %v1493
        %v1613 = vpop.f32.mrb[0].mxu0
        %v1614 = vadd.f32 0.0, %v1613
        %v1615 = vpop.f32.mrb[0].mxu0
        %v1616 = vpop.f32.mrb[0].mxu0
        %v1617 = vadd.f32 0.0, %v1616
        %v1618 = vpop.f32.mrb[0].mxu0
        %1619 = vmatprep.mubr.bf16.mxu0 0
        %1620 = vmatmul.mubr.bf16.gmra.mrb[0].mxu0 %v1496
        %v1621 = vpop.f32.mrb[0].mxu0
        %v1622 = vadd.f32 0.0, %v1621
        %v1623 = vpop.f32.mrb[0].mxu0
        %v1624 = vpop.f32.mrb[0].mxu0
        %v1625 = vadd.f32 0.0, %v1624
        %v1626 = vpop.f32.mrb[0].mxu0
        %1627 = vmatprep.mubr.bf16.mxu0 0
        %1628 = vmatmul.mubr.bf16.gmra.mrb[0].mxu0 %v1499
        %v1629 = vpop.f32.mrb[0].mxu0
        %v1630 = vadd.f32 0.0, %v1629
        %v1631 = vpop.f32.mrb[0].mxu0
        %v1632 = vpop.f32.mrb[0].mxu0
        %v1633 = vadd.f32 0.0, %v1632
        %v1634 = vpop.f32.mrb[0].mxu0
        %1635 = vmatprep.mubr.bf16.mxu0 0
        %1636 = vmatmul.mubr.bf16.gmra.mrb[0].mxu0 %v1502
        %v1637 = vpop.f32.mrb[0].mxu0
        %v1638 = vadd.f32 0.0, %v1637
        %v1639 = vpop.f32.mrb[0].mxu0
        %v1640 = vpop.f32.mrb[0].mxu0
        %v1641 = vadd.f32 0.0, %v1640
        %v1642 = vpop.f32.mrb[0].mxu0
        %1643 = vmatprep.mubr.bf16.mxu0 0
        %1644 = vmatmul.mubr.bf16.gmra.mrb[0].mxu0 %v1505
        %v1645 = vpop.f32.mrb[0].mxu0
        %v1646 = vadd.f32 0.0, %v1645
        %v1647 = vpop.f32.mrb[0].mxu0
        %v1648 = vpop.f32.mrb[0].mxu0
        %v1649 = vadd.f32 0.0, %v1648
        %v1650 = vpop.f32.mrb[0].mxu0
        %1651 = vmatprep.mubr.bf16.mxu0 0
        %1652 = vmatmul.mubr.bf16.gmra.mrb[0].mxu0 %v1508
        %v1653 = vpop.f32.mrb[0].mxu0
        %v1654 = vadd.f32 0.0, %v1653
        %v1655 = vpop.f32.mrb[0].mxu0
        %v1656 = vpop.f32.mrb[0].mxu0
        %v1657 = vadd.f32 0.0, %v1656
        %v1658 = vpop.f32.mrb[0].mxu0
        %1659 = vmatprep.mubr.bf16.mxu0 0
        %1660 = vmatmul.mubr.bf16.gmra.mrb[0].mxu0 %v1511
        %v1661 = vpop.f32.mrb[0].mxu0
        %v1662 = vadd.f32 0.0, %v1661
        %v1663 = vpop.f32.mrb[0].mxu0
        %v1664 = vpop.f32.mrb[0].mxu0
        %v1665 = vadd.f32 0.0, %v1664
        %v1666 = vpop.f32.mrb[0].mxu0
        %1667 = vmatprep.mubr.bf16.mxu0 0
        %1668 = vmatmul.mubr.bf16.gmra.mrb[0].mxu0 %v1514
        %v1669 = vpop.f32.mrb[0].mxu0
        %v1670 = vadd.f32 0.0, %v1669
        %v1671 = vpop.f32.mrb[0].mxu0
        %v1672 = vpop.f32.mrb[0].mxu0
        %v1673 = vadd.f32 0.0, %v1672
        %v1674 = vpop.f32.mrb[0].mxu0
        %1675 = vmatprep.mubr.bf16.mxu0 0
        %1676 = vmatmul.mubr.bf16.gmra.mrb[0].mxu0 %v1517
        %v1677 = vpop.f32.mrb[0].mxu0
        %v1678 = vadd.f32 0.0, %v1677
        %v1679 = vpop.f32.mrb[0].mxu0
        %v1680 = vpop.f32.mrb[0].mxu0
        %v1681 = vadd.f32 0.0, %v1680
        %v1682 = vpop.f32.mrb[0].mxu0
        %1683 = vmatprep.mubr.bf16.mxu0 0
        %1684 = vmatmul.mubr.bf16.gmra.mrb[0].mxu0 %v1520
        %v1685 = vpop.f32.mrb[0].mxu0
        %v1686 = vadd.f32 0.0, %v1685
        %v1687 = vpop.f32.mrb[0].mxu0
        %v1688 = vpop.f32.mrb[0].mxu0
        %v1689 = vadd.f32 0.0, %v1688
        %v1690 = vpop.f32.mrb[0].mxu0
        %1691 = vmatprep.mubr.bf16.mxu0 0
        %1692 = vmatmul.mubr.bf16.gmra.mrb[0].mxu0 %v1523
        %v1693 = vpop.f32.mrb[0].mxu0
        %v1694 = vadd.f32 0.0, %v1693
        %v1695 = vpop.f32.mrb[0].mxu0
        %v1696 = vpop.f32.mrb[0].mxu0
        %v1697 = vadd.f32 0.0, %v1696
        %v1698 = vpop.f32.mrb[0].mxu0
        %1699 = vmatprep.mubr.bf16.mxu0 0
        %1700 = vmatmul.mubr.bf16.gmra.mrb[0].mxu0 %v1526
        %v1701 = vpop.f32.mrb[0].mxu0
        %v1702 = vadd.f32 0.0, %v1701
        %v1703 = vpop.f32.mrb[0].mxu0
        %v1704 = vpop.f32.mrb[0].mxu0
        %v1705 = vadd.f32 0.0, %v1704
        %v1706 = vpop.f32.mrb[0].mxu0
        %1707 = vmatprep.mubr.bf16.mxu0 0
        %1708 = vmatmul.mubr.bf16.gmra.mrb[0].mxu0 %v1529
        %v1709 = vpop.f32.mrb[0].mxu0
        %v1710 = vadd.f32 0.0, %v1709
        %v1711 = vpop.f32.mrb[0].mxu0
        %v1712 = vpop.f32.mrb[0].mxu0
        %v1713 = vadd.f32 0.0, %v1712
        %v1714 = vpop.f32.mrb[0].mxu0
        %1715 = vmatprep.mubr.bf16.mxu0 0
        %1716 = vmatmul.mubr.bf16.gmra.mrb[0].mxu0 %v1532
        %v1717 = vpop.f32.mrb[0].mxu0
        %v1718 = vadd.f32 0.0, %v1717
        %v1719 = vpop.f32.mrb[0].mxu0
        %v1720 = vpop.f32.mrb[0].mxu0
        %v1721 = vadd.f32 0.0, %v1720
        %v1722 = vpop.f32.mrb[0].mxu0
        %1723 = vmatprep.mubr.bf16.mxu0 0
        %1724 = vmatmul.mubr.bf16.gmra.mrb[0].mxu0 %v1535
        %v1725 = vpop.f32.mrb[0].mxu0
        %v1726 = vadd.f32 0.0, %v1725
        %v1727 = vpop.f32.mrb[0].mxu0
        %v1728 = vpop.f32.mrb[0].mxu0
        %v1729 = vadd.f32 0.0, %v1728
        %v1730 = vpop.f32.mrb[0].mxu0
        %1731 = vmatprep.mubr.bf16.mxu0 0
        %1732 = vmatmul.mubr.bf16.gmra.mrb[0].mxu0 %v1538
        %v1733 = vpop.f32.mrb[0].mxu0
        %v1734 = vadd.f32 0.0, %v1733
        %v1735 = vpop.f32.mrb[0].mxu0
        %v1736 = vpop.f32.mrb[0].mxu0
        %v1737 = vadd.f32 0.0, %v1736
        %v1738 = vpop.f32.mrb[0].mxu0
        %1739 = vmatprep.mubr.bf16.mxu0 0
        %1740 = vmatmul.mubr.bf16.gmra.mrb[0].mxu0 %v1541
        %v1741 = vpop.f32.mrb[0].mxu0
        %v1742 = vadd.f32 0.0, %v1741
        %v1743 = vpop.f32.mrb[0].mxu0
        %v1744 = vpop.f32.mrb[0].mxu0
        %v1745 = vadd.f32 0.0, %v1744
        %v1746 = vpop.f32.mrb[0].mxu0
        %1747 = vmatprep.mubr.bf16.mxu0 0
        %1748 = vmatmul.mubr.bf16.gmra.mrb[0].mxu0 %v1544
        %v1749 = vpop.f32.mrb[0].mxu0
        %v1750 = vadd.f32 0.0, %v1749
        %v1751 = vpop.f32.mrb[0].mxu0
        %v1752 = vpop.f32.mrb[0].mxu0
        %v1753 = vadd.f32 0.0, %v1752
        %v1754 = vpop.f32.mrb[0].mxu0
        %1755 = vmatprep.mubr.bf16.mxu0 0
        %1756 = vmatmul.mubr.bf16.gmra.mrb[0].mxu0 %v1547
        %v1757 = vpop.f32.mrb[0].mxu0
        %v1758 = vadd.f32 0.0, %v1757
        %v1759 = vpop.f32.mrb[0].mxu0
        %v1760 = vpop.f32.mrb[0].mxu0
        %v1761 = vadd.f32 0.0, %v1760
        %v1762 = vpop.f32.mrb[0].mxu0
        %1763 = vmatprep.mubr.bf16.mxu0 0
        %1764 = vmatmul.mubr.bf16.gmra.mrb[0].mxu0 %v1550
        %v1765 = vpop.f32.mrb[0].mxu0
        %v1766 = vadd.f32 0.0, %v1765
        %v1767 = vpop.f32.mrb[0].mxu0
        %v1768 = vpop.f32.mrb[0].mxu0
        %v1769 = vadd.f32 0.0, %v1768
        %v1770 = vpop.f32.mrb[0].mxu0
        %1771 = vmatprep.mubr.bf16.mxu0 0
        %1772 = vmatmul.mubr.bf16.gmra.mrb[0].mxu0 %v1553
        %v1773 = vpop.f32.mrb[0].mxu0
        %v1774 = vadd.f32 0.0, %v1773
        %v1775 = vpop.f32.mrb[0].mxu0
        %v1776 = vpop.f32.mrb[0].mxu0
        %v1777 = vadd.f32 0.0, %v1776
        %v1778 = vpop.f32.mrb[0].mxu0
        %1779 = vdwg.mxu0
        %v1780 = vadd.f32 %v1352, %v1590
        %v1781 = vadd.f32 %v1353, %v1593
        %v1782 = vadd.f32 %v1354, %v1598
        %v1783 = vadd.f32 %v1355, %v1601
        %v1784 = vadd.f32 %v1356, %v1606
        %v1785 = vadd.f32 %v1357, %v1609
        %v1786 = vadd.f32 %v1358, %v1614
        %v1787 = vadd.f32 %v1359, %v1617
        %v1788 = vadd.f32 %v1360, %v1622
        %v1789 = vadd.f32 %v1361, %v1625
        %v1790 = vadd.f32 %v1362, %v1630
        %v1791 = vadd.f32 %v1363, %v1633
        %v1792 = vadd.f32 %v1364, %v1638
        %v1793 = vadd.f32 %v1365, %v1641
        %v1794 = vadd.f32 %v1366, %v1646
        %v1795 = vadd.f32 %v1367, %v1649
        %v1796 = vadd.f32 %v1368, %v1654
        %v1797 = vadd.f32 %v1369, %v1657
        %v1798 = vadd.f32 %v1370, %v1662
        %v1799 = vadd.f32 %v1371, %v1665
        %v1800 = vadd.f32 %v1372, %v1670
        %v1801 = vadd.f32 %v1373, %v1673
        %v1802 = vadd.f32 %v1374, %v1678
        %v1803 = vadd.f32 %v1375, %v1681
        %v1804 = vadd.f32 %v1376, %v1686
        %v1805 = vadd.f32 %v1377, %v1689
        %v1806 = vadd.f32 %v1378, %v1694
        %v1807 = vadd.f32 %v1379, %v1697
        %v1808 = vadd.f32 %v1380, %v1702
        %v1809 = vadd.f32 %v1381, %v1705
        %v1810 = vadd.f32 %v1382, %v1710
        %v1811 = vadd.f32 %v1383, %v1713
        %v1812 = vadd.f32 %v1384, %v1718
        %v1813 = vadd.f32 %v1385, %v1721
        %v1814 = vadd.f32 %v1386, %v1726
        %v1815 = vadd.f32 %v1387, %v1729
        %v1816 = vadd.f32 %v1388, %v1734
        %v1817 = vadd.f32 %v1389, %v1737
        %v1818 = vadd.f32 %v1390, %v1742
        %v1819 = vadd.f32 %v1391, %v1745
        %v1820 = vadd.f32 %v1392, %v1750
        %v1821 = vadd.f32 %v1393, %v1753
        %v1822 = vadd.f32 %v1394, %v1758
        %v1823 = vadd.f32 %v1395, %v1761
        %v1824 = vadd.f32 %v1396, %v1766
        %v1825 = vadd.f32 %v1397, %v1769
        %v1826 = vadd.f32 %v1398, %v1774
        %v1827 = vadd.f32 %v1399, %v1777
        %s1828 = sadd.s32 %s212, 19
        %s1829 = scalar_lea.vmem %s209, %s1828
        %v1830 = vld [vmem:[%s1829] sm:$0xff]
        %v1831 = vld [vmem:[%s1829 + $0x8] sm:$0xff]
        %v1832 = vld [vmem:[%s1829 + $0x10] sm:$0xff]
        %v1833 = vld [vmem:[%s1829 + $0x18] sm:$0xff]
        %v1834 = vld [vmem:[%s1829 + $0x20] sm:$0xff]
        %v1835 = vld [vmem:[%s1829 + $0x28] sm:$0xff]
        %v1836 = vld [vmem:[%s1829 + $0x30] sm:$0xff]
        %v1837 = vld [vmem:[%s1829 + $0x38] sm:$0xff]
        %v1838 = vld [vmem:[%s1829 + $0x40] sm:$0xff]
        %v1839 = vld [vmem:[%s1829 + $0x48] sm:$0xff]
        %v1840 = vld [vmem:[%s1829 + $0x50] sm:$0xff]
        %v1841 = vld [vmem:[%s1829 + $0x58] sm:$0xff]
        %v1842 = vld [vmem:[%s1829 + $0x60] sm:$0xff]
        %v1843 = vld [vmem:[%s1829 + $0x68] sm:$0xff]
        %v1844 = vld [vmem:[%s1829 + $0x70] sm:$0xff]
        %v1845 = vld [vmem:[%s1829 + $0x78] sm:$0xff]
        %v1846 = vld [vmem:[%s1829 + $0x80] sm:$0xff]
        %v1847 = vld [vmem:[%s1829 + $0x88] sm:$0xff]
        %v1848 = vld [vmem:[%s1829 + $0x90] sm:$0xff]
        %v1849 = vld [vmem:[%s1829 + $0x98] sm:$0xff]
        %v1850 = vld [vmem:[%s1829 + $0xa0] sm:$0xff]
        %v1851 = vld [vmem:[%s1829 + $0xa8] sm:$0xff]
        %v1852 = vld [vmem:[%s1829 + $0xb0] sm:$0xff]
        %v1853 = vld [vmem:[%s1829 + $0xb8] sm:$0xff]
        %v1854 = vld [vmem:[%s1829 + $0xc0] sm:$0xff]
        %v1855 = vld [vmem:[%s1829 + $0xc8] sm:$0xff]
        %v1856 = vld [vmem:[%s1829 + $0xd0] sm:$0xff]
        %v1857 = vld [vmem:[%s1829 + $0xd8] sm:$0xff]
        %v1858 = vld [vmem:[%s1829 + $0xe0] sm:$0xff]
        %v1859 = vld [vmem:[%s1829 + $0xe8] sm:$0xff]
        %v1860 = vld [vmem:[%s1829 + $0xf0] sm:$0xff]
        %v1861 = vld [vmem:[%s1829 + $0xf8] sm:$0xff]
        %v1862 = vld [vmem:[%s1829 + $0x100] sm:$0xff]
        %v1863 = vld [vmem:[%s1829 + $0x108] sm:$0xff]
        %v1864 = vld [vmem:[%s1829 + $0x110] sm:$0xff]
        %v1865 = vld [vmem:[%s1829 + $0x118] sm:$0xff]
        %v1866 = vld [vmem:[%s1829 + $0x120] sm:$0xff]
        %v1867 = vld [vmem:[%s1829 + $0x128] sm:$0xff]
        %v1868 = vld [vmem:[%s1829 + $0x130] sm:$0xff]
        %v1869 = vld [vmem:[%s1829 + $0x138] sm:$0xff]
        %v1870 = vld [vmem:[%s1829 + $0x140] sm:$0xff]
        %v1871 = vld [vmem:[%s1829 + $0x148] sm:$0xff]
        %v1872 = vld [vmem:[%s1829 + $0x150] sm:$0xff]
        %v1873 = vld [vmem:[%s1829 + $0x158] sm:$0xff]
        %v1874 = vld [vmem:[%s1829 + $0x160] sm:$0xff]
        %v1875 = vld [vmem:[%s1829 + $0x168] sm:$0xff]
        %v1876 = vld [vmem:[%s1829 + $0x170] sm:$0xff]
        %v1877 = vld [vmem:[%s1829 + $0x178] sm:$0xff]
        %v1878 = vpack.c.bf16 %v1831, %v1830
        %v1879 = vpack.c.bf16 %v1833, %v1832
        %v1880 = vpack.c.bf16 %v1835, %v1834
        %v1881 = vpack.c.bf16 %v1837, %v1836
        %v1882 = vpack.c.bf16 %v1839, %v1838
        %v1883 = vpack.c.bf16 %v1841, %v1840
        %v1884 = vpack.c.bf16 %v1843, %v1842
        %v1885 = vpack.c.bf16 %v1845, %v1844
        %v1886 = vpack.c.bf16 %v1847, %v1846
        %v1887 = vpack.c.bf16 %v1849, %v1848
        %v1888 = vpack.c.bf16 %v1851, %v1850
        %v1889 = vpack.c.bf16 %v1853, %v1852
        %v1890 = vpack.c.bf16 %v1855, %v1854
        %v1891 = vpack.c.bf16 %v1857, %v1856
        %v1892 = vpack.c.bf16 %v1859, %v1858
        %v1893 = vpack.c.bf16 %v1861, %v1860
        %v1894 = vpack.c.bf16 %v1863, %v1862
        %v1895 = vpack.c.bf16 %v1865, %v1864
        %v1896 = vpack.c.bf16 %v1867, %v1866
        %v1897 = vpack.c.bf16 %v1869, %v1868
        %v1898 = vpack.c.bf16 %v1871, %v1870
        %v1899 = vpack.c.bf16 %v1873, %v1872
        %v1900 = vpack.c.bf16 %v1875, %v1874
        %v1901 = vpack.c.bf16 %v1877, %v1876
        %s1902 = scalar_lea.vmem %s1, 32
        %v1903 = vld [vmem:[%s1902] sm:$0xf]
        %v1904 = vld [vmem:[%s1902 + $0x4] sm:$0xf]
        %v1907 = vunpack.c.l.b16 %v1903
        %v1908 = vunpack.c.l.b16 %v1904
        %v1909 = vpack.c.b16 %v1908, %v1907
        %v1912 = vsel %vm371, %v1878, 0
        %v1915 = vsel %vm371, %v1879, 0
        %v1918 = vsel %vm371, %v1880, 0
        %v1921 = vsel %vm371, %v1881, 0
        %v1924 = vsel %vm371, %v1882, 0
        %v1927 = vsel %vm371, %v1883, 0
        %v1930 = vsel %vm371, %v1884, 0
        %v1933 = vsel %vm371, %v1885, 0
        %v1936 = vsel %vm371, %v1886, 0
        %v1939 = vsel %vm371, %v1887, 0
        %v1942 = vsel %vm371, %v1888, 0
        %v1945 = vsel %vm371, %v1889, 0
        %v1948 = vsel %vm371, %v1890, 0
        %v1951 = vsel %vm371, %v1891, 0
        %v1954 = vsel %vm371, %v1892, 0
        %v1957 = vsel %vm371, %v1893, 0
        %v1960 = vsel %vm371, %v1894, 0
        %v1963 = vsel %vm371, %v1895, 0
        %v1966 = vsel %vm371, %v1896, 0
        %v1969 = vsel %vm371, %v1897, 0
        %v1972 = vsel %vm371, %v1898, 0
        %v1975 = vsel %vm371, %v1899, 0
        %v1978 = vsel %vm371, %v1900, 0
        %v1981 = vsel %vm371, %v1901, 0
        %1983 = vmatprep.subr.bf16.mxu0 0
        %1984 = vmatpush1.bf16.msra.mxu0 %v1909
        %1985 = vmatprep.subr.bf16.mxu0 0
        %1986 = vmatpush1.bf16.msra.mxu0 0
        %1987 = vmatprep.subr.bf16.mxu0 0
        %1988 = vmatpush1.bf16.msra.mxu0 0
        %1989 = vmatprep.subr.bf16.mxu0 0
        %1990 = vmatpush1.bf16.msra.mxu0 0
        %1991 = vmatprep.subr.bf16.mxu0 0
        %1992 = vmatpush1.bf16.msra.mxu0 0
        %1993 = vmatprep.subr.bf16.mxu0 0
        %1994 = vmatpush1.bf16.msra.mxu0 0
        %1995 = vmatprep.subr.bf16.mxu0 0
        %1996 = vmatpush1.bf16.msra.mxu0 0
        %1997 = vmatprep.subr.bf16.mxu0 0
        %1998 = vmatpush1.bf16.msra.mxu0 0
        %1999 = vmatprep.subr.bf16.mxu0 0
        %2000 = vmatpush1.bf16.msra.mxu0 0
        %2001 = vmatprep.subr.bf16.mxu0 0
        %2002 = vmatpush1.bf16.msra.mxu0 0
        %2003 = vmatprep.subr.bf16.mxu0 0
        %2004 = vmatpush1.bf16.msra.mxu0 0
        %2005 = vmatprep.subr.bf16.mxu0 0
        %2006 = vmatpush1.bf16.msra.mxu0 0
        %2007 = vmatprep.subr.bf16.mxu0 0
        %2008 = vmatpush1.bf16.msra.mxu0 0
        %2009 = vmatprep.subr.bf16.mxu0 0
        %2010 = vmatpush1.bf16.msra.mxu0 0
        %2011 = vmatprep.subr.bf16.mxu0 0
        %2012 = vmatpush1.bf16.msra.mxu0 0
        %2013 = vmatprep.subr.bf16.mxu0 0
        %2014 = vmatpush1.bf16.msra.mxu0 0
        %2015 = vmatprep.mubr.bf16.mxu0 0
        %2016 = vmatmul.mubr.bf16.gmra.mrb[0].mxu0 %v1912
        %v2017 = vpop.f32.mrb[0].mxu0
        %v2018 = vadd.f32 0.0, %v2017
        %v2019 = vpop.f32.mrb[0].mxu0
        %v2020 = vpop.f32.mrb[0].mxu0
        %v2021 = vadd.f32 0.0, %v2020
        %v2022 = vpop.f32.mrb[0].mxu0
        %2023 = vmatprep.mubr.bf16.mxu0 0
        %2024 = vmatmul.mubr.bf16.gmra.mrb[0].mxu0 %v1915
        %v2025 = vpop.f32.mrb[0].mxu0
        %v2026 = vadd.f32 0.0, %v2025
        %v2027 = vpop.f32.mrb[0].mxu0
        %v2028 = vpop.f32.mrb[0].mxu0
        %v2029 = vadd.f32 0.0, %v2028
        %v2030 = vpop.f32.mrb[0].mxu0
        %2031 = vmatprep.mubr.bf16.mxu0 0
        %2032 = vmatmul.mubr.bf16.gmra.mrb[0].mxu0 %v1918
        %v2033 = vpop.f32.mrb[0].mxu0
        %v2034 = vadd.f32 0.0, %v2033
        %v2035 = vpop.f32.mrb[0].mxu0
        %v2036 = vpop.f32.mrb[0].mxu0
        %v2037 = vadd.f32 0.0, %v2036
        %v2038 = vpop.f32.mrb[0].mxu0
        %2039 = vmatprep.mubr.bf16.mxu0 0
        %2040 = vmatmul.mubr.bf16.gmra.mrb[0].mxu0 %v1921
        %v2041 = vpop.f32.mrb[0].mxu0
        %v2042 = vadd.f32 0.0, %v2041
        %v2043 = vpop.f32.mrb[0].mxu0
        %v2044 = vpop.f32.mrb[0].mxu0
        %v2045 = vadd.f32 0.0, %v2044
        %v2046 = vpop.f32.mrb[0].mxu0
        %2047 = vmatprep.mubr.bf16.mxu0 0
        %2048 = vmatmul.mubr.bf16.gmra.mrb[0].mxu0 %v1924
        %v2049 = vpop.f32.mrb[0].mxu0
        %v2050 = vadd.f32 0.0, %v2049
        %v2051 = vpop.f32.mrb[0].mxu0
        %v2052 = vpop.f32.mrb[0].mxu0
        %v2053 = vadd.f32 0.0, %v2052
        %v2054 = vpop.f32.mrb[0].mxu0
        %2055 = vmatprep.mubr.bf16.mxu0 0
        %2056 = vmatmul.mubr.bf16.gmra.mrb[0].mxu0 %v1927
        %v2057 = vpop.f32.mrb[0].mxu0
        %v2058 = vadd.f32 0.0, %v2057
        %v2059 = vpop.f32.mrb[0].mxu0
        %v2060 = vpop.f32.mrb[0].mxu0
        %v2061 = vadd.f32 0.0, %v2060
        %v2062 = vpop.f32.mrb[0].mxu0
        %2063 = vmatprep.mubr.bf16.mxu0 0
        %2064 = vmatmul.mubr.bf16.gmra.mrb[0].mxu0 %v1930
        %v2065 = vpop.f32.mrb[0].mxu0
        %v2066 = vadd.f32 0.0, %v2065
        %v2067 = vpop.f32.mrb[0].mxu0
        %v2068 = vpop.f32.mrb[0].mxu0
        %v2069 = vadd.f32 0.0, %v2068
        %v2070 = vpop.f32.mrb[0].mxu0
        %2071 = vmatprep.mubr.bf16.mxu0 0
        %2072 = vmatmul.mubr.bf16.gmra.mrb[0].mxu0 %v1933
        %v2073 = vpop.f32.mrb[0].mxu0
        %v2074 = vadd.f32 0.0, %v2073
        %v2075 = vpop.f32.mrb[0].mxu0
        %v2076 = vpop.f32.mrb[0].mxu0
        %v2077 = vadd.f32 0.0, %v2076
        %v2078 = vpop.f32.mrb[0].mxu0
        %2079 = vmatprep.mubr.bf16.mxu0 0
        %2080 = vmatmul.mubr.bf16.gmra.mrb[0].mxu0 %v1936
        %v2081 = vpop.f32.mrb[0].mxu0
        %v2082 = vadd.f32 0.0, %v2081
        %v2083 = vpop.f32.mrb[0].mxu0
        %v2084 = vpop.f32.mrb[0].mxu0
        %v2085 = vadd.f32 0.0, %v2084
        %v2086 = vpop.f32.mrb[0].mxu0
        %2087 = vmatprep.mubr.bf16.mxu0 0
        %2088 = vmatmul.mubr.bf16.gmra.mrb[0].mxu0 %v1939
        %v2089 = vpop.f32.mrb[0].mxu0
        %v2090 = vadd.f32 0.0, %v2089
        %v2091 = vpop.f32.mrb[0].mxu0
        %v2092 = vpop.f32.mrb[0].mxu0
        %v2093 = vadd.f32 0.0, %v2092
        %v2094 = vpop.f32.mrb[0].mxu0
        %2095 = vmatprep.mubr.bf16.mxu0 0
        %2096 = vmatmul.mubr.bf16.gmra.mrb[0].mxu0 %v1942
        %v2097 = vpop.f32.mrb[0].mxu0
        %v2098 = vadd.f32 0.0, %v2097
        %v2099 = vpop.f32.mrb[0].mxu0
        %v2100 = vpop.f32.mrb[0].mxu0
        %v2101 = vadd.f32 0.0, %v2100
        %v2102 = vpop.f32.mrb[0].mxu0
        %2103 = vmatprep.mubr.bf16.mxu0 0
        %2104 = vmatmul.mubr.bf16.gmra.mrb[0].mxu0 %v1945
        %v2105 = vpop.f32.mrb[0].mxu0
        %v2106 = vadd.f32 0.0, %v2105
        %v2107 = vpop.f32.mrb[0].mxu0
        %v2108 = vpop.f32.mrb[0].mxu0
        %v2109 = vadd.f32 0.0, %v2108
        %v2110 = vpop.f32.mrb[0].mxu0
        %2111 = vmatprep.mubr.bf16.mxu0 0
        %2112 = vmatmul.mubr.bf16.gmra.mrb[0].mxu0 %v1948
        %v2113 = vpop.f32.mrb[0].mxu0
        %v2114 = vadd.f32 0.0, %v2113
        %v2115 = vpop.f32.mrb[0].mxu0
        %v2116 = vpop.f32.mrb[0].mxu0
        %v2117 = vadd.f32 0.0, %v2116
        %v2118 = vpop.f32.mrb[0].mxu0
        %2119 = vmatprep.mubr.bf16.mxu0 0
        %2120 = vmatmul.mubr.bf16.gmra.mrb[0].mxu0 %v1951
        %v2121 = vpop.f32.mrb[0].mxu0
        %v2122 = vadd.f32 0.0, %v2121
        %v2123 = vpop.f32.mrb[0].mxu0
        %v2124 = vpop.f32.mrb[0].mxu0
        %v2125 = vadd.f32 0.0, %v2124
        %v2126 = vpop.f32.mrb[0].mxu0
        %2127 = vmatprep.mubr.bf16.mxu0 0
        %2128 = vmatmul.mubr.bf16.gmra.mrb[0].mxu0 %v1954
        %v2129 = vpop.f32.mrb[0].mxu0
        %v2130 = vadd.f32 0.0, %v2129
        %v2131 = vpop.f32.mrb[0].mxu0
        %v2132 = vpop.f32.mrb[0].mxu0
        %v2133 = vadd.f32 0.0, %v2132
        %v2134 = vpop.f32.mrb[0].mxu0
        %2135 = vmatprep.mubr.bf16.mxu0 0
        %2136 = vmatmul.mubr.bf16.gmra.mrb[0].mxu0 %v1957
        %v2137 = vpop.f32.mrb[0].mxu0
        %v2138 = vadd.f32 0.0, %v2137
        %v2139 = vpop.f32.mrb[0].mxu0
        %v2140 = vpop.f32.mrb[0].mxu0
        %v2141 = vadd.f32 0.0, %v2140
        %v2142 = vpop.f32.mrb[0].mxu0
        %2143 = vmatprep.mubr.bf16.mxu0 0
        %2144 = vmatmul.mubr.bf16.gmra.mrb[0].mxu0 %v1960
        %v2145 = vpop.f32.mrb[0].mxu0
        %v2146 = vadd.f32 0.0, %v2145
        %v2147 = vpop.f32.mrb[0].mxu0
        %v2148 = vpop.f32.mrb[0].mxu0
        %v2149 = vadd.f32 0.0, %v2148
        %v2150 = vpop.f32.mrb[0].mxu0
        %2151 = vmatprep.mubr.bf16.mxu0 0
        %2152 = vmatmul.mubr.bf16.gmra.mrb[0].mxu0 %v1963
        %v2153 = vpop.f32.mrb[0].mxu0
        %v2154 = vadd.f32 0.0, %v2153
        %v2155 = vpop.f32.mrb[0].mxu0
        %v2156 = vpop.f32.mrb[0].mxu0
        %v2157 = vadd.f32 0.0, %v2156
        %v2158 = vpop.f32.mrb[0].mxu0
        %2159 = vmatprep.mubr.bf16.mxu0 0
        %2160 = vmatmul.mubr.bf16.gmra.mrb[0].mxu0 %v1966
        %v2161 = vpop.f32.mrb[0].mxu0
        %v2162 = vadd.f32 0.0, %v2161
        %v2163 = vpop.f32.mrb[0].mxu0
        %v2164 = vpop.f32.mrb[0].mxu0
        %v2165 = vadd.f32 0.0, %v2164
        %v2166 = vpop.f32.mrb[0].mxu0
        %2167 = vmatprep.mubr.bf16.mxu0 0
        %2168 = vmatmul.mubr.bf16.gmra.mrb[0].mxu0 %v1969
        %v2169 = vpop.f32.mrb[0].mxu0
        %v2170 = vadd.f32 0.0, %v2169
        %v2171 = vpop.f32.mrb[0].mxu0
        %v2172 = vpop.f32.mrb[0].mxu0
        %v2173 = vadd.f32 0.0, %v2172
        %v2174 = vpop.f32.mrb[0].mxu0
        %2175 = vmatprep.mubr.bf16.mxu0 0
        %2176 = vmatmul.mubr.bf16.gmra.mrb[0].mxu0 %v1972
        %v2177 = vpop.f32.mrb[0].mxu0
        %v2178 = vadd.f32 0.0, %v2177
        %v2179 = vpop.f32.mrb[0].mxu0
        %v2180 = vpop.f32.mrb[0].mxu0
        %v2181 = vadd.f32 0.0, %v2180
        %v2182 = vpop.f32.mrb[0].mxu0
        %2183 = vmatprep.mubr.bf16.mxu0 0
        %2184 = vmatmul.mubr.bf16.gmra.mrb[0].mxu0 %v1975
        %v2185 = vpop.f32.mrb[0].mxu0
        %v2186 = vadd.f32 0.0, %v2185
        %v2187 = vpop.f32.mrb[0].mxu0
        %v2188 = vpop.f32.mrb[0].mxu0
        %v2189 = vadd.f32 0.0, %v2188
        %v2190 = vpop.f32.mrb[0].mxu0
        %2191 = vmatprep.mubr.bf16.mxu0 0
        %2192 = vmatmul.mubr.bf16.gmra.mrb[0].mxu0 %v1978
        %v2193 = vpop.f32.mrb[0].mxu0
        %v2194 = vadd.f32 0.0, %v2193
        %v2195 = vpop.f32.mrb[0].mxu0
        %v2196 = vpop.f32.mrb[0].mxu0
        %v2197 = vadd.f32 0.0, %v2196
        %v2198 = vpop.f32.mrb[0].mxu0
        %2199 = vmatprep.mubr.bf16.mxu0 0
        %2200 = vmatmul.mubr.bf16.gmra.mrb[0].mxu0 %v1981
        %v2201 = vpop.f32.mrb[0].mxu0
        %v2202 = vadd.f32 0.0, %v2201
        %v2203 = vpop.f32.mrb[0].mxu0
        %v2204 = vpop.f32.mrb[0].mxu0
        %v2205 = vadd.f32 0.0, %v2204
        %v2206 = vpop.f32.mrb[0].mxu0
        %2207 = vdwg.mxu0
        %v2208 = vadd.f32 %v1780, %v2018
        %v2209 = vadd.f32 %v1781, %v2021
        %v2210 = vadd.f32 %v1782, %v2026
        %v2211 = vadd.f32 %v1783, %v2029
        %v2212 = vadd.f32 %v1784, %v2034
        %v2213 = vadd.f32 %v1785, %v2037
        %v2214 = vadd.f32 %v1786, %v2042
        %v2215 = vadd.f32 %v1787, %v2045
        %v2216 = vadd.f32 %v1788, %v2050
        %v2217 = vadd.f32 %v1789, %v2053
        %v2218 = vadd.f32 %v1790, %v2058
        %v2219 = vadd.f32 %v1791, %v2061
        %v2220 = vadd.f32 %v1792, %v2066
        %v2221 = vadd.f32 %v1793, %v2069
        %v2222 = vadd.f32 %v1794, %v2074
        %v2223 = vadd.f32 %v1795, %v2077
        %v2224 = vadd.f32 %v1796, %v2082
        %v2225 = vadd.f32 %v1797, %v2085
        %v2226 = vadd.f32 %v1798, %v2090
        %v2227 = vadd.f32 %v1799, %v2093
        %v2228 = vadd.f32 %v1800, %v2098
        %v2229 = vadd.f32 %v1801, %v2101
        %v2230 = vadd.f32 %v1802, %v2106
        %v2231 = vadd.f32 %v1803, %v2109
        %v2232 = vadd.f32 %v1804, %v2114
        %v2233 = vadd.f32 %v1805, %v2117
        %v2234 = vadd.f32 %v1806, %v2122
        %v2235 = vadd.f32 %v1807, %v2125
        %v2236 = vadd.f32 %v1808, %v2130
        %v2237 = vadd.f32 %v1809, %v2133
        %v2238 = vadd.f32 %v1810, %v2138
        %v2239 = vadd.f32 %v1811, %v2141
        %v2240 = vadd.f32 %v1812, %v2146
        %v2241 = vadd.f32 %v1813, %v2149
        %v2242 = vadd.f32 %v1814, %v2154
        %v2243 = vadd.f32 %v1815, %v2157
        %v2244 = vadd.f32 %v1816, %v2162
        %v2245 = vadd.f32 %v1817, %v2165
        %v2246 = vadd.f32 %v1818, %v2170
        %v2247 = vadd.f32 %v1819, %v2173
        %v2248 = vadd.f32 %v1820, %v2178
        %v2249 = vadd.f32 %v1821, %v2181
        %v2250 = vadd.f32 %v1822, %v2186
        %v2251 = vadd.f32 %v1823, %v2189
        %v2252 = vadd.f32 %v1824, %v2194
        %v2253 = vadd.f32 %v1825, %v2197
        %v2254 = vadd.f32 %v1826, %v2202
        %v2255 = vadd.f32 %v1827, %v2205
        %s2256 = sadd.s32 %s212, 20
        %s2257 = scalar_lea.vmem %s209, %s2256
        %v2258 = vld [vmem:[%s2257] sm:$0xff]
        %v2259 = vld [vmem:[%s2257 + $0x8] sm:$0xff]
        %v2260 = vld [vmem:[%s2257 + $0x10] sm:$0xff]
        %v2261 = vld [vmem:[%s2257 + $0x18] sm:$0xff]
        %v2262 = vld [vmem:[%s2257 + $0x20] sm:$0xff]
        %v2263 = vld [vmem:[%s2257 + $0x28] sm:$0xff]
        %v2264 = vld [vmem:[%s2257 + $0x30] sm:$0xff]
        %v2265 = vld [vmem:[%s2257 + $0x38] sm:$0xff]
        %v2266 = vld [vmem:[%s2257 + $0x40] sm:$0xff]
        %v2267 = vld [vmem:[%s2257 + $0x48] sm:$0xff]
        %v2268 = vld [vmem:[%s2257 + $0x50] sm:$0xff]
        %v2269 = vld [vmem:[%s2257 + $0x58] sm:$0xff]
        %v2270 = vld [vmem:[%s2257 + $0x60] sm:$0xff]
        %v2271 = vld [vmem:[%s2257 + $0x68] sm:$0xff]
        %v2272 = vld [vmem:[%s2257 + $0x70] sm:$0xff]
        %v2273 = vld [vmem:[%s2257 + $0x78] sm:$0xff]
        %v2274 = vld [vmem:[%s2257 + $0x80] sm:$0xff]
        %v2275 = vld [vmem:[%s2257 + $0x88] sm:$0xff]
        %v2276 = vld [vmem:[%s2257 + $0x90] sm:$0xff]
        %v2277 = vld [vmem:[%s2257 + $0x98] sm:$0xff]
        %v2278 = vld [vmem:[%s2257 + $0xa0] sm:$0xff]
        %v2279 = vld [vmem:[%s2257 + $0xa8] sm:$0xff]
        %v2280 = vld [vmem:[%s2257 + $0xb0] sm:$0xff]
        %v2281 = vld [vmem:[%s2257 + $0xb8] sm:$0xff]
        %v2282 = vld [vmem:[%s2257 + $0xc0] sm:$0xff]
        %v2283 = vld [vmem:[%s2257 + $0xc8] sm:$0xff]
        %v2284 = vld [vmem:[%s2257 + $0xd0] sm:$0xff]
        %v2285 = vld [vmem:[%s2257 + $0xd8] sm:$0xff]
        %v2286 = vld [vmem:[%s2257 + $0xe0] sm:$0xff]
        %v2287 = vld [vmem:[%s2257 + $0xe8] sm:$0xff]
        %v2288 = vld [vmem:[%s2257 + $0xf0] sm:$0xff]
        %v2289 = vld [vmem:[%s2257 + $0xf8] sm:$0xff]
        %v2290 = vld [vmem:[%s2257 + $0x100] sm:$0xff]
        %v2291 = vld [vmem:[%s2257 + $0x108] sm:$0xff]
        %v2292 = vld [vmem:[%s2257 + $0x110] sm:$0xff]
        %v2293 = vld [vmem:[%s2257 + $0x118] sm:$0xff]
        %v2294 = vld [vmem:[%s2257 + $0x120] sm:$0xff]
        %v2295 = vld [vmem:[%s2257 + $0x128] sm:$0xff]
        %v2296 = vld [vmem:[%s2257 + $0x130] sm:$0xff]
        %v2297 = vld [vmem:[%s2257 + $0x138] sm:$0xff]
        %v2298 = vld [vmem:[%s2257 + $0x140] sm:$0xff]
        %v2299 = vld [vmem:[%s2257 + $0x148] sm:$0xff]
        %v2300 = vld [vmem:[%s2257 + $0x150] sm:$0xff]
        %v2301 = vld [vmem:[%s2257 + $0x158] sm:$0xff]
        %v2302 = vld [vmem:[%s2257 + $0x160] sm:$0xff]
        %v2303 = vld [vmem:[%s2257 + $0x168] sm:$0xff]
        %v2304 = vld [vmem:[%s2257 + $0x170] sm:$0xff]
        %v2305 = vld [vmem:[%s2257 + $0x178] sm:$0xff]
        %v2306 = vpack.c.bf16 %v2259, %v2258
        %v2307 = vpack.c.bf16 %v2261, %v2260
        %v2308 = vpack.c.bf16 %v2263, %v2262
        %v2309 = vpack.c.bf16 %v2265, %v2264
        %v2310 = vpack.c.bf16 %v2267, %v2266
        %v2311 = vpack.c.bf16 %v2269, %v2268
        %v2312 = vpack.c.bf16 %v2271, %v2270
        %v2313 = vpack.c.bf16 %v2273, %v2272
        %v2314 = vpack.c.bf16 %v2275, %v2274
        %v2315 = vpack.c.bf16 %v2277, %v2276
        %v2316 = vpack.c.bf16 %v2279, %v2278
        %v2317 = vpack.c.bf16 %v2281, %v2280
        %v2318 = vpack.c.bf16 %v2283, %v2282
        %v2319 = vpack.c.bf16 %v2285, %v2284
        %v2320 = vpack.c.bf16 %v2287, %v2286
        %v2321 = vpack.c.bf16 %v2289, %v2288
        %v2322 = vpack.c.bf16 %v2291, %v2290
        %v2323 = vpack.c.bf16 %v2293, %v2292
        %v2324 = vpack.c.bf16 %v2295, %v2294
        %v2325 = vpack.c.bf16 %v2297, %v2296
        %v2326 = vpack.c.bf16 %v2299, %v2298
        %v2327 = vpack.c.bf16 %v2301, %v2300
        %v2328 = vpack.c.bf16 %v2303, %v2302
        %v2329 = vpack.c.bf16 %v2305, %v2304
        %s2330 = scalar_lea.vmem %s1, 40
        %v2331 = vld [vmem:[%s2330] sm:$0xf]
        %v2332 = vld [vmem:[%s2330 + $0x4] sm:$0xf]
        %v2335 = vunpack.c.l.b16 %v2331
        %v2336 = vunpack.c.l.b16 %v2332
        %v2337 = vpack.c.b16 %v2336, %v2335
        %v2340 = vsel %vm371, %v2306, 0
        %v2343 = vsel %vm371, %v2307, 0
        %v2346 = vsel %vm371, %v2308, 0
        %v2349 = vsel %vm371, %v2309, 0
        %v2352 = vsel %vm371, %v2310, 0
        %v2355 = vsel %vm371, %v2311, 0
        %v2358 = vsel %vm371, %v2312, 0
        %v2361 = vsel %vm371, %v2313, 0
        %v2364 = vsel %vm371, %v2314, 0
        %v2367 = vsel %vm371, %v2315, 0
        %v2370 = vsel %vm371, %v2316, 0
        %v2373 = vsel %vm371, %v2317, 0
        %v2376 = vsel %vm371, %v2318, 0
        %v2379 = vsel %vm371, %v2319, 0
        %v2382 = vsel %vm371, %v2320, 0
        %v2385 = vsel %vm371, %v2321, 0
        %v2388 = vsel %vm371, %v2322, 0
        %v2391 = vsel %vm371, %v2323, 0
        %v2394 = vsel %vm371, %v2324, 0
        %v2397 = vsel %vm371, %v2325, 0
        %v2400 = vsel %vm371, %v2326, 0
        %v2403 = vsel %vm371, %v2327, 0
        %v2406 = vsel %vm371, %v2328, 0
        %v2409 = vsel %vm371, %v2329, 0
        %2411 = vmatprep.subr.bf16.mxu0 0
        %2412 = vmatpush1.bf16.msra.mxu0 %v2337
        %2413 = vmatprep.subr.bf16.mxu0 0
        %2414 = vmatpush1.bf16.msra.mxu0 0
        %2415 = vmatprep.subr.bf16.mxu0 0
        %2416 = vmatpush1.bf16.msra.mxu0 0
        %2417 = vmatprep.subr.bf16.mxu0 0
        %2418 = vmatpush1.bf16.msra.mxu0 0
        %2419 = vmatprep.subr.bf16.mxu0 0
        %2420 = vmatpush1.bf16.msra.mxu0 0
        %2421 = vmatprep.subr.bf16.mxu0 0
        %2422 = vmatpush1.bf16.msra.mxu0 0
        %2423 = vmatprep.subr.bf16.mxu0 0
        %2424 = vmatpush1.bf16.msra.mxu0 0
        %2425 = vmatprep.subr.bf16.mxu0 0
        %2426 = vmatpush1.bf16.msra.mxu0 0
        %2427 = vmatprep.subr.bf16.mxu0 0
        %2428 = vmatpush1.bf16.msra.mxu0 0
        %2429 = vmatprep.subr.bf16.mxu0 0
        %2430 = vmatpush1.bf16.msra.mxu0 0
        %2431 = vmatprep.subr.bf16.mxu0 0
        %2432 = vmatpush1.bf16.msra.mxu0 0
        %2433 = vmatprep.subr.bf16.mxu0 0
        %2434 = vmatpush1.bf16.msra.mxu0 0
        %2435 = vmatprep.subr.bf16.mxu0 0
        %2436 = vmatpush1.bf16.msra.mxu0 0
        %2437 = vmatprep.subr.bf16.mxu0 0
        %2438 = vmatpush1.bf16.msra.mxu0 0
        %2439 = vmatprep.subr.bf16.mxu0 0
        %2440 = vmatpush1.bf16.msra.mxu0 0
        %2441 = vmatprep.subr.bf16.mxu0 0
        %2442 = vmatpush1.bf16.msra.mxu0 0
        %2443 = vmatprep.mubr.bf16.mxu0 0
        %2444 = vmatmul.mubr.bf16.gmra.mrb[0].mxu0 %v2340
        %v2445 = vpop.f32.mrb[0].mxu0
        %v2446 = vadd.f32 0.0, %v2445
        %v2447 = vpop.f32.mrb[0].mxu0
        %v2448 = vpop.f32.mrb[0].mxu0
        %v2449 = vadd.f32 0.0, %v2448
        %v2450 = vpop.f32.mrb[0].mxu0
        %2451 = vmatprep.mubr.bf16.mxu0 0
        %2452 = vmatmul.mubr.bf16.gmra.mrb[0].mxu0 %v2343
        %v2453 = vpop.f32.mrb[0].mxu0
        %v2454 = vadd.f32 0.0, %v2453
        %v2455 = vpop.f32.mrb[0].mxu0
        %v2456 = vpop.f32.mrb[0].mxu0
        %v2457 = vadd.f32 0.0, %v2456
        %v2458 = vpop.f32.mrb[0].mxu0
        %2459 = vmatprep.mubr.bf16.mxu0 0
        %2460 = vmatmul.mubr.bf16.gmra.mrb[0].mxu0 %v2346
        %v2461 = vpop.f32.mrb[0].mxu0
        %v2462 = vadd.f32 0.0, %v2461
        %v2463 = vpop.f32.mrb[0].mxu0
        %v2464 = vpop.f32.mrb[0].mxu0
        %v2465 = vadd.f32 0.0, %v2464
        %v2466 = vpop.f32.mrb[0].mxu0
        %2467 = vmatprep.mubr.bf16.mxu0 0
        %2468 = vmatmul.mubr.bf16.gmra.mrb[0].mxu0 %v2349
        %v2469 = vpop.f32.mrb[0].mxu0
        %v2470 = vadd.f32 0.0, %v2469
        %v2471 = vpop.f32.mrb[0].mxu0
        %v2472 = vpop.f32.mrb[0].mxu0
        %v2473 = vadd.f32 0.0, %v2472
        %v2474 = vpop.f32.mrb[0].mxu0
        %2475 = vmatprep.mubr.bf16.mxu0 0
        %2476 = vmatmul.mubr.bf16.gmra.mrb[0].mxu0 %v2352
        %v2477 = vpop.f32.mrb[0].mxu0
        %v2478 = vadd.f32 0.0, %v2477
        %v2479 = vpop.f32.mrb[0].mxu0
        %v2480 = vpop.f32.mrb[0].mxu0
        %v2481 = vadd.f32 0.0, %v2480
        %v2482 = vpop.f32.mrb[0].mxu0
        %2483 = vmatprep.mubr.bf16.mxu0 0
        %2484 = vmatmul.mubr.bf16.gmra.mrb[0].mxu0 %v2355
        %v2485 = vpop.f32.mrb[0].mxu0
        %v2486 = vadd.f32 0.0, %v2485
        %v2487 = vpop.f32.mrb[0].mxu0
        %v2488 = vpop.f32.mrb[0].mxu0
        %v2489 = vadd.f32 0.0, %v2488
        %v2490 = vpop.f32.mrb[0].mxu0
        %2491 = vmatprep.mubr.bf16.mxu0 0
        %2492 = vmatmul.mubr.bf16.gmra.mrb[0].mxu0 %v2358
        %v2493 = vpop.f32.mrb[0].mxu0
        %v2494 = vadd.f32 0.0, %v2493
        %v2495 = vpop.f32.mrb[0].mxu0
        %v2496 = vpop.f32.mrb[0].mxu0
        %v2497 = vadd.f32 0.0, %v2496
        %v2498 = vpop.f32.mrb[0].mxu0
        %2499 = vmatprep.mubr.bf16.mxu0 0
        %2500 = vmatmul.mubr.bf16.gmra.mrb[0].mxu0 %v2361
        %v2501 = vpop.f32.mrb[0].mxu0
        %v2502 = vadd.f32 0.0, %v2501
        %v2503 = vpop.f32.mrb[0].mxu0
        %v2504 = vpop.f32.mrb[0].mxu0
        %v2505 = vadd.f32 0.0, %v2504
        %v2506 = vpop.f32.mrb[0].mxu0
        %2507 = vmatprep.mubr.bf16.mxu0 0
        %2508 = vmatmul.mubr.bf16.gmra.mrb[0].mxu0 %v2364
        %v2509 = vpop.f32.mrb[0].mxu0
        %v2510 = vadd.f32 0.0, %v2509
        %v2511 = vpop.f32.mrb[0].mxu0
        %v2512 = vpop.f32.mrb[0].mxu0
        %v2513 = vadd.f32 0.0, %v2512
        %v2514 = vpop.f32.mrb[0].mxu0
        %2515 = vmatprep.mubr.bf16.mxu0 0
        %2516 = vmatmul.mubr.bf16.gmra.mrb[0].mxu0 %v2367
        %v2517 = vpop.f32.mrb[0].mxu0
        %v2518 = vadd.f32 0.0, %v2517
        %v2519 = vpop.f32.mrb[0].mxu0
        %v2520 = vpop.f32.mrb[0].mxu0
        %v2521 = vadd.f32 0.0, %v2520
        %v2522 = vpop.f32.mrb[0].mxu0
        %2523 = vmatprep.mubr.bf16.mxu0 0
        %2524 = vmatmul.mubr.bf16.gmra.mrb[0].mxu0 %v2370
        %v2525 = vpop.f32.mrb[0].mxu0
        %v2526 = vadd.f32 0.0, %v2525
        %v2527 = vpop.f32.mrb[0].mxu0
        %v2528 = vpop.f32.mrb[0].mxu0
        %v2529 = vadd.f32 0.0, %v2528
        %v2530 = vpop.f32.mrb[0].mxu0
        %2531 = vmatprep.mubr.bf16.mxu0 0
        %2532 = vmatmul.mubr.bf16.gmra.mrb[0].mxu0 %v2373
        %v2533 = vpop.f32.mrb[0].mxu0
        %v2534 = vadd.f32 0.0, %v2533
        %v2535 = vpop.f32.mrb[0].mxu0
        %v2536 = vpop.f32.mrb[0].mxu0
        %v2537 = vadd.f32 0.0, %v2536
        %v2538 = vpop.f32.mrb[0].mxu0
        %2539 = vmatprep.mubr.bf16.mxu0 0
        %2540 = vmatmul.mubr.bf16.gmra.mrb[0].mxu0 %v2376
        %v2541 = vpop.f32.mrb[0].mxu0
        %v2542 = vadd.f32 0.0, %v2541
        %v2543 = vpop.f32.mrb[0].mxu0
        %v2544 = vpop.f32.mrb[0].mxu0
        %v2545 = vadd.f32 0.0, %v2544
        %v2546 = vpop.f32.mrb[0].mxu0
        %2547 = vmatprep.mubr.bf16.mxu0 0
        %2548 = vmatmul.mubr.bf16.gmra.mrb[0].mxu0 %v2379
        %v2549 = vpop.f32.mrb[0].mxu0
        %v2550 = vadd.f32 0.0, %v2549
        %v2551 = vpop.f32.mrb[0].mxu0
        %v2552 = vpop.f32.mrb[0].mxu0
        %v2553 = vadd.f32 0.0, %v2552
        %v2554 = vpop.f32.mrb[0].mxu0
        %2555 = vmatprep.mubr.bf16.mxu0 0
        %2556 = vmatmul.mubr.bf16.gmra.mrb[0].mxu0 %v2382
        %v2557 = vpop.f32.mrb[0].mxu0
        %v2558 = vadd.f32 0.0, %v2557
        %v2559 = vpop.f32.mrb[0].mxu0
        %v2560 = vpop.f32.mrb[0].mxu0
        %v2561 = vadd.f32 0.0, %v2560
        %v2562 = vpop.f32.mrb[0].mxu0
        %2563 = vmatprep.mubr.bf16.mxu0 0
        %2564 = vmatmul.mubr.bf16.gmra.mrb[0].mxu0 %v2385
        %v2565 = vpop.f32.mrb[0].mxu0
        %v2566 = vadd.f32 0.0, %v2565
        %v2567 = vpop.f32.mrb[0].mxu0
        %v2568 = vpop.f32.mrb[0].mxu0
        %v2569 = vadd.f32 0.0, %v2568
        %v2570 = vpop.f32.mrb[0].mxu0
        %2571 = vmatprep.mubr.bf16.mxu0 0
        %2572 = vmatmul.mubr.bf16.gmra.mrb[0].mxu0 %v2388
        %v2573 = vpop.f32.mrb[0].mxu0
        %v2574 = vadd.f32 0.0, %v2573
        %v2575 = vpop.f32.mrb[0].mxu0
        %v2576 = vpop.f32.mrb[0].mxu0
        %v2577 = vadd.f32 0.0, %v2576
        %v2578 = vpop.f32.mrb[0].mxu0
        %2579 = vmatprep.mubr.bf16.mxu0 0
        %2580 = vmatmul.mubr.bf16.gmra.mrb[0].mxu0 %v2391
        %v2581 = vpop.f32.mrb[0].mxu0
        %v2582 = vadd.f32 0.0, %v2581
        %v2583 = vpop.f32.mrb[0].mxu0
        %v2584 = vpop.f32.mrb[0].mxu0
        %v2585 = vadd.f32 0.0, %v2584
        %v2586 = vpop.f32.mrb[0].mxu0
        %2587 = vmatprep.mubr.bf16.mxu0 0
        %2588 = vmatmul.mubr.bf16.gmra.mrb[0].mxu0 %v2394
        %v2589 = vpop.f32.mrb[0].mxu0
        %v2590 = vadd.f32 0.0, %v2589
        %v2591 = vpop.f32.mrb[0].mxu0
        %v2592 = vpop.f32.mrb[0].mxu0
        %v2593 = vadd.f32 0.0, %v2592
        %v2594 = vpop.f32.mrb[0].mxu0
        %2595 = vmatprep.mubr.bf16.mxu0 0
        %2596 = vmatmul.mubr.bf16.gmra.mrb[0].mxu0 %v2397
        %v2597 = vpop.f32.mrb[0].mxu0
        %v2598 = vadd.f32 0.0, %v2597
        %v2599 = vpop.f32.mrb[0].mxu0
        %v2600 = vpop.f32.mrb[0].mxu0
        %v2601 = vadd.f32 0.0, %v2600
        %v2602 = vpop.f32.mrb[0].mxu0
        %2603 = vmatprep.mubr.bf16.mxu0 0
        %2604 = vmatmul.mubr.bf16.gmra.mrb[0].mxu0 %v2400
        %v2605 = vpop.f32.mrb[0].mxu0
        %v2606 = vadd.f32 0.0, %v2605
        %v2607 = vpop.f32.mrb[0].mxu0
        %v2608 = vpop.f32.mrb[0].mxu0
        %v2609 = vadd.f32 0.0, %v2608
        %v2610 = vpop.f32.mrb[0].mxu0
        %2611 = vmatprep.mubr.bf16.mxu0 0
        %2612 = vmatmul.mubr.bf16.gmra.mrb[0].mxu0 %v2403
        %v2613 = vpop.f32.mrb[0].mxu0
        %v2614 = vadd.f32 0.0, %v2613
        %v2615 = vpop.f32.mrb[0].mxu0
        %v2616 = vpop.f32.mrb[0].mxu0
        %v2617 = vadd.f32 0.0, %v2616
        %v2618 = vpop.f32.mrb[0].mxu0
        %2619 = vmatprep.mubr.bf16.mxu0 0
        %2620 = vmatmul.mubr.bf16.gmra.mrb[0].mxu0 %v2406
        %v2621 = vpop.f32.mrb[0].mxu0
        %v2622 = vadd.f32 0.0, %v2621
        %v2623 = vpop.f32.mrb[0].mxu0
        %v2624 = vpop.f32.mrb[0].mxu0
        %v2625 = vadd.f32 0.0, %v2624
        %v2626 = vpop.f32.mrb[0].mxu0
        %2627 = vmatprep.mubr.bf16.mxu0 0
        %2628 = vmatmul.mubr.bf16.gmra.mrb[0].mxu0 %v2409
        %v2629 = vpop.f32.mrb[0].mxu0
        %v2630 = vadd.f32 0.0, %v2629
        %v2631 = vpop.f32.mrb[0].mxu0
        %v2632 = vpop.f32.mrb[0].mxu0
        %v2633 = vadd.f32 0.0, %v2632
        %v2634 = vpop.f32.mrb[0].mxu0
        %2635 = vdwg.mxu0
        %v2636 = vadd.f32 %v2208, %v2446
        %v2637 = vadd.f32 %v2209, %v2449
        %v2638 = vadd.f32 %v2210, %v2454
        %v2639 = vadd.f32 %v2211, %v2457
        %v2640 = vadd.f32 %v2212, %v2462
        %v2641 = vadd.f32 %v2213, %v2465
        %v2642 = vadd.f32 %v2214, %v2470
        %v2643 = vadd.f32 %v2215, %v2473
        %v2644 = vadd.f32 %v2216, %v2478
        %v2645 = vadd.f32 %v2217, %v2481
        %v2646 = vadd.f32 %v2218, %v2486
        %v2647 = vadd.f32 %v2219, %v2489
        %v2648 = vadd.f32 %v2220, %v2494
        %v2649 = vadd.f32 %v2221, %v2497
        %v2650 = vadd.f32 %v2222, %v2502
        %v2651 = vadd.f32 %v2223, %v2505
        %v2652 = vadd.f32 %v2224, %v2510
        %v2653 = vadd.f32 %v2225, %v2513
        %v2654 = vadd.f32 %v2226, %v2518
        %v2655 = vadd.f32 %v2227, %v2521
        %v2656 = vadd.f32 %v2228, %v2526
        %v2657 = vadd.f32 %v2229, %v2529
        %v2658 = vadd.f32 %v2230, %v2534
        %v2659 = vadd.f32 %v2231, %v2537
        %v2660 = vadd.f32 %v2232, %v2542
        %v2661 = vadd.f32 %v2233, %v2545
        %v2662 = vadd.f32 %v2234, %v2550
        %v2663 = vadd.f32 %v2235, %v2553
        %v2664 = vadd.f32 %v2236, %v2558
        %v2665 = vadd.f32 %v2237, %v2561
        %v2666 = vadd.f32 %v2238, %v2566
        %v2667 = vadd.f32 %v2239, %v2569
        %v2668 = vadd.f32 %v2240, %v2574
        %v2669 = vadd.f32 %v2241, %v2577
        %v2670 = vadd.f32 %v2242, %v2582
        %v2671 = vadd.f32 %v2243, %v2585
        %v2672 = vadd.f32 %v2244, %v2590
        %v2673 = vadd.f32 %v2245, %v2593
        %v2674 = vadd.f32 %v2246, %v2598
        %v2675 = vadd.f32 %v2247, %v2601
        %v2676 = vadd.f32 %v2248, %v2606
        %v2677 = vadd.f32 %v2249, %v2609
        %v2678 = vadd.f32 %v2250, %v2614
        %v2679 = vadd.f32 %v2251, %v2617
        %v2680 = vadd.f32 %v2252, %v2622
        %v2681 = vadd.f32 %v2253, %v2625
        %v2682 = vadd.f32 %v2254, %v2630
        %v2683 = vadd.f32 %v2255, %v2633
        %s2684 = sadd.s32 %s212, 36
        %s2685 = scalar_lea.vmem %s209, %s2684
        %v2686 = vld [vmem:[%s2685] sm:$0xff]
        %v2687 = vld [vmem:[%s2685 + $0x8] sm:$0xff]
        %v2688 = vld [vmem:[%s2685 + $0x10] sm:$0xff]
        %v2689 = vld [vmem:[%s2685 + $0x18] sm:$0xff]
        %v2690 = vld [vmem:[%s2685 + $0x20] sm:$0xff]
        %v2691 = vld [vmem:[%s2685 + $0x28] sm:$0xff]
        %v2692 = vld [vmem:[%s2685 + $0x30] sm:$0xff]
        %v2693 = vld [vmem:[%s2685 + $0x38] sm:$0xff]
        %v2694 = vld [vmem:[%s2685 + $0x40] sm:$0xff]
        %v2695 = vld [vmem:[%s2685 + $0x48] sm:$0xff]
        %v2696 = vld [vmem:[%s2685 + $0x50] sm:$0xff]
        %v2697 = vld [vmem:[%s2685 + $0x58] sm:$0xff]
        %v2698 = vld [vmem:[%s2685 + $0x60] sm:$0xff]
        %v2699 = vld [vmem:[%s2685 + $0x68] sm:$0xff]
        %v2700 = vld [vmem:[%s2685 + $0x70] sm:$0xff]
        %v2701 = vld [vmem:[%s2685 + $0x78] sm:$0xff]
        %v2702 = vld [vmem:[%s2685 + $0x80] sm:$0xff]
        %v2703 = vld [vmem:[%s2685 + $0x88] sm:$0xff]
        %v2704 = vld [vmem:[%s2685 + $0x90] sm:$0xff]
        %v2705 = vld [vmem:[%s2685 + $0x98] sm:$0xff]
        %v2706 = vld [vmem:[%s2685 + $0xa0] sm:$0xff]
        %v2707 = vld [vmem:[%s2685 + $0xa8] sm:$0xff]
        %v2708 = vld [vmem:[%s2685 + $0xb0] sm:$0xff]
        %v2709 = vld [vmem:[%s2685 + $0xb8] sm:$0xff]
        %v2710 = vld [vmem:[%s2685 + $0xc0] sm:$0xff]
        %v2711 = vld [vmem:[%s2685 + $0xc8] sm:$0xff]
        %v2712 = vld [vmem:[%s2685 + $0xd0] sm:$0xff]
        %v2713 = vld [vmem:[%s2685 + $0xd8] sm:$0xff]
        %v2714 = vld [vmem:[%s2685 + $0xe0] sm:$0xff]
        %v2715 = vld [vmem:[%s2685 + $0xe8] sm:$0xff]
        %v2716 = vld [vmem:[%s2685 + $0xf0] sm:$0xff]
        %v2717 = vld [vmem:[%s2685 + $0xf8] sm:$0xff]
        %v2718 = vld [vmem:[%s2685 + $0x100] sm:$0xff]
        %v2719 = vld [vmem:[%s2685 + $0x108] sm:$0xff]
        %v2720 = vld [vmem:[%s2685 + $0x110] sm:$0xff]
        %v2721 = vld [vmem:[%s2685 + $0x118] sm:$0xff]
        %v2722 = vld [vmem:[%s2685 + $0x120] sm:$0xff]
        %v2723 = vld [vmem:[%s2685 + $0x128] sm:$0xff]
        %v2724 = vld [vmem:[%s2685 + $0x130] sm:$0xff]
        %v2725 = vld [vmem:[%s2685 + $0x138] sm:$0xff]
        %v2726 = vld [vmem:[%s2685 + $0x140] sm:$0xff]
        %v2727 = vld [vmem:[%s2685 + $0x148] sm:$0xff]
        %v2728 = vld [vmem:[%s2685 + $0x150] sm:$0xff]
        %v2729 = vld [vmem:[%s2685 + $0x158] sm:$0xff]
        %v2730 = vld [vmem:[%s2685 + $0x160] sm:$0xff]
        %v2731 = vld [vmem:[%s2685 + $0x168] sm:$0xff]
        %v2732 = vld [vmem:[%s2685 + $0x170] sm:$0xff]
        %v2733 = vld [vmem:[%s2685 + $0x178] sm:$0xff]
        %v2734 = vpack.c.bf16 %v2687, %v2686
        %v2735 = vpack.c.bf16 %v2689, %v2688
        %v2736 = vpack.c.bf16 %v2691, %v2690
        %v2737 = vpack.c.bf16 %v2693, %v2692
        %v2738 = vpack.c.bf16 %v2695, %v2694
        %v2739 = vpack.c.bf16 %v2697, %v2696
        %v2740 = vpack.c.bf16 %v2699, %v2698
        %v2741 = vpack.c.bf16 %v2701, %v2700
        %v2742 = vpack.c.bf16 %v2703, %v2702
        %v2743 = vpack.c.bf16 %v2705, %v2704
        %v2744 = vpack.c.bf16 %v2707, %v2706
        %v2745 = vpack.c.bf16 %v2709, %v2708
        %v2746 = vpack.c.bf16 %v2711, %v2710
        %v2747 = vpack.c.bf16 %v2713, %v2712
        %v2748 = vpack.c.bf16 %v2715, %v2714
        %v2749 = vpack.c.bf16 %v2717, %v2716
        %v2750 = vpack.c.bf16 %v2719, %v2718
        %v2751 = vpack.c.bf16 %v2721, %v2720
        %v2752 = vpack.c.bf16 %v2723, %v2722
        %v2753 = vpack.c.bf16 %v2725, %v2724
        %v2754 = vpack.c.bf16 %v2727, %v2726
        %v2755 = vpack.c.bf16 %v2729, %v2728
        %v2756 = vpack.c.bf16 %v2731, %v2730
        %v2757 = vpack.c.bf16 %v2733, %v2732
        %s2758 = scalar_lea.vmem %s1, 48
        %v2759 = vld [vmem:[%s2758] sm:$0xf]
        %v2760 = vld [vmem:[%s2758 + $0x4] sm:$0xf]
        %v2763 = vunpack.c.l.b16 %v2759
        %v2764 = vunpack.c.l.b16 %v2760
        %v2765 = vpack.c.b16 %v2764, %v2763
        %v2768 = vsel %vm371, %v2734, 0
        %v2771 = vsel %vm371, %v2735, 0
        %v2774 = vsel %vm371, %v2736, 0
        %v2777 = vsel %vm371, %v2737, 0
        %v2780 = vsel %vm371, %v2738, 0
        %v2783 = vsel %vm371, %v2739, 0
        %v2786 = vsel %vm371, %v2740, 0
        %v2789 = vsel %vm371, %v2741, 0
        %v2792 = vsel %vm371, %v2742, 0
        %v2795 = vsel %vm371, %v2743, 0
        %v2798 = vsel %vm371, %v2744, 0
        %v2801 = vsel %vm371, %v2745, 0
        %v2804 = vsel %vm371, %v2746, 0
        %v2807 = vsel %vm371, %v2747, 0
        %v2810 = vsel %vm371, %v2748, 0
        %v2813 = vsel %vm371, %v2749, 0
        %v2816 = vsel %vm371, %v2750, 0
        %v2819 = vsel %vm371, %v2751, 0
        %v2822 = vsel %vm371, %v2752, 0
        %v2825 = vsel %vm371, %v2753, 0
        %v2828 = vsel %vm371, %v2754, 0
        %v2831 = vsel %vm371, %v2755, 0
        %v2834 = vsel %vm371, %v2756, 0
        %v2837 = vsel %vm371, %v2757, 0
        %2839 = vmatprep.subr.bf16.mxu0 0
        %2840 = vmatpush1.bf16.msra.mxu0 %v2765
        %2841 = vmatprep.subr.bf16.mxu0 0
        %2842 = vmatpush1.bf16.msra.mxu0 0
        %2843 = vmatprep.subr.bf16.mxu0 0
        %2844 = vmatpush1.bf16.msra.mxu0 0
        %2845 = vmatprep.subr.bf16.mxu0 0
        %2846 = vmatpush1.bf16.msra.mxu0 0
        %2847 = vmatprep.subr.bf16.mxu0 0
        %2848 = vmatpush1.bf16.msra.mxu0 0
        %2849 = vmatprep.subr.bf16.mxu0 0
        %2850 = vmatpush1.bf16.msra.mxu0 0
        %2851 = vmatprep.subr.bf16.mxu0 0
        %2852 = vmatpush1.bf16.msra.mxu0 0
        %2853 = vmatprep.subr.bf16.mxu0 0
        %2854 = vmatpush1.bf16.msra.mxu0 0
        %2855 = vmatprep.subr.bf16.mxu0 0
        %2856 = vmatpush1.bf16.msra.mxu0 0
        %2857 = vmatprep.subr.bf16.mxu0 0
        %2858 = vmatpush1.bf16.msra.mxu0 0
        %2859 = vmatprep.subr.bf16.mxu0 0
        %2860 = vmatpush1.bf16.msra.mxu0 0
        %2861 = vmatprep.subr.bf16.mxu0 0
        %2862 = vmatpush1.bf16.msra.mxu0 0
        %2863 = vmatprep.subr.bf16.mxu0 0
        %2864 = vmatpush1.bf16.msra.mxu0 0
        %2865 = vmatprep.subr.bf16.mxu0 0
        %2866 = vmatpush1.bf16.msra.mxu0 0
        %2867 = vmatprep.subr.bf16.mxu0 0
        %2868 = vmatpush1.bf16.msra.mxu0 0
        %2869 = vmatprep.subr.bf16.mxu0 0
        %2870 = vmatpush1.bf16.msra.mxu0 0
        %2871 = vmatprep.mubr.bf16.mxu0 0
        %2872 = vmatmul.mubr.bf16.gmra.mrb[0].mxu0 %v2768
        %v2873 = vpop.f32.mrb[0].mxu0
        %v2874 = vadd.f32 0.0, %v2873
        %v2875 = vpop.f32.mrb[0].mxu0
        %v2876 = vpop.f32.mrb[0].mxu0
        %v2877 = vadd.f32 0.0, %v2876
        %v2878 = vpop.f32.mrb[0].mxu0
        %2879 = vmatprep.mubr.bf16.mxu0 0
        %2880 = vmatmul.mubr.bf16.gmra.mrb[0].mxu0 %v2771
        %v2881 = vpop.f32.mrb[0].mxu0
        %v2882 = vadd.f32 0.0, %v2881
        %v2883 = vpop.f32.mrb[0].mxu0
        %v2884 = vpop.f32.mrb[0].mxu0
        %v2885 = vadd.f32 0.0, %v2884
        %v2886 = vpop.f32.mrb[0].mxu0
        %2887 = vmatprep.mubr.bf16.mxu0 0
        %2888 = vmatmul.mubr.bf16.gmra.mrb[0].mxu0 %v2774
        %v2889 = vpop.f32.mrb[0].mxu0
        %v2890 = vadd.f32 0.0, %v2889
        %v2891 = vpop.f32.mrb[0].mxu0
        %v2892 = vpop.f32.mrb[0].mxu0
        %v2893 = vadd.f32 0.0, %v2892
        %v2894 = vpop.f32.mrb[0].mxu0
        %2895 = vmatprep.mubr.bf16.mxu0 0
        %2896 = vmatmul.mubr.bf16.gmra.mrb[0].mxu0 %v2777
        %v2897 = vpop.f32.mrb[0].mxu0
        %v2898 = vadd.f32 0.0, %v2897
        %v2899 = vpop.f32.mrb[0].mxu0
        %v2900 = vpop.f32.mrb[0].mxu0
        %v2901 = vadd.f32 0.0, %v2900
        %v2902 = vpop.f32.mrb[0].mxu0
        %2903 = vmatprep.mubr.bf16.mxu0 0
        %2904 = vmatmul.mubr.bf16.gmra.mrb[0].mxu0 %v2780
        %v2905 = vpop.f32.mrb[0].mxu0
        %v2906 = vadd.f32 0.0, %v2905
        %v2907 = vpop.f32.mrb[0].mxu0
        %v2908 = vpop.f32.mrb[0].mxu0
        %v2909 = vadd.f32 0.0, %v2908
        %v2910 = vpop.f32.mrb[0].mxu0
        %2911 = vmatprep.mubr.bf16.mxu0 0
        %2912 = vmatmul.mubr.bf16.gmra.mrb[0].mxu0 %v2783
        %v2913 = vpop.f32.mrb[0].mxu0
        %v2914 = vadd.f32 0.0, %v2913
        %v2915 = vpop.f32.mrb[0].mxu0
        %v2916 = vpop.f32.mrb[0].mxu0
        %v2917 = vadd.f32 0.0, %v2916
        %v2918 = vpop.f32.mrb[0].mxu0
        %2919 = vmatprep.mubr.bf16.mxu0 0
        %2920 = vmatmul.mubr.bf16.gmra.mrb[0].mxu0 %v2786
        %v2921 = vpop.f32.mrb[0].mxu0
        %v2922 = vadd.f32 0.0, %v2921
        %v2923 = vpop.f32.mrb[0].mxu0
        %v2924 = vpop.f32.mrb[0].mxu0
        %v2925 = vadd.f32 0.0, %v2924
        %v2926 = vpop.f32.mrb[0].mxu0
        %2927 = vmatprep.mubr.bf16.mxu0 0
        %2928 = vmatmul.mubr.bf16.gmra.mrb[0].mxu0 %v2789
        %v2929 = vpop.f32.mrb[0].mxu0
        %v2930 = vadd.f32 0.0, %v2929
        %v2931 = vpop.f32.mrb[0].mxu0
        %v2932 = vpop.f32.mrb[0].mxu0
        %v2933 = vadd.f32 0.0, %v2932
        %v2934 = vpop.f32.mrb[0].mxu0
        %2935 = vmatprep.mubr.bf16.mxu0 0
        %2936 = vmatmul.mubr.bf16.gmra.mrb[0].mxu0 %v2792
        %v2937 = vpop.f32.mrb[0].mxu0
        %v2938 = vadd.f32 0.0, %v2937
        %v2939 = vpop.f32.mrb[0].mxu0
        %v2940 = vpop.f32.mrb[0].mxu0
        %v2941 = vadd.f32 0.0, %v2940
        %v2942 = vpop.f32.mrb[0].mxu0
        %2943 = vmatprep.mubr.bf16.mxu0 0
        %2944 = vmatmul.mubr.bf16.gmra.mrb[0].mxu0 %v2795
        %v2945 = vpop.f32.mrb[0].mxu0
        %v2946 = vadd.f32 0.0, %v2945
        %v2947 = vpop.f32.mrb[0].mxu0
        %v2948 = vpop.f32.mrb[0].mxu0
        %v2949 = vadd.f32 0.0, %v2948
        %v2950 = vpop.f32.mrb[0].mxu0
        %2951 = vmatprep.mubr.bf16.mxu0 0
        %2952 = vmatmul.mubr.bf16.gmra.mrb[0].mxu0 %v2798
        %v2953 = vpop.f32.mrb[0].mxu0
        %v2954 = vadd.f32 0.0, %v2953
        %v2955 = vpop.f32.mrb[0].mxu0
        %v2956 = vpop.f32.mrb[0].mxu0
        %v2957 = vadd.f32 0.0, %v2956
        %v2958 = vpop.f32.mrb[0].mxu0
        %2959 = vmatprep.mubr.bf16.mxu0 0
        %2960 = vmatmul.mubr.bf16.gmra.mrb[0].mxu0 %v2801
        %v2961 = vpop.f32.mrb[0].mxu0
        %v2962 = vadd.f32 0.0, %v2961
        %v2963 = vpop.f32.mrb[0].mxu0
        %v2964 = vpop.f32.mrb[0].mxu0
        %v2965 = vadd.f32 0.0, %v2964
        %v2966 = vpop.f32.mrb[0].mxu0
        %2967 = vmatprep.mubr.bf16.mxu0 0
        %2968 = vmatmul.mubr.bf16.gmra.mrb[0].mxu0 %v2804
        %v2969 = vpop.f32.mrb[0].mxu0
        %v2970 = vadd.f32 0.0, %v2969
        %v2971 = vpop.f32.mrb[0].mxu0
        %v2972 = vpop.f32.mrb[0].mxu0
        %v2973 = vadd.f32 0.0, %v2972
        %v2974 = vpop.f32.mrb[0].mxu0
        %2975 = vmatprep.mubr.bf16.mxu0 0
        %2976 = vmatmul.mubr.bf16.gmra.mrb[0].mxu0 %v2807
        %v2977 = vpop.f32.mrb[0].mxu0
        %v2978 = vadd.f32 0.0, %v2977
        %v2979 = vpop.f32.mrb[0].mxu0
        %v2980 = vpop.f32.mrb[0].mxu0
        %v2981 = vadd.f32 0.0, %v2980
        %v2982 = vpop.f32.mrb[0].mxu0
        %2983 = vmatprep.mubr.bf16.mxu0 0
        %2984 = vmatmul.mubr.bf16.gmra.mrb[0].mxu0 %v2810
        %v2985 = vpop.f32.mrb[0].mxu0
        %v2986 = vadd.f32 0.0, %v2985
        %v2987 = vpop.f32.mrb[0].mxu0
        %v2988 = vpop.f32.mrb[0].mxu0
        %v2989 = vadd.f32 0.0, %v2988
        %v2990 = vpop.f32.mrb[0].mxu0
        %2991 = vmatprep.mubr.bf16.mxu0 0
        %2992 = vmatmul.mubr.bf16.gmra.mrb[0].mxu0 %v2813
        %v2993 = vpop.f32.mrb[0].mxu0
        %v2994 = vadd.f32 0.0, %v2993
        %v2995 = vpop.f32.mrb[0].mxu0
        %v2996 = vpop.f32.mrb[0].mxu0
        %v2997 = vadd.f32 0.0, %v2996
        %v2998 = vpop.f32.mrb[0].mxu0
        %2999 = vmatprep.mubr.bf16.mxu0 0
        %3000 = vmatmul.mubr.bf16.gmra.mrb[0].mxu0 %v2816
        %v3001 = vpop.f32.mrb[0].mxu0
        %v3002 = vadd.f32 0.0, %v3001
        %v3003 = vpop.f32.mrb[0].mxu0
        %v3004 = vpop.f32.mrb[0].mxu0
        %v3005 = vadd.f32 0.0, %v3004
        %v3006 = vpop.f32.mrb[0].mxu0
        %3007 = vmatprep.mubr.bf16.mxu0 0
        %3008 = vmatmul.mubr.bf16.gmra.mrb[0].mxu0 %v2819
        %v3009 = vpop.f32.mrb[0].mxu0
        %v3010 = vadd.f32 0.0, %v3009
        %v3011 = vpop.f32.mrb[0].mxu0
        %v3012 = vpop.f32.mrb[0].mxu0
        %v3013 = vadd.f32 0.0, %v3012
        %v3014 = vpop.f32.mrb[0].mxu0
        %3015 = vmatprep.mubr.bf16.mxu0 0
        %3016 = vmatmul.mubr.bf16.gmra.mrb[0].mxu0 %v2822
        %v3017 = vpop.f32.mrb[0].mxu0
        %v3018 = vadd.f32 0.0, %v3017
        %v3019 = vpop.f32.mrb[0].mxu0
        %v3020 = vpop.f32.mrb[0].mxu0
        %v3021 = vadd.f32 0.0, %v3020
        %v3022 = vpop.f32.mrb[0].mxu0
        %3023 = vmatprep.mubr.bf16.mxu0 0
        %3024 = vmatmul.mubr.bf16.gmra.mrb[0].mxu0 %v2825
        %v3025 = vpop.f32.mrb[0].mxu0
        %v3026 = vadd.f32 0.0, %v3025
        %v3027 = vpop.f32.mrb[0].mxu0
        %v3028 = vpop.f32.mrb[0].mxu0
        %v3029 = vadd.f32 0.0, %v3028
        %v3030 = vpop.f32.mrb[0].mxu0
        %3031 = vmatprep.mubr.bf16.mxu0 0
        %3032 = vmatmul.mubr.bf16.gmra.mrb[0].mxu0 %v2828
        %v3033 = vpop.f32.mrb[0].mxu0
        %v3034 = vadd.f32 0.0, %v3033
        %v3035 = vpop.f32.mrb[0].mxu0
        %v3036 = vpop.f32.mrb[0].mxu0
        %v3037 = vadd.f32 0.0, %v3036
        %v3038 = vpop.f32.mrb[0].mxu0
        %3039 = vmatprep.mubr.bf16.mxu0 0
        %3040 = vmatmul.mubr.bf16.gmra.mrb[0].mxu0 %v2831
        %v3041 = vpop.f32.mrb[0].mxu0
        %v3042 = vadd.f32 0.0, %v3041
        %v3043 = vpop.f32.mrb[0].mxu0
        %v3044 = vpop.f32.mrb[0].mxu0
        %v3045 = vadd.f32 0.0, %v3044
        %v3046 = vpop.f32.mrb[0].mxu0
        %3047 = vmatprep.mubr.bf16.mxu0 0
        %3048 = vmatmul.mubr.bf16.gmra.mrb[0].mxu0 %v2834
        %v3049 = vpop.f32.mrb[0].mxu0
        %v3050 = vadd.f32 0.0, %v3049
        %v3051 = vpop.f32.mrb[0].mxu0
        %v3052 = vpop.f32.mrb[0].mxu0
        %v3053 = vadd.f32 0.0, %v3052
        %v3054 = vpop.f32.mrb[0].mxu0
        %3055 = vmatprep.mubr.bf16.mxu0 0
        %3056 = vmatmul.mubr.bf16.gmra.mrb[0].mxu0 %v2837
        %v3057 = vpop.f32.mrb[0].mxu0
        %v3058 = vadd.f32 0.0, %v3057
        %v3059 = vpop.f32.mrb[0].mxu0
        %v3060 = vpop.f32.mrb[0].mxu0
        %v3061 = vadd.f32 0.0, %v3060
        %v3062 = vpop.f32.mrb[0].mxu0
        %3063 = vdwg.mxu0
        %v3064 = vadd.f32 %v2636, %v2874
        %v3065 = vadd.f32 %v2637, %v2877
        %v3066 = vadd.f32 %v2638, %v2882
        %v3067 = vadd.f32 %v2639, %v2885
        %v3068 = vadd.f32 %v2640, %v2890
        %v3069 = vadd.f32 %v2641, %v2893
        %v3070 = vadd.f32 %v2642, %v2898
        %v3071 = vadd.f32 %v2643, %v2901
        %v3072 = vadd.f32 %v2644, %v2906
        %v3073 = vadd.f32 %v2645, %v2909
        %v3074 = vadd.f32 %v2646, %v2914
        %v3075 = vadd.f32 %v2647, %v2917
        %v3076 = vadd.f32 %v2648, %v2922
        %v3077 = vadd.f32 %v2649, %v2925
        %v3078 = vadd.f32 %v2650, %v2930
        %v3079 = vadd.f32 %v2651, %v2933
        %v3080 = vadd.f32 %v2652, %v2938
        %v3081 = vadd.f32 %v2653, %v2941
        %v3082 = vadd.f32 %v2654, %v2946
        %v3083 = vadd.f32 %v2655, %v2949
        %v3084 = vadd.f32 %v2656, %v2954
        %v3085 = vadd.f32 %v2657, %v2957
        %v3086 = vadd.f32 %v2658, %v2962
        %v3087 = vadd.f32 %v2659, %v2965
        %v3088 = vadd.f32 %v2660, %v2970
        %v3089 = vadd.f32 %v2661, %v2973
        %v3090 = vadd.f32 %v2662, %v2978
        %v3091 = vadd.f32 %v2663, %v2981
        %v3092 = vadd.f32 %v2664, %v2986
        %v3093 = vadd.f32 %v2665, %v2989
        %v3094 = vadd.f32 %v2666, %v2994
        %v3095 = vadd.f32 %v2667, %v2997
        %v3096 = vadd.f32 %v2668, %v3002
        %v3097 = vadd.f32 %v2669, %v3005
        %v3098 = vadd.f32 %v2670, %v3010
        %v3099 = vadd.f32 %v2671, %v3013
        %v3100 = vadd.f32 %v2672, %v3018
        %v3101 = vadd.f32 %v2673, %v3021
        %v3102 = vadd.f32 %v2674, %v3026
        %v3103 = vadd.f32 %v2675, %v3029
        %v3104 = vadd.f32 %v2676, %v3034
        %v3105 = vadd.f32 %v2677, %v3037
        %v3106 = vadd.f32 %v2678, %v3042
        %v3107 = vadd.f32 %v2679, %v3045
        %v3108 = vadd.f32 %v2680, %v3050
        %v3109 = vadd.f32 %v2681, %v3053
        %v3110 = vadd.f32 %v2682, %v3058
        %v3111 = vadd.f32 %v2683, %v3061
        %s3112 = sadd.s32 %s212, 37
        %s3113 = scalar_lea.vmem %s209, %s3112
        %v3114 = vld [vmem:[%s3113] sm:$0xff]
        %v3115 = vld [vmem:[%s3113 + $0x8] sm:$0xff]
        %v3116 = vld [vmem:[%s3113 + $0x10] sm:$0xff]
        %v3117 = vld [vmem:[%s3113 + $0x18] sm:$0xff]
        %v3118 = vld [vmem:[%s3113 + $0x20] sm:$0xff]
        %v3119 = vld [vmem:[%s3113 + $0x28] sm:$0xff]
        %v3120 = vld [vmem:[%s3113 + $0x30] sm:$0xff]
        %v3121 = vld [vmem:[%s3113 + $0x38] sm:$0xff]
        %v3122 = vld [vmem:[%s3113 + $0x40] sm:$0xff]
        %v3123 = vld [vmem:[%s3113 + $0x48] sm:$0xff]
        %v3124 = vld [vmem:[%s3113 + $0x50] sm:$0xff]
        %v3125 = vld [vmem:[%s3113 + $0x58] sm:$0xff]
        %v3126 = vld [vmem:[%s3113 + $0x60] sm:$0xff]
        %v3127 = vld [vmem:[%s3113 + $0x68] sm:$0xff]
        %v3128 = vld [vmem:[%s3113 + $0x70] sm:$0xff]
        %v3129 = vld [vmem:[%s3113 + $0x78] sm:$0xff]
        %v3130 = vld [vmem:[%s3113 + $0x80] sm:$0xff]
        %v3131 = vld [vmem:[%s3113 + $0x88] sm:$0xff]
        %v3132 = vld [vmem:[%s3113 + $0x90] sm:$0xff]
        %v3133 = vld [vmem:[%s3113 + $0x98] sm:$0xff]
        %v3134 = vld [vmem:[%s3113 + $0xa0] sm:$0xff]
        %v3135 = vld [vmem:[%s3113 + $0xa8] sm:$0xff]
        %v3136 = vld [vmem:[%s3113 + $0xb0] sm:$0xff]
        %v3137 = vld [vmem:[%s3113 + $0xb8] sm:$0xff]
        %v3138 = vld [vmem:[%s3113 + $0xc0] sm:$0xff]
        %v3139 = vld [vmem:[%s3113 + $0xc8] sm:$0xff]
        %v3140 = vld [vmem:[%s3113 + $0xd0] sm:$0xff]
        %v3141 = vld [vmem:[%s3113 + $0xd8] sm:$0xff]
        %v3142 = vld [vmem:[%s3113 + $0xe0] sm:$0xff]
        %v3143 = vld [vmem:[%s3113 + $0xe8] sm:$0xff]
        %v3144 = vld [vmem:[%s3113 + $0xf0] sm:$0xff]
        %v3145 = vld [vmem:[%s3113 + $0xf8] sm:$0xff]
        %v3146 = vld [vmem:[%s3113 + $0x100] sm:$0xff]
        %v3147 = vld [vmem:[%s3113 + $0x108] sm:$0xff]
        %v3148 = vld [vmem:[%s3113 + $0x110] sm:$0xff]
        %v3149 = vld [vmem:[%s3113 + $0x118] sm:$0xff]
        %v3150 = vld [vmem:[%s3113 + $0x120] sm:$0xff]
        %v3151 = vld [vmem:[%s3113 + $0x128] sm:$0xff]
        %v3152 = vld [vmem:[%s3113 + $0x130] sm:$0xff]
        %v3153 = vld [vmem:[%s3113 + $0x138] sm:$0xff]
        %v3154 = vld [vmem:[%s3113 + $0x140] sm:$0xff]
        %v3155 = vld [vmem:[%s3113 + $0x148] sm:$0xff]
        %v3156 = vld [vmem:[%s3113 + $0x150] sm:$0xff]
        %v3157 = vld [vmem:[%s3113 + $0x158] sm:$0xff]
        %v3158 = vld [vmem:[%s3113 + $0x160] sm:$0xff]
        %v3159 = vld [vmem:[%s3113 + $0x168] sm:$0xff]
        %v3160 = vld [vmem:[%s3113 + $0x170] sm:$0xff]
        %v3161 = vld [vmem:[%s3113 + $0x178] sm:$0xff]
        %v3162 = vpack.c.bf16 %v3115, %v3114
        %v3163 = vpack.c.bf16 %v3117, %v3116
        %v3164 = vpack.c.bf16 %v3119, %v3118
        %v3165 = vpack.c.bf16 %v3121, %v3120
        %v3166 = vpack.c.bf16 %v3123, %v3122
        %v3167 = vpack.c.bf16 %v3125, %v3124
        %v3168 = vpack.c.bf16 %v3127, %v3126
        %v3169 = vpack.c.bf16 %v3129, %v3128
        %v3170 = vpack.c.bf16 %v3131, %v3130
        %v3171 = vpack.c.bf16 %v3133, %v3132
        %v3172 = vpack.c.bf16 %v3135, %v3134
        %v3173 = vpack.c.bf16 %v3137, %v3136
        %v3174 = vpack.c.bf16 %v3139, %v3138
        %v3175 = vpack.c.bf16 %v3141, %v3140
        %v3176 = vpack.c.bf16 %v3143, %v3142
        %v3177 = vpack.c.bf16 %v3145, %v3144
        %v3178 = vpack.c.bf16 %v3147, %v3146
        %v3179 = vpack.c.bf16 %v3149, %v3148
        %v3180 = vpack.c.bf16 %v3151, %v3150
        %v3181 = vpack.c.bf16 %v3153, %v3152
        %v3182 = vpack.c.bf16 %v3155, %v3154
        %v3183 = vpack.c.bf16 %v3157, %v3156
        %v3184 = vpack.c.bf16 %v3159, %v3158
        %v3185 = vpack.c.bf16 %v3161, %v3160
        %s3186 = scalar_lea.vmem %s1, 56
        %v3187 = vld [vmem:[%s3186] sm:$0xf]
        %v3188 = vld [vmem:[%s3186 + $0x4] sm:$0xf]
        %v3191 = vunpack.c.l.b16 %v3187
        %v3192 = vunpack.c.l.b16 %v3188
        %v3193 = vpack.c.b16 %v3192, %v3191
        %v3196 = vsel %vm371, %v3162, 0
        %v3199 = vsel %vm371, %v3163, 0
        %v3202 = vsel %vm371, %v3164, 0
        %v3205 = vsel %vm371, %v3165, 0
        %v3208 = vsel %vm371, %v3166, 0
        %v3211 = vsel %vm371, %v3167, 0
        %v3214 = vsel %vm371, %v3168, 0
        %v3217 = vsel %vm371, %v3169, 0
        %v3220 = vsel %vm371, %v3170, 0
        %v3223 = vsel %vm371, %v3171, 0
        %v3226 = vsel %vm371, %v3172, 0
        %v3229 = vsel %vm371, %v3173, 0
        %v3232 = vsel %vm371, %v3174, 0
        %v3235 = vsel %vm371, %v3175, 0
        %v3238 = vsel %vm371, %v3176, 0
        %v3241 = vsel %vm371, %v3177, 0
        %v3244 = vsel %vm371, %v3178, 0
        %v3247 = vsel %vm371, %v3179, 0
        %v3250 = vsel %vm371, %v3180, 0
        %v3253 = vsel %vm371, %v3181, 0
        %v3256 = vsel %vm371, %v3182, 0
        %v3259 = vsel %vm371, %v3183, 0
        %v3262 = vsel %vm371, %v3184, 0
        %v3265 = vsel %vm371, %v3185, 0
        %3267 = vmatprep.subr.bf16.mxu0 0
        %3268 = vmatpush1.bf16.msra.mxu0 %v3193
        %3269 = vmatprep.subr.bf16.mxu0 0
        %3270 = vmatpush1.bf16.msra.mxu0 0
        %3271 = vmatprep.subr.bf16.mxu0 0
        %3272 = vmatpush1.bf16.msra.mxu0 0
        %3273 = vmatprep.subr.bf16.mxu0 0
        %3274 = vmatpush1.bf16.msra.mxu0 0
        %3275 = vmatprep.subr.bf16.mxu0 0
        %3276 = vmatpush1.bf16.msra.mxu0 0
        %3277 = vmatprep.subr.bf16.mxu0 0
        %3278 = vmatpush1.bf16.msra.mxu0 0
        %3279 = vmatprep.subr.bf16.mxu0 0
        %3280 = vmatpush1.bf16.msra.mxu0 0
        %3281 = vmatprep.subr.bf16.mxu0 0
        %3282 = vmatpush1.bf16.msra.mxu0 0
        %3283 = vmatprep.subr.bf16.mxu0 0
        %3284 = vmatpush1.bf16.msra.mxu0 0
        %3285 = vmatprep.subr.bf16.mxu0 0
        %3286 = vmatpush1.bf16.msra.mxu0 0
        %3287 = vmatprep.subr.bf16.mxu0 0
        %3288 = vmatpush1.bf16.msra.mxu0 0
        %3289 = vmatprep.subr.bf16.mxu0 0
        %3290 = vmatpush1.bf16.msra.mxu0 0
        %3291 = vmatprep.subr.bf16.mxu0 0
        %3292 = vmatpush1.bf16.msra.mxu0 0
        %3293 = vmatprep.subr.bf16.mxu0 0
        %3294 = vmatpush1.bf16.msra.mxu0 0
        %3295 = vmatprep.subr.bf16.mxu0 0
        %3296 = vmatpush1.bf16.msra.mxu0 0
        %3297 = vmatprep.subr.bf16.mxu0 0
        %3298 = vmatpush1.bf16.msra.mxu0 0
        %3299 = vmatprep.mubr.bf16.mxu0 0
        %3300 = vmatmul.mubr.bf16.gmra.mrb[0].mxu0 %v3196
        %v3301 = vpop.f32.mrb[0].mxu0
        %v3302 = vadd.f32 0.0, %v3301
        %v3303 = vpop.f32.mrb[0].mxu0
        %v3304 = vpop.f32.mrb[0].mxu0
        %v3305 = vadd.f32 0.0, %v3304
        %v3306 = vpop.f32.mrb[0].mxu0
        %3307 = vmatprep.mubr.bf16.mxu0 0
        %3308 = vmatmul.mubr.bf16.gmra.mrb[0].mxu0 %v3199
        %v3309 = vpop.f32.mrb[0].mxu0
        %v3310 = vadd.f32 0.0, %v3309
        %v3311 = vpop.f32.mrb[0].mxu0
        %v3312 = vpop.f32.mrb[0].mxu0
        %v3313 = vadd.f32 0.0, %v3312
        %v3314 = vpop.f32.mrb[0].mxu0
        %3315 = vmatprep.mubr.bf16.mxu0 0
        %3316 = vmatmul.mubr.bf16.gmra.mrb[0].mxu0 %v3202
        %v3317 = vpop.f32.mrb[0].mxu0
        %v3318 = vadd.f32 0.0, %v3317
        %v3319 = vpop.f32.mrb[0].mxu0
        %v3320 = vpop.f32.mrb[0].mxu0
        %v3321 = vadd.f32 0.0, %v3320
        %v3322 = vpop.f32.mrb[0].mxu0
        %3323 = vmatprep.mubr.bf16.mxu0 0
        %3324 = vmatmul.mubr.bf16.gmra.mrb[0].mxu0 %v3205
        %v3325 = vpop.f32.mrb[0].mxu0
        %v3326 = vadd.f32 0.0, %v3325
        %v3327 = vpop.f32.mrb[0].mxu0
        %v3328 = vpop.f32.mrb[0].mxu0
        %v3329 = vadd.f32 0.0, %v3328
        %v3330 = vpop.f32.mrb[0].mxu0
        %3331 = vmatprep.mubr.bf16.mxu0 0
        %3332 = vmatmul.mubr.bf16.gmra.mrb[0].mxu0 %v3208
        %v3333 = vpop.f32.mrb[0].mxu0
        %v3334 = vadd.f32 0.0, %v3333
        %v3335 = vpop.f32.mrb[0].mxu0
        %v3336 = vpop.f32.mrb[0].mxu0
        %v3337 = vadd.f32 0.0, %v3336
        %v3338 = vpop.f32.mrb[0].mxu0
        %3339 = vmatprep.mubr.bf16.mxu0 0
        %3340 = vmatmul.mubr.bf16.gmra.mrb[0].mxu0 %v3211
        %v3341 = vpop.f32.mrb[0].mxu0
        %v3342 = vadd.f32 0.0, %v3341
        %v3343 = vpop.f32.mrb[0].mxu0
        %v3344 = vpop.f32.mrb[0].mxu0
        %v3345 = vadd.f32 0.0, %v3344
        %v3346 = vpop.f32.mrb[0].mxu0
        %3347 = vmatprep.mubr.bf16.mxu0 0
        %3348 = vmatmul.mubr.bf16.gmra.mrb[0].mxu0 %v3214
        %v3349 = vpop.f32.mrb[0].mxu0
        %v3350 = vadd.f32 0.0, %v3349
        %v3351 = vpop.f32.mrb[0].mxu0
        %v3352 = vpop.f32.mrb[0].mxu0
        %v3353 = vadd.f32 0.0, %v3352
        %v3354 = vpop.f32.mrb[0].mxu0
        %3355 = vmatprep.mubr.bf16.mxu0 0
        %3356 = vmatmul.mubr.bf16.gmra.mrb[0].mxu0 %v3217
        %v3357 = vpop.f32.mrb[0].mxu0
        %v3358 = vadd.f32 0.0, %v3357
        %v3359 = vpop.f32.mrb[0].mxu0
        %v3360 = vpop.f32.mrb[0].mxu0
        %v3361 = vadd.f32 0.0, %v3360
        %v3362 = vpop.f32.mrb[0].mxu0
        %3363 = vmatprep.mubr.bf16.mxu0 0
        %3364 = vmatmul.mubr.bf16.gmra.mrb[0].mxu0 %v3220
        %v3365 = vpop.f32.mrb[0].mxu0
        %v3366 = vadd.f32 0.0, %v3365
        %v3367 = vpop.f32.mrb[0].mxu0
        %v3368 = vpop.f32.mrb[0].mxu0
        %v3369 = vadd.f32 0.0, %v3368
        %v3370 = vpop.f32.mrb[0].mxu0
        %3371 = vmatprep.mubr.bf16.mxu0 0
        %3372 = vmatmul.mubr.bf16.gmra.mrb[0].mxu0 %v3223
        %v3373 = vpop.f32.mrb[0].mxu0
        %v3374 = vadd.f32 0.0, %v3373
        %v3375 = vpop.f32.mrb[0].mxu0
        %v3376 = vpop.f32.mrb[0].mxu0
        %v3377 = vadd.f32 0.0, %v3376
        %v3378 = vpop.f32.mrb[0].mxu0
        %3379 = vmatprep.mubr.bf16.mxu0 0
        %3380 = vmatmul.mubr.bf16.gmra.mrb[0].mxu0 %v3226
        %v3381 = vpop.f32.mrb[0].mxu0
        %v3382 = vadd.f32 0.0, %v3381
        %v3383 = vpop.f32.mrb[0].mxu0
        %v3384 = vpop.f32.mrb[0].mxu0
        %v3385 = vadd.f32 0.0, %v3384
        %v3386 = vpop.f32.mrb[0].mxu0
        %3387 = vmatprep.mubr.bf16.mxu0 0
        %3388 = vmatmul.mubr.bf16.gmra.mrb[0].mxu0 %v3229
        %v3389 = vpop.f32.mrb[0].mxu0
        %v3390 = vadd.f32 0.0, %v3389
        %v3391 = vpop.f32.mrb[0].mxu0
        %v3392 = vpop.f32.mrb[0].mxu0
        %v3393 = vadd.f32 0.0, %v3392
        %v3394 = vpop.f32.mrb[0].mxu0
        %3395 = vmatprep.mubr.bf16.mxu0 0
        %3396 = vmatmul.mubr.bf16.gmra.mrb[0].mxu0 %v3232
        %v3397 = vpop.f32.mrb[0].mxu0
        %v3398 = vadd.f32 0.0, %v3397
        %v3399 = vpop.f32.mrb[0].mxu0
        %v3400 = vpop.f32.mrb[0].mxu0
        %v3401 = vadd.f32 0.0, %v3400
        %v3402 = vpop.f32.mrb[0].mxu0
        %3403 = vmatprep.mubr.bf16.mxu0 0
        %3404 = vmatmul.mubr.bf16.gmra.mrb[0].mxu0 %v3235
        %v3405 = vpop.f32.mrb[0].mxu0
        %v3406 = vadd.f32 0.0, %v3405
        %v3407 = vpop.f32.mrb[0].mxu0
        %v3408 = vpop.f32.mrb[0].mxu0
        %v3409 = vadd.f32 0.0, %v3408
        %v3410 = vpop.f32.mrb[0].mxu0
        %3411 = vmatprep.mubr.bf16.mxu0 0
        %3412 = vmatmul.mubr.bf16.gmra.mrb[0].mxu0 %v3238
        %v3413 = vpop.f32.mrb[0].mxu0
        %v3414 = vadd.f32 0.0, %v3413
        %v3415 = vpop.f32.mrb[0].mxu0
        %v3416 = vpop.f32.mrb[0].mxu0
        %v3417 = vadd.f32 0.0, %v3416
        %v3418 = vpop.f32.mrb[0].mxu0
        %3419 = vmatprep.mubr.bf16.mxu0 0
        %3420 = vmatmul.mubr.bf16.gmra.mrb[0].mxu0 %v3241
        %v3421 = vpop.f32.mrb[0].mxu0
        %v3422 = vadd.f32 0.0, %v3421
        %v3423 = vpop.f32.mrb[0].mxu0
        %v3424 = vpop.f32.mrb[0].mxu0
        %v3425 = vadd.f32 0.0, %v3424
        %v3426 = vpop.f32.mrb[0].mxu0
        %3427 = vmatprep.mubr.bf16.mxu0 0
        %3428 = vmatmul.mubr.bf16.gmra.mrb[0].mxu0 %v3244
        %v3429 = vpop.f32.mrb[0].mxu0
        %v3430 = vadd.f32 0.0, %v3429
        %v3431 = vpop.f32.mrb[0].mxu0
        %v3432 = vpop.f32.mrb[0].mxu0
        %v3433 = vadd.f32 0.0, %v3432
        %v3434 = vpop.f32.mrb[0].mxu0
        %3435 = vmatprep.mubr.bf16.mxu0 0
        %3436 = vmatmul.mubr.bf16.gmra.mrb[0].mxu0 %v3247
        %v3437 = vpop.f32.mrb[0].mxu0
        %v3438 = vadd.f32 0.0, %v3437
        %v3439 = vpop.f32.mrb[0].mxu0
        %v3440 = vpop.f32.mrb[0].mxu0
        %v3441 = vadd.f32 0.0, %v3440
        %v3442 = vpop.f32.mrb[0].mxu0
        %3443 = vmatprep.mubr.bf16.mxu0 0
        %3444 = vmatmul.mubr.bf16.gmra.mrb[0].mxu0 %v3250
        %v3445 = vpop.f32.mrb[0].mxu0
        %v3446 = vadd.f32 0.0, %v3445
        %v3447 = vpop.f32.mrb[0].mxu0
        %v3448 = vpop.f32.mrb[0].mxu0
        %v3449 = vadd.f32 0.0, %v3448
        %v3450 = vpop.f32.mrb[0].mxu0
        %3451 = vmatprep.mubr.bf16.mxu0 0
        %3452 = vmatmul.mubr.bf16.gmra.mrb[0].mxu0 %v3253
        %v3453 = vpop.f32.mrb[0].mxu0
        %v3454 = vadd.f32 0.0, %v3453
        %v3455 = vpop.f32.mrb[0].mxu0
        %v3456 = vpop.f32.mrb[0].mxu0
        %v3457 = vadd.f32 0.0, %v3456
        %v3458 = vpop.f32.mrb[0].mxu0
        %3459 = vmatprep.mubr.bf16.mxu0 0
        %3460 = vmatmul.mubr.bf16.gmra.mrb[0].mxu0 %v3256
        %v3461 = vpop.f32.mrb[0].mxu0
        %v3462 = vadd.f32 0.0, %v3461
        %v3463 = vpop.f32.mrb[0].mxu0
        %v3464 = vpop.f32.mrb[0].mxu0
        %v3465 = vadd.f32 0.0, %v3464
        %v3466 = vpop.f32.mrb[0].mxu0
        %3467 = vmatprep.mubr.bf16.mxu0 0
        %3468 = vmatmul.mubr.bf16.gmra.mrb[0].mxu0 %v3259
        %v3469 = vpop.f32.mrb[0].mxu0
        %v3470 = vadd.f32 0.0, %v3469
        %v3471 = vpop.f32.mrb[0].mxu0
        %v3472 = vpop.f32.mrb[0].mxu0
        %v3473 = vadd.f32 0.0, %v3472
        %v3474 = vpop.f32.mrb[0].mxu0
        %3475 = vmatprep.mubr.bf16.mxu0 0
        %3476 = vmatmul.mubr.bf16.gmra.mrb[0].mxu0 %v3262
        %v3477 = vpop.f32.mrb[0].mxu0
        %v3478 = vadd.f32 0.0, %v3477
        %v3479 = vpop.f32.mrb[0].mxu0
        %v3480 = vpop.f32.mrb[0].mxu0
        %v3481 = vadd.f32 0.0, %v3480
        %v3482 = vpop.f32.mrb[0].mxu0
        %3483 = vmatprep.mubr.bf16.mxu0 0
        %3484 = vmatmul.mubr.bf16.gmra.mrb[0].mxu0 %v3265
        %v3485 = vpop.f32.mrb[0].mxu0
        %v3486 = vadd.f32 0.0, %v3485
        %v3487 = vpop.f32.mrb[0].mxu0
        %v3488 = vpop.f32.mrb[0].mxu0
        %v3489 = vadd.f32 0.0, %v3488
        %v3490 = vpop.f32.mrb[0].mxu0
        %3491 = vdwg.mxu0
        %v3492 = vadd.f32 %v3064, %v3302
        %v3493 = vadd.f32 %v3065, %v3305
        %v3494 = vadd.f32 %v3066, %v3310
        %v3495 = vadd.f32 %v3067, %v3313
        %v3496 = vadd.f32 %v3068, %v3318
        %v3497 = vadd.f32 %v3069, %v3321
        %v3498 = vadd.f32 %v3070, %v3326
        %v3499 = vadd.f32 %v3071, %v3329
        %v3500 = vadd.f32 %v3072, %v3334
        %v3501 = vadd.f32 %v3073, %v3337
        %v3502 = vadd.f32 %v3074, %v3342
        %v3503 = vadd.f32 %v3075, %v3345
        %v3504 = vadd.f32 %v3076, %v3350
        %v3505 = vadd.f32 %v3077, %v3353
        %v3506 = vadd.f32 %v3078, %v3358
        %v3507 = vadd.f32 %v3079, %v3361
        %v3508 = vadd.f32 %v3080, %v3366
        %v3509 = vadd.f32 %v3081, %v3369
        %v3510 = vadd.f32 %v3082, %v3374
        %v3511 = vadd.f32 %v3083, %v3377
        %v3512 = vadd.f32 %v3084, %v3382
        %v3513 = vadd.f32 %v3085, %v3385
        %v3514 = vadd.f32 %v3086, %v3390
        %v3515 = vadd.f32 %v3087, %v3393
        %v3516 = vadd.f32 %v3088, %v3398
        %v3517 = vadd.f32 %v3089, %v3401
        %v3518 = vadd.f32 %v3090, %v3406
        %v3519 = vadd.f32 %v3091, %v3409
        %v3520 = vadd.f32 %v3092, %v3414
        %v3521 = vadd.f32 %v3093, %v3417
        %v3522 = vadd.f32 %v3094, %v3422
        %v3523 = vadd.f32 %v3095, %v3425
        %v3524 = vadd.f32 %v3096, %v3430
        %v3525 = vadd.f32 %v3097, %v3433
        %v3526 = vadd.f32 %v3098, %v3438
        %v3527 = vadd.f32 %v3099, %v3441
        %v3528 = vadd.f32 %v3100, %v3446
        %v3529 = vadd.f32 %v3101, %v3449
        %v3530 = vadd.f32 %v3102, %v3454
        %v3531 = vadd.f32 %v3103, %v3457
        %v3532 = vadd.f32 %v3104, %v3462
        %v3533 = vadd.f32 %v3105, %v3465
        %v3534 = vadd.f32 %v3106, %v3470
        %v3535 = vadd.f32 %v3107, %v3473
        %v3536 = vadd.f32 %v3108, %v3478
        %v3537 = vadd.f32 %v3109, %v3481
        %v3538 = vadd.f32 %v3110, %v3486
        %v3539 = vadd.f32 %v3111, %v3489
        %s3540 = sadd.s32 %s212, 38
        %s3541 = scalar_lea.vmem %s209, %s3540
        %v3542 = vld [vmem:[%s3541] sm:$0xff]
        %v3543 = vld [vmem:[%s3541 + $0x8] sm:$0xff]
        %v3544 = vld [vmem:[%s3541 + $0x10] sm:$0xff]
        %v3545 = vld [vmem:[%s3541 + $0x18] sm:$0xff]
        %v3546 = vld [vmem:[%s3541 + $0x20] sm:$0xff]
        %v3547 = vld [vmem:[%s3541 + $0x28] sm:$0xff]
        %v3548 = vld [vmem:[%s3541 + $0x30] sm:$0xff]
        %v3549 = vld [vmem:[%s3541 + $0x38] sm:$0xff]
        %v3550 = vld [vmem:[%s3541 + $0x40] sm:$0xff]
        %v3551 = vld [vmem:[%s3541 + $0x48] sm:$0xff]
        %v3552 = vld [vmem:[%s3541 + $0x50] sm:$0xff]
        %v3553 = vld [vmem:[%s3541 + $0x58] sm:$0xff]
        %v3554 = vld [vmem:[%s3541 + $0x60] sm:$0xff]
        %v3555 = vld [vmem:[%s3541 + $0x68] sm:$0xff]
        %v3556 = vld [vmem:[%s3541 + $0x70] sm:$0xff]
        %v3557 = vld [vmem:[%s3541 + $0x78] sm:$0xff]
        %v3558 = vld [vmem:[%s3541 + $0x80] sm:$0xff]
        %v3559 = vld [vmem:[%s3541 + $0x88] sm:$0xff]
        %v3560 = vld [vmem:[%s3541 + $0x90] sm:$0xff]
        %v3561 = vld [vmem:[%s3541 + $0x98] sm:$0xff]
        %v3562 = vld [vmem:[%s3541 + $0xa0] sm:$0xff]
        %v3563 = vld [vmem:[%s3541 + $0xa8] sm:$0xff]
        %v3564 = vld [vmem:[%s3541 + $0xb0] sm:$0xff]
        %v3565 = vld [vmem:[%s3541 + $0xb8] sm:$0xff]
        %v3566 = vld [vmem:[%s3541 + $0xc0] sm:$0xff]
        %v3567 = vld [vmem:[%s3541 + $0xc8] sm:$0xff]
        %v3568 = vld [vmem:[%s3541 + $0xd0] sm:$0xff]
        %v3569 = vld [vmem:[%s3541 + $0xd8] sm:$0xff]
        %v3570 = vld [vmem:[%s3541 + $0xe0] sm:$0xff]
        %v3571 = vld [vmem:[%s3541 + $0xe8] sm:$0xff]
        %v3572 = vld [vmem:[%s3541 + $0xf0] sm:$0xff]
        %v3573 = vld [vmem:[%s3541 + $0xf8] sm:$0xff]
        %v3574 = vld [vmem:[%s3541 + $0x100] sm:$0xff]
        %v3575 = vld [vmem:[%s3541 + $0x108] sm:$0xff]
        %v3576 = vld [vmem:[%s3541 + $0x110] sm:$0xff]
        %v3577 = vld [vmem:[%s3541 + $0x118] sm:$0xff]
        %v3578 = vld [vmem:[%s3541 + $0x120] sm:$0xff]
        %v3579 = vld [vmem:[%s3541 + $0x128] sm:$0xff]
        %v3580 = vld [vmem:[%s3541 + $0x130] sm:$0xff]
        %v3581 = vld [vmem:[%s3541 + $0x138] sm:$0xff]
        %v3582 = vld [vmem:[%s3541 + $0x140] sm:$0xff]
        %v3583 = vld [vmem:[%s3541 + $0x148] sm:$0xff]
        %v3584 = vld [vmem:[%s3541 + $0x150] sm:$0xff]
        %v3585 = vld [vmem:[%s3541 + $0x158] sm:$0xff]
        %v3586 = vld [vmem:[%s3541 + $0x160] sm:$0xff]
        %v3587 = vld [vmem:[%s3541 + $0x168] sm:$0xff]
        %v3588 = vld [vmem:[%s3541 + $0x170] sm:$0xff]
        %v3589 = vld [vmem:[%s3541 + $0x178] sm:$0xff]
        %v3590 = vpack.c.bf16 %v3543, %v3542
        %v3591 = vpack.c.bf16 %v3545, %v3544
        %v3592 = vpack.c.bf16 %v3547, %v3546
        %v3593 = vpack.c.bf16 %v3549, %v3548
        %v3594 = vpack.c.bf16 %v3551, %v3550
        %v3595 = vpack.c.bf16 %v3553, %v3552
        %v3596 = vpack.c.bf16 %v3555, %v3554
        %v3597 = vpack.c.bf16 %v3557, %v3556
        %v3598 = vpack.c.bf16 %v3559, %v3558
        %v3599 = vpack.c.bf16 %v3561, %v3560
        %v3600 = vpack.c.bf16 %v3563, %v3562
        %v3601 = vpack.c.bf16 %v3565, %v3564
        %v3602 = vpack.c.bf16 %v3567, %v3566
        %v3603 = vpack.c.bf16 %v3569, %v3568
        %v3604 = vpack.c.bf16 %v3571, %v3570
        %v3605 = vpack.c.bf16 %v3573, %v3572
        %v3606 = vpack.c.bf16 %v3575, %v3574
        %v3607 = vpack.c.bf16 %v3577, %v3576
        %v3608 = vpack.c.bf16 %v3579, %v3578
        %v3609 = vpack.c.bf16 %v3581, %v3580
        %v3610 = vpack.c.bf16 %v3583, %v3582
        %v3611 = vpack.c.bf16 %v3585, %v3584
        %v3612 = vpack.c.bf16 %v3587, %v3586
        %v3613 = vpack.c.bf16 %v3589, %v3588
        %s3614 = scalar_lea.vmem %s1, 64
        %v3615 = vld [vmem:[%s3614] sm:$0xf]
        %v3616 = vld [vmem:[%s3614 + $0x4] sm:$0xf]
        %v3619 = vunpack.c.l.b16 %v3615
        %v3620 = vunpack.c.l.b16 %v3616
        %v3621 = vpack.c.b16 %v3620, %v3619
        %v3624 = vsel %vm371, %v3590, 0
        %v3627 = vsel %vm371, %v3591, 0
        %v3630 = vsel %vm371, %v3592, 0
        %v3633 = vsel %vm371, %v3593, 0
        %v3636 = vsel %vm371, %v3594, 0
        %v3639 = vsel %vm371, %v3595, 0
        %v3642 = vsel %vm371, %v3596, 0
        %v3645 = vsel %vm371, %v3597, 0
        %v3648 = vsel %vm371, %v3598, 0
        %v3651 = vsel %vm371, %v3599, 0
        %v3654 = vsel %vm371, %v3600, 0
        %v3657 = vsel %vm371, %v3601, 0
        %v3660 = vsel %vm371, %v3602, 0
        %v3663 = vsel %vm371, %v3603, 0
        %v3666 = vsel %vm371, %v3604, 0
        %v3669 = vsel %vm371, %v3605, 0
        %v3672 = vsel %vm371, %v3606, 0
        %v3675 = vsel %vm371, %v3607, 0
        %v3678 = vsel %vm371, %v3608, 0
        %v3681 = vsel %vm371, %v3609, 0
        %v3684 = vsel %vm371, %v3610, 0
        %v3687 = vsel %vm371, %v3611, 0
        %v3690 = vsel %vm371, %v3612, 0
        %v3693 = vsel %vm371, %v3613, 0
        %3695 = vmatprep.subr.bf16.mxu0 0
        %3696 = vmatpush1.bf16.msra.mxu0 %v3621
        %3697 = vmatprep.subr.bf16.mxu0 0
        %3698 = vmatpush1.bf16.msra.mxu0 0
        %3699 = vmatprep.subr.bf16.mxu0 0
        %3700 = vmatpush1.bf16.msra.mxu0 0
        %3701 = vmatprep.subr.bf16.mxu0 0
        %3702 = vmatpush1.bf16.msra.mxu0 0
        %3703 = vmatprep.subr.bf16.mxu0 0
        %3704 = vmatpush1.bf16.msra.mxu0 0
        %3705 = vmatprep.subr.bf16.mxu0 0
        %3706 = vmatpush1.bf16.msra.mxu0 0
        %3707 = vmatprep.subr.bf16.mxu0 0
        %3708 = vmatpush1.bf16.msra.mxu0 0
        %3709 = vmatprep.subr.bf16.mxu0 0
        %3710 = vmatpush1.bf16.msra.mxu0 0
        %3711 = vmatprep.subr.bf16.mxu0 0
        %3712 = vmatpush1.bf16.msra.mxu0 0
        %3713 = vmatprep.subr.bf16.mxu0 0
        %3714 = vmatpush1.bf16.msra.mxu0 0
        %3715 = vmatprep.subr.bf16.mxu0 0
        %3716 = vmatpush1.bf16.msra.mxu0 0
        %3717 = vmatprep.subr.bf16.mxu0 0
        %3718 = vmatpush1.bf16.msra.mxu0 0
        %3719 = vmatprep.subr.bf16.mxu0 0
        %3720 = vmatpush1.bf16.msra.mxu0 0
        %3721 = vmatprep.subr.bf16.mxu0 0
        %3722 = vmatpush1.bf16.msra.mxu0 0
        %3723 = vmatprep.subr.bf16.mxu0 0
        %3724 = vmatpush1.bf16.msra.mxu0 0
        %3725 = vmatprep.subr.bf16.mxu0 0
        %3726 = vmatpush1.bf16.msra.mxu0 0
        %3727 = vmatprep.mubr.bf16.mxu0 0
        %3728 = vmatmul.mubr.bf16.gmra.mrb[0].mxu0 %v3624
        %v3729 = vpop.f32.mrb[0].mxu0
        %v3730 = vadd.f32 0.0, %v3729
        %v3731 = vpop.f32.mrb[0].mxu0
        %v3732 = vpop.f32.mrb[0].mxu0
        %v3733 = vadd.f32 0.0, %v3732
        %v3734 = vpop.f32.mrb[0].mxu0
        %3735 = vmatprep.mubr.bf16.mxu0 0
        %3736 = vmatmul.mubr.bf16.gmra.mrb[0].mxu0 %v3627
        %v3737 = vpop.f32.mrb[0].mxu0
        %v3738 = vadd.f32 0.0, %v3737
        %v3739 = vpop.f32.mrb[0].mxu0
        %v3740 = vpop.f32.mrb[0].mxu0
        %v3741 = vadd.f32 0.0, %v3740
        %v3742 = vpop.f32.mrb[0].mxu0
        %3743 = vmatprep.mubr.bf16.mxu0 0
        %3744 = vmatmul.mubr.bf16.gmra.mrb[0].mxu0 %v3630
        %v3745 = vpop.f32.mrb[0].mxu0
        %v3746 = vadd.f32 0.0, %v3745
        %v3747 = vpop.f32.mrb[0].mxu0
        %v3748 = vpop.f32.mrb[0].mxu0
        %v3749 = vadd.f32 0.0, %v3748
        %v3750 = vpop.f32.mrb[0].mxu0
        %3751 = vmatprep.mubr.bf16.mxu0 0
        %3752 = vmatmul.mubr.bf16.gmra.mrb[0].mxu0 %v3633
        %v3753 = vpop.f32.mrb[0].mxu0
        %v3754 = vadd.f32 0.0, %v3753
        %v3755 = vpop.f32.mrb[0].mxu0
        %v3756 = vpop.f32.mrb[0].mxu0
        %v3757 = vadd.f32 0.0, %v3756
        %v3758 = vpop.f32.mrb[0].mxu0
        %3759 = vmatprep.mubr.bf16.mxu0 0
        %3760 = vmatmul.mubr.bf16.gmra.mrb[0].mxu0 %v3636
        %v3761 = vpop.f32.mrb[0].mxu0
        %v3762 = vadd.f32 0.0, %v3761
        %v3763 = vpop.f32.mrb[0].mxu0
        %v3764 = vpop.f32.mrb[0].mxu0
        %v3765 = vadd.f32 0.0, %v3764
        %v3766 = vpop.f32.mrb[0].mxu0
        %3767 = vmatprep.mubr.bf16.mxu0 0
        %3768 = vmatmul.mubr.bf16.gmra.mrb[0].mxu0 %v3639
        %v3769 = vpop.f32.mrb[0].mxu0
        %v3770 = vadd.f32 0.0, %v3769
        %v3771 = vpop.f32.mrb[0].mxu0
        %v3772 = vpop.f32.mrb[0].mxu0
        %v3773 = vadd.f32 0.0, %v3772
        %v3774 = vpop.f32.mrb[0].mxu0
        %3775 = vmatprep.mubr.bf16.mxu0 0
        %3776 = vmatmul.mubr.bf16.gmra.mrb[0].mxu0 %v3642
        %v3777 = vpop.f32.mrb[0].mxu0
        %v3778 = vadd.f32 0.0, %v3777
        %v3779 = vpop.f32.mrb[0].mxu0
        %v3780 = vpop.f32.mrb[0].mxu0
        %v3781 = vadd.f32 0.0, %v3780
        %v3782 = vpop.f32.mrb[0].mxu0
        %3783 = vmatprep.mubr.bf16.mxu0 0
        %3784 = vmatmul.mubr.bf16.gmra.mrb[0].mxu0 %v3645
        %v3785 = vpop.f32.mrb[0].mxu0
        %v3786 = vadd.f32 0.0, %v3785
        %v3787 = vpop.f32.mrb[0].mxu0
        %v3788 = vpop.f32.mrb[0].mxu0
        %v3789 = vadd.f32 0.0, %v3788
        %v3790 = vpop.f32.mrb[0].mxu0
        %3791 = vmatprep.mubr.bf16.mxu0 0
        %3792 = vmatmul.mubr.bf16.gmra.mrb[0].mxu0 %v3648
        %v3793 = vpop.f32.mrb[0].mxu0
        %v3794 = vadd.f32 0.0, %v3793
        %v3795 = vpop.f32.mrb[0].mxu0
        %v3796 = vpop.f32.mrb[0].mxu0
        %v3797 = vadd.f32 0.0, %v3796
        %v3798 = vpop.f32.mrb[0].mxu0
        %3799 = vmatprep.mubr.bf16.mxu0 0
        %3800 = vmatmul.mubr.bf16.gmra.mrb[0].mxu0 %v3651
        %v3801 = vpop.f32.mrb[0].mxu0
        %v3802 = vadd.f32 0.0, %v3801
        %v3803 = vpop.f32.mrb[0].mxu0
        %v3804 = vpop.f32.mrb[0].mxu0
        %v3805 = vadd.f32 0.0, %v3804
        %v3806 = vpop.f32.mrb[0].mxu0
        %3807 = vmatprep.mubr.bf16.mxu0 0
        %3808 = vmatmul.mubr.bf16.gmra.mrb[0].mxu0 %v3654
        %v3809 = vpop.f32.mrb[0].mxu0
        %v3810 = vadd.f32 0.0, %v3809
        %v3811 = vpop.f32.mrb[0].mxu0
        %v3812 = vpop.f32.mrb[0].mxu0
        %v3813 = vadd.f32 0.0, %v3812
        %v3814 = vpop.f32.mrb[0].mxu0
        %3815 = vmatprep.mubr.bf16.mxu0 0
        %3816 = vmatmul.mubr.bf16.gmra.mrb[0].mxu0 %v3657
        %v3817 = vpop.f32.mrb[0].mxu0
        %v3818 = vadd.f32 0.0, %v3817
        %v3819 = vpop.f32.mrb[0].mxu0
        %v3820 = vpop.f32.mrb[0].mxu0
        %v3821 = vadd.f32 0.0, %v3820
        %v3822 = vpop.f32.mrb[0].mxu0
        %3823 = vmatprep.mubr.bf16.mxu0 0
        %3824 = vmatmul.mubr.bf16.gmra.mrb[0].mxu0 %v3660
        %v3825 = vpop.f32.mrb[0].mxu0
        %v3826 = vadd.f32 0.0, %v3825
        %v3827 = vpop.f32.mrb[0].mxu0
        %v3828 = vpop.f32.mrb[0].mxu0
        %v3829 = vadd.f32 0.0, %v3828
        %v3830 = vpop.f32.mrb[0].mxu0
        %3831 = vmatprep.mubr.bf16.mxu0 0
        %3832 = vmatmul.mubr.bf16.gmra.mrb[0].mxu0 %v3663
        %v3833 = vpop.f32.mrb[0].mxu0
        %v3834 = vadd.f32 0.0, %v3833
        %v3835 = vpop.f32.mrb[0].mxu0
        %v3836 = vpop.f32.mrb[0].mxu0
        %v3837 = vadd.f32 0.0, %v3836
        %v3838 = vpop.f32.mrb[0].mxu0
        %3839 = vmatprep.mubr.bf16.mxu0 0
        %3840 = vmatmul.mubr.bf16.gmra.mrb[0].mxu0 %v3666
        %v3841 = vpop.f32.mrb[0].mxu0
        %v3842 = vadd.f32 0.0, %v3841
        %v3843 = vpop.f32.mrb[0].mxu0
        %v3844 = vpop.f32.mrb[0].mxu0
        %v3845 = vadd.f32 0.0, %v3844
        %v3846 = vpop.f32.mrb[0].mxu0
        %3847 = vmatprep.mubr.bf16.mxu0 0
        %3848 = vmatmul.mubr.bf16.gmra.mrb[0].mxu0 %v3669
        %v3849 = vpop.f32.mrb[0].mxu0
        %v3850 = vadd.f32 0.0, %v3849
        %v3851 = vpop.f32.mrb[0].mxu0
        %v3852 = vpop.f32.mrb[0].mxu0
        %v3853 = vadd.f32 0.0, %v3852
        %v3854 = vpop.f32.mrb[0].mxu0
        %3855 = vmatprep.mubr.bf16.mxu0 0
        %3856 = vmatmul.mubr.bf16.gmra.mrb[0].mxu0 %v3672
        %v3857 = vpop.f32.mrb[0].mxu0
        %v3858 = vadd.f32 0.0, %v3857
        %v3859 = vpop.f32.mrb[0].mxu0
        %v3860 = vpop.f32.mrb[0].mxu0
        %v3861 = vadd.f32 0.0, %v3860
        %v3862 = vpop.f32.mrb[0].mxu0
        %3863 = vmatprep.mubr.bf16.mxu0 0
        %3864 = vmatmul.mubr.bf16.gmra.mrb[0].mxu0 %v3675
        %v3865 = vpop.f32.mrb[0].mxu0
        %v3866 = vadd.f32 0.0, %v3865
        %v3867 = vpop.f32.mrb[0].mxu0
        %v3868 = vpop.f32.mrb[0].mxu0
        %v3869 = vadd.f32 0.0, %v3868
        %v3870 = vpop.f32.mrb[0].mxu0
        %3871 = vmatprep.mubr.bf16.mxu0 0
        %3872 = vmatmul.mubr.bf16.gmra.mrb[0].mxu0 %v3678
        %v3873 = vpop.f32.mrb[0].mxu0
        %v3874 = vadd.f32 0.0, %v3873
        %v3875 = vpop.f32.mrb[0].mxu0
        %v3876 = vpop.f32.mrb[0].mxu0
        %v3877 = vadd.f32 0.0, %v3876
        %v3878 = vpop.f32.mrb[0].mxu0
        %3879 = vmatprep.mubr.bf16.mxu0 0
        %3880 = vmatmul.mubr.bf16.gmra.mrb[0].mxu0 %v3681
        %v3881 = vpop.f32.mrb[0].mxu0
        %v3882 = vadd.f32 0.0, %v3881
        %v3883 = vpop.f32.mrb[0].mxu0
        %v3884 = vpop.f32.mrb[0].mxu0
        %v3885 = vadd.f32 0.0, %v3884
        %v3886 = vpop.f32.mrb[0].mxu0
        %3887 = vmatprep.mubr.bf16.mxu0 0
        %3888 = vmatmul.mubr.bf16.gmra.mrb[0].mxu0 %v3684
        %v3889 = vpop.f32.mrb[0].mxu0
        %v3890 = vadd.f32 0.0, %v3889
        %v3891 = vpop.f32.mrb[0].mxu0
        %v3892 = vpop.f32.mrb[0].mxu0
        %v3893 = vadd.f32 0.0, %v3892
        %v3894 = vpop.f32.mrb[0].mxu0
        %3895 = vmatprep.mubr.bf16.mxu0 0
        %3896 = vmatmul.mubr.bf16.gmra.mrb[0].mxu0 %v3687
        %v3897 = vpop.f32.mrb[0].mxu0
        %v3898 = vadd.f32 0.0, %v3897
        %v3899 = vpop.f32.mrb[0].mxu0
        %v3900 = vpop.f32.mrb[0].mxu0
        %v3901 = vadd.f32 0.0, %v3900
        %v3902 = vpop.f32.mrb[0].mxu0
        %3903 = vmatprep.mubr.bf16.mxu0 0
        %3904 = vmatmul.mubr.bf16.gmra.mrb[0].mxu0 %v3690
        %v3905 = vpop.f32.mrb[0].mxu0
        %v3906 = vadd.f32 0.0, %v3905
        %v3907 = vpop.f32.mrb[0].mxu0
        %v3908 = vpop.f32.mrb[0].mxu0
        %v3909 = vadd.f32 0.0, %v3908
        %v3910 = vpop.f32.mrb[0].mxu0
        %3911 = vmatprep.mubr.bf16.mxu0 0
        %3912 = vmatmul.mubr.bf16.gmra.mrb[0].mxu0 %v3693
        %v3913 = vpop.f32.mrb[0].mxu0
        %v3914 = vadd.f32 0.0, %v3913
        %v3915 = vpop.f32.mrb[0].mxu0
        %v3916 = vpop.f32.mrb[0].mxu0
        %v3917 = vadd.f32 0.0, %v3916
        %v3918 = vpop.f32.mrb[0].mxu0
        %3919 = vdwg.mxu0
        %v3920 = vadd.f32 %v3492, %v3730
        %v3921 = vadd.f32 %v3493, %v3733
        %v3922 = vadd.f32 %v3494, %v3738
        %v3923 = vadd.f32 %v3495, %v3741
        %v3924 = vadd.f32 %v3496, %v3746
        %v3925 = vadd.f32 %v3497, %v3749
        %v3926 = vadd.f32 %v3498, %v3754
        %v3927 = vadd.f32 %v3499, %v3757
        %v3928 = vadd.f32 %v3500, %v3762
        %v3929 = vadd.f32 %v3501, %v3765
        %v3930 = vadd.f32 %v3502, %v3770
        %v3931 = vadd.f32 %v3503, %v3773
        %v3932 = vadd.f32 %v3504, %v3778
        %v3933 = vadd.f32 %v3505, %v3781
        %v3934 = vadd.f32 %v3506, %v3786
        %v3935 = vadd.f32 %v3507, %v3789
        %v3936 = vadd.f32 %v3508, %v3794
        %v3937 = vadd.f32 %v3509, %v3797
        %v3938 = vadd.f32 %v3510, %v3802
        %v3939 = vadd.f32 %v3511, %v3805
        %v3940 = vadd.f32 %v3512, %v3810
        %v3941 = vadd.f32 %v3513, %v3813
        %v3942 = vadd.f32 %v3514, %v3818
        %v3943 = vadd.f32 %v3515, %v3821
        %v3944 = vadd.f32 %v3516, %v3826
        %v3945 = vadd.f32 %v3517, %v3829
        %v3946 = vadd.f32 %v3518, %v3834
        %v3947 = vadd.f32 %v3519, %v3837
        %v3948 = vadd.f32 %v3520, %v3842
        %v3949 = vadd.f32 %v3521, %v3845
        %v3950 = vadd.f32 %v3522, %v3850
        %v3951 = vadd.f32 %v3523, %v3853
        %v3952 = vadd.f32 %v3524, %v3858
        %v3953 = vadd.f32 %v3525, %v3861
        %v3954 = vadd.f32 %v3526, %v3866
        %v3955 = vadd.f32 %v3527, %v3869
        %v3956 = vadd.f32 %v3528, %v3874
        %v3957 = vadd.f32 %v3529, %v3877
        %v3958 = vadd.f32 %v3530, %v3882
        %v3959 = vadd.f32 %v3531, %v3885
        %v3960 = vadd.f32 %v3532, %v3890
        %v3961 = vadd.f32 %v3533, %v3893
        %v3962 = vadd.f32 %v3534, %v3898
        %v3963 = vadd.f32 %v3535, %v3901
        %v3964 = vadd.f32 %v3536, %v3906
        %v3965 = vadd.f32 %v3537, %v3909
        %v3966 = vadd.f32 %v3538, %v3914
        %v3967 = vadd.f32 %v3539, %v3917
        %v3968 = vld [vmem:[%s2] sm:$0x1]
        %v3970 = vlaneseq
        %v3971 = vshrl.u32 %v3970, 7
        %v3972 = vsub.s32 0, %v3971
        %v3973 = vrot.slane %v3968, %v3972
        %v3975 = vmul.f32 %v3920, %v3973
        %v3976 = vmul.f32 %v3921, %v3973
        %v3977 = vmul.f32 %v3922, %v3973
        %v3978 = vmul.f32 %v3923, %v3973
        %v3979 = vmul.f32 %v3924, %v3973
        %v3980 = vmul.f32 %v3925, %v3973
        %v3981 = vmul.f32 %v3926, %v3973
        %v3982 = vmul.f32 %v3927, %v3973
        %v3983 = vmul.f32 %v3928, %v3973
        %v3984 = vmul.f32 %v3929, %v3973
        %v3985 = vmul.f32 %v3930, %v3973
        %v3986 = vmul.f32 %v3931, %v3973
        %v3987 = vmul.f32 %v3932, %v3973
        %v3988 = vmul.f32 %v3933, %v3973
        %v3989 = vmul.f32 %v3934, %v3973
        %v3990 = vmul.f32 %v3935, %v3973
        %v3991 = vmul.f32 %v3936, %v3973
        %v3992 = vmul.f32 %v3937, %v3973
        %v3993 = vmul.f32 %v3938, %v3973
        %v3994 = vmul.f32 %v3939, %v3973
        %v3995 = vmul.f32 %v3940, %v3973
        %v3996 = vmul.f32 %v3941, %v3973
        %v3997 = vmul.f32 %v3942, %v3973
        %v3998 = vmul.f32 %v3943, %v3973
        %v3999 = vmul.f32 %v3944, %v3973
        %v4000 = vmul.f32 %v3945, %v3973
        %v4001 = vmul.f32 %v3946, %v3973
        %v4002 = vmul.f32 %v3947, %v3973
        %v4003 = vmul.f32 %v3948, %v3973
        %v4004 = vmul.f32 %v3949, %v3973
        %v4005 = vmul.f32 %v3950, %v3973
        %v4006 = vmul.f32 %v3951, %v3973
        %v4007 = vmul.f32 %v3952, %v3973
        %v4008 = vmul.f32 %v3953, %v3973
        %v4009 = vmul.f32 %v3954, %v3973
        %v4010 = vmul.f32 %v3955, %v3973
        %v4011 = vmul.f32 %v3956, %v3973
        %v4012 = vmul.f32 %v3957, %v3973
        %v4013 = vmul.f32 %v3958, %v3973
        %v4014 = vmul.f32 %v3959, %v3973
        %v4015 = vmul.f32 %v3960, %v3973
        %v4016 = vmul.f32 %v3961, %v3973
        %v4017 = vmul.f32 %v3962, %v3973
        %v4018 = vmul.f32 %v3963, %v3973
        %v4019 = vmul.f32 %v3964, %v3973
        %v4020 = vmul.f32 %v3965, %v3973
        %v4021 = vmul.f32 %v3966, %v3973
        %v4022 = vmul.f32 %v3967, %v3973
        %v4023 = vld [vmem:[%s3] sm:$0x1]
        %v4025 = vlaneseq
        %v4026 = vshrl.u32 %v4025, 7
        %v4027 = vsub.s32 0, %v4026
        %v4028 = vrot.slane %v4023, %v4027
        %v4030 = vadd.f32 %v3975, %v4028
        %v4031 = vadd.f32 %v3976, %v4028
        %v4032 = vadd.f32 %v3977, %v4028
        %v4033 = vadd.f32 %v3978, %v4028
        %v4034 = vadd.f32 %v3979, %v4028
        %v4035 = vadd.f32 %v3980, %v4028
        %v4036 = vadd.f32 %v3981, %v4028
        %v4037 = vadd.f32 %v3982, %v4028
        %v4038 = vadd.f32 %v3983, %v4028
        %v4039 = vadd.f32 %v3984, %v4028
        %v4040 = vadd.f32 %v3985, %v4028
        %v4041 = vadd.f32 %v3986, %v4028
        %v4042 = vadd.f32 %v3987, %v4028
        %v4043 = vadd.f32 %v3988, %v4028
        %v4044 = vadd.f32 %v3989, %v4028
        %v4045 = vadd.f32 %v3990, %v4028
        %v4046 = vadd.f32 %v3991, %v4028
        %v4047 = vadd.f32 %v3992, %v4028
        %v4048 = vadd.f32 %v3993, %v4028
        %v4049 = vadd.f32 %v3994, %v4028
        %v4050 = vadd.f32 %v3995, %v4028
        %v4051 = vadd.f32 %v3996, %v4028
        %v4052 = vadd.f32 %v3997, %v4028
        %v4053 = vadd.f32 %v3998, %v4028
        %v4054 = vadd.f32 %v3999, %v4028
        %v4055 = vadd.f32 %v4000, %v4028
        %v4056 = vadd.f32 %v4001, %v4028
        %v4057 = vadd.f32 %v4002, %v4028
        %v4058 = vadd.f32 %v4003, %v4028
        %v4059 = vadd.f32 %v4004, %v4028
        %v4060 = vadd.f32 %v4005, %v4028
        %v4061 = vadd.f32 %v4006, %v4028
        %v4062 = vadd.f32 %v4007, %v4028
        %v4063 = vadd.f32 %v4008, %v4028
        %v4064 = vadd.f32 %v4009, %v4028
        %v4065 = vadd.f32 %v4010, %v4028
        %v4066 = vadd.f32 %v4011, %v4028
        %v4067 = vadd.f32 %v4012, %v4028
        %v4068 = vadd.f32 %v4013, %v4028
        %v4069 = vadd.f32 %v4014, %v4028
        %v4070 = vadd.f32 %v4015, %v4028
        %v4071 = vadd.f32 %v4016, %v4028
        %v4072 = vadd.f32 %v4017, %v4028
        %v4073 = vadd.f32 %v4018, %v4028
        %v4074 = vadd.f32 %v4019, %v4028
        %v4075 = vadd.f32 %v4020, %v4028
        %v4076 = vadd.f32 %v4021, %v4028
        %v4077 = vadd.f32 %v4022, %v4028
        %v4078 = vmax.f32 %v4030, 0.0
        %v4079 = vmax.f32 %v4031, 0.0
        %v4080 = vmax.f32 %v4032, 0.0
        %v4081 = vmax.f32 %v4033, 0.0
        %v4082 = vmax.f32 %v4034, 0.0
        %v4083 = vmax.f32 %v4035, 0.0
        %v4084 = vmax.f32 %v4036, 0.0
        %v4085 = vmax.f32 %v4037, 0.0
        %v4086 = vmax.f32 %v4038, 0.0
        %v4087 = vmax.f32 %v4039, 0.0
        %v4088 = vmax.f32 %v4040, 0.0
        %v4089 = vmax.f32 %v4041, 0.0
        %v4090 = vmax.f32 %v4042, 0.0
        %v4091 = vmax.f32 %v4043, 0.0
        %v4092 = vmax.f32 %v4044, 0.0
        %v4093 = vmax.f32 %v4045, 0.0
        %v4094 = vmax.f32 %v4046, 0.0
        %v4095 = vmax.f32 %v4047, 0.0
        %v4096 = vmax.f32 %v4048, 0.0
        %v4097 = vmax.f32 %v4049, 0.0
        %v4098 = vmax.f32 %v4050, 0.0
        %v4099 = vmax.f32 %v4051, 0.0
        %v4100 = vmax.f32 %v4052, 0.0
        %v4101 = vmax.f32 %v4053, 0.0
        %v4102 = vmax.f32 %v4054, 0.0
        %v4103 = vmax.f32 %v4055, 0.0
        %v4104 = vmax.f32 %v4056, 0.0
        %v4105 = vmax.f32 %v4057, 0.0
        %v4106 = vmax.f32 %v4058, 0.0
        %v4107 = vmax.f32 %v4059, 0.0
        %v4108 = vmax.f32 %v4060, 0.0
        %v4109 = vmax.f32 %v4061, 0.0
        %v4110 = vmax.f32 %v4062, 0.0
        %v4111 = vmax.f32 %v4063, 0.0
        %v4112 = vmax.f32 %v4064, 0.0
        %v4113 = vmax.f32 %v4065, 0.0
        %v4114 = vmax.f32 %v4066, 0.0
        %v4115 = vmax.f32 %v4067, 0.0
        %v4116 = vmax.f32 %v4068, 0.0
        %v4117 = vmax.f32 %v4069, 0.0
        %v4118 = vmax.f32 %v4070, 0.0
        %v4119 = vmax.f32 %v4071, 0.0
        %v4120 = vmax.f32 %v4072, 0.0
        %v4121 = vmax.f32 %v4073, 0.0
        %v4122 = vmax.f32 %v4074, 0.0
        %v4123 = vmax.f32 %v4075, 0.0
        %v4124 = vmax.f32 %v4076, 0.0
        %v4125 = vmax.f32 %v4077, 0.0
        %4126 = vst [vmem:[%s204] sm:$0xff] %v4078
        %4127 = vst [vmem:[%s204 + $0x8] sm:$0xff] %v4079
        %4128 = vst [vmem:[%s204 + $0x10] sm:$0xff] %v4080
        %4129 = vst [vmem:[%s204 + $0x18] sm:$0xff] %v4081
        %4130 = vst [vmem:[%s204 + $0x20] sm:$0xff] %v4082
        %4131 = vst [vmem:[%s204 + $0x28] sm:$0xff] %v4083
        %4132 = vst [vmem:[%s204 + $0x30] sm:$0xff] %v4084
        %4133 = vst [vmem:[%s204 + $0x38] sm:$0xff] %v4085
        %4134 = vst [vmem:[%s204 + $0x40] sm:$0xff] %v4086
        %4135 = vst [vmem:[%s204 + $0x48] sm:$0xff] %v4087
        %4136 = vst [vmem:[%s204 + $0x50] sm:$0xff] %v4088
        %4137 = vst [vmem:[%s204 + $0x58] sm:$0xff] %v4089
        %4138 = vst [vmem:[%s204 + $0x60] sm:$0xff] %v4090
        %4139 = vst [vmem:[%s204 + $0x68] sm:$0xff] %v4091
        %4140 = vst [vmem:[%s204 + $0x70] sm:$0xff] %v4092
        %4141 = vst [vmem:[%s204 + $0x78] sm:$0xff] %v4093
        %4142 = vst [vmem:[%s204 + $0x80] sm:$0xff] %v4094
        %4143 = vst [vmem:[%s204 + $0x88] sm:$0xff] %v4095
        %4144 = vst [vmem:[%s204 + $0x90] sm:$0xff] %v4096
        %4145 = vst [vmem:[%s204 + $0x98] sm:$0xff] %v4097
        %4146 = vst [vmem:[%s204 + $0xa0] sm:$0xff] %v4098
        %4147 = vst [vmem:[%s204 + $0xa8] sm:$0xff] %v4099
        %4148 = vst [vmem:[%s204 + $0xb0] sm:$0xff] %v4100
        %4149 = vst [vmem:[%s204 + $0xb8] sm:$0xff] %v4101
        %4150 = vst [vmem:[%s204 + $0xc0] sm:$0xff] %v4102
        %4151 = vst [vmem:[%s204 + $0xc8] sm:$0xff] %v4103
        %4152 = vst [vmem:[%s204 + $0xd0] sm:$0xff] %v4104
        %4153 = vst [vmem:[%s204 + $0xd8] sm:$0xff] %v4105
        %4154 = vst [vmem:[%s204 + $0xe0] sm:$0xff] %v4106
        %4155 = vst [vmem:[%s204 + $0xe8] sm:$0xff] %v4107
        %4156 = vst [vmem:[%s204 + $0xf0] sm:$0xff] %v4108
        %4157 = vst [vmem:[%s204 + $0xf8] sm:$0xff] %v4109
        %4158 = vst [vmem:[%s204 + $0x100] sm:$0xff] %v4110
        %4159 = vst [vmem:[%s204 + $0x108] sm:$0xff] %v4111
        %4160 = vst [vmem:[%s204 + $0x110] sm:$0xff] %v4112
        %4161 = vst [vmem:[%s204 + $0x118] sm:$0xff] %v4113
        %4162 = vst [vmem:[%s204 + $0x120] sm:$0xff] %v4114
        %4163 = vst [vmem:[%s204 + $0x128] sm:$0xff] %v4115
        %4164 = vst [vmem:[%s204 + $0x130] sm:$0xff] %v4116
        %4165 = vst [vmem:[%s204 + $0x138] sm:$0xff] %v4117
        %4166 = vst [vmem:[%s204 + $0x140] sm:$0xff] %v4118
        %4167 = vst [vmem:[%s204 + $0x148] sm:$0xff] %v4119
        %4168 = vst [vmem:[%s204 + $0x150] sm:$0xff] %v4120
        %4169 = vst [vmem:[%s204 + $0x158] sm:$0xff] %v4121
        %4170 = vst [vmem:[%s204 + $0x160] sm:$0xff] %v4122
        %4171 = vst [vmem:[%s204 + $0x168] sm:$0xff] %v4123
        %4172 = vst [vmem:[%s204 + $0x170] sm:$0xff] %v4124
        %4173 = vst [vmem:[%s204 + $0x178] sm:$0xff] %v4125
        %s4174 = sand.u32 %s129, 1
        %s4175 = scalar_lea.sflag [#allocation3], %s4174
        %s4176 = sand.u32 %s129, 1
        %s4177 = smul.addr %s4176, 384
        %s4178 = scalar_lea.vmem [#allocation2], %s4177
        // Predicated region
        $region37: #{tpu_custom_call.1} parent=35 // pred_check
          %p4179 = pneg %p139
        $region38: #{tpu_custom_call.1} parent=35 // pred_check_branch
          %4181 = sbr.rel (%p4179) target = $region40
        $region39: #{tpu_custom_call.1} parent=35 // pred_region
          %s4182 = smul.u32 48, %s23
          %s4184 = ssub.s32 6144, 6144
          %4185 = vsyncadd %s4175, %s4184
          %s4186 = smul.addr %s22, 48
          %s4187 = sadd.s32 %s4182, %s4186
          %s4188 = smul.addr %s4187, 128
          %s4189 = scalar_lea.hbm %s4, %s4188
          %s4190 = sshll.u32 %s4178, 4
          %s4191 = int_to_ptr.vmem [resolvable:$true] %s4190
          %4196 = dma.vmem_to_hbm [thread:$0]  %s4191, 6144, %s4189, %s4175, 128, 128, 8
        $region40: #{tpu_custom_call.1} parent=35 // pred_fallthru
          _
      $region36: #{tpu_custom_call.1} parent=5 // pred_fallthru
        _
      %p4197 = scmp.le.s32.totalorder 2, %s13
      // Predicated region
      $region41: #{tpu_custom_call.1} parent=5 // pred_check
        %p4198 = pneg %p4197
      $region42: #{tpu_custom_call.1} parent=5 // pred_check_branch
        %4200 = sbr.rel (%p4198) target = $region44
      $region43: #{tpu_custom_call.1} parent=5 // pred_region
        %s4201 = ssub.s32 %s13, 2
        // Predicated region
        $region45: #{tpu_custom_call.1} parent=43 // pred_check
          %p4202 = pneg %p145
        $region46: #{tpu_custom_call.1} parent=43 // pred_check_branch
          %4204 = sbr.rel (%p4202) target = $region48
        $region47: #{tpu_custom_call.1} parent=43 // pred_region
          %s4205 = sand.u32 %s130, 1
          %s4206 = scalar_lea.sflag [#allocation3], %s4205
          %s4207 = sand.u32 %s130, 1
          %s4208 = smul.addr %s4207, 384
          %s4209 = scalar_lea.vmem [#allocation2], %s4208
          %4210 = dma.done %s4206, 6144
        $region48: #{tpu_custom_call.1} parent=43 // pred_fallthru
          _
      $region44: #{tpu_custom_call.1} parent=5 // pred_fallthru
        _
    $region6: #{tpu_custom_call.1} parent=1 // loop_footer
      %s17 = sadd.s32 1, %s13
    $region7: #{tpu_custom_call.1} parent=1 // loop_footer_branch
      %12 = sbr.rel target = $region3
    $region8: #{tpu_custom_call.1} parent=1 // loop_exit
      _
    %4211 = vsyncpa [#allocation3], 1
    %s4212 = scalar_lea.sflag [#allocation3], 1
    %4213 = vsyncpa %s4212, 1

</llo_original>
